<compile_context>
chip_gen: v7x
topology: tpu7x:2x2x1
jax: 0.10.0
libtpu: 0.0.40
codegen_flags: <defaults>
</compile_context>

<pallas_src>
import functools
import math

import jax
import jax.numpy as jnp
from jax.experimental import pallas as pl
from jax.experimental.pallas import tpu as pltpu

LANE = 128


def _round_up(x, m):
    return ((x + m - 1) // m) * m


# Feature-test single-buffering of grid-invariant operands.
try:
    pl.BlockSpec((8, 128), lambda i: (0, 0), pipeline_mode=pl.Buffered(1))
    _HAS_PIPELINE_MODE = True
except Exception:  # older jax without pipeline_mode / Buffered
    _HAS_PIPELINE_MODE = False


# ----------------------------------------------------------------------------
# Pallas kernel
# ----------------------------------------------------------------------------
def _mlp(x_bf16, layers):
    """5-layer MLP: bf16 operands on the MXU, f32 accumulation, ReLU between.

    Inter-layer activations are kept in bf16 (single cast per layer); the
    final layer output is returned in f32 so the softmax math stays f32.
    """
    h = x_bf16
    n = len(layers)
    for i, (w_ref, b_ref) in enumerate(layers):
        z = jnp.dot(h, w_ref[...], preferred_element_type=jnp.float32) + b_ref[...]
        if i < n - 1:
            h = jnp.maximum(z, 0.0).astype(jnp.bfloat16)
        else:
            h = z
    return h


def _actor_critic_kernel(x_ref, *rest, action_dim, has_actor, has_critic):
    out_ref = rest[-1]
    param_refs = rest[:-1]

    x = x_ref[...].astype(jnp.bfloat16)          # one cast; activations stay bf16
    bm, out_pad = out_ref.shape
    lane = jax.lax.broadcasted_iota(jnp.int32, (bm, out_pad), 1)
    slab = jnp.zeros((bm, out_pad), jnp.float32)

    idx = 0
    if has_actor:
        a = param_refs[idx:idx + 10]
        idx += 10
        logits = _mlp(x, [(a[2 * i], a[2 * i + 1]) for i in range(5)])   # f32
        valid = lane < action_dim
        logits = jnp.where(valid, logits, jnp.float32(-1e30))
        m = jnp.max(logits, axis=-1, keepdims=True)
        e = jnp.exp(logits - m)
        s = jnp.sum(e, axis=-1, keepdims=True)
        logp = logits - (m + jnp.log(s))          # exact log-softmax
        p = e * (1.0 / s)                         # exact softmax: (bm,1) divide only
        ent = -jnp.sum(jnp.where(valid, p * logp, 0.0), axis=-1, keepdims=True)
        slab = jnp.where(valid, logp, slab)
        slab = jnp.where(lane == action_dim + 1, ent, slab)

    if has_critic:
        c = param_refs[idx:idx + 10]
        idx += 10
        # critic's last (padded) weight places the scalar value at lane == action_dim
        v = _mlp(x, [(c[2 * i], c[2 * i + 1]) for i in range(5)])
        slab = jnp.where(lane == action_dim, v, slab)

    out_ref[...] = slab.astype(out_ref.dtype)


# ----------------------------------------------------------------------------
# Wrapper
# ----------------------------------------------------------------------------
def _choose_block_m(batch):
    """Pick (block_m, padded_batch).

    Tiny batches (rollout path): one tile, grid=1.
    batch > 64: split into >= 2 tiles of at most 512 rows so the "parallel"
    grid axis shards across both v7x TensorCores, while keeping the batch
    padding waste minimal for awkward PPO minibatch sizes.
    """
    b8 = _round_up(batch, 8)
    if b8 <= 64:
        return b8, b8
    block_m = min(512, _round_up((b8 + 1) // 2, 8))
    return block_m, _round_up(b8, block_m)


def _const_param_spec(p):
    # Weights/biases: full-extent blocks, constant block index -> DMA'd once,
    # VMEM-resident across all batch tiles; single-buffered (they never change)
    # so their VMEM footprint is halved vs the default double-buffering.
    if _HAS_PIPELINE_MODE:
        return pl.BlockSpec(p.shape, lambda i: (0, 0), pipeline_mode=pl.Buffered(1))
    return pl.BlockSpec(p.shape, lambda i: (0, 0))


@functools.partial(
    jax.jit, static_argnames=("action_dim", "out_pad", "has_actor", "has_critic"))
def _forward_slab(state, params, *, action_dim, out_pad, has_actor, has_critic):
    batch, state_dim = state.shape
    state_pad = params[0].shape[0]            # first layer's padded input width
    block_m, padded_batch = _choose_block_m(batch)
    if padded_batch != batch or state_pad != state_dim:
        state = jnp.pad(state, ((0, padded_batch - batch),
                                (0, state_pad - state_dim)))
    grid = (padded_batch // block_m,)

    state_spec = pl.BlockSpec((block_m, state_pad), lambda i: (i, 0))
    param_specs = [_const_param_spec(p) for p in params]
    out_spec = pl.BlockSpec((block_m, out_pad), lambda i: (i, 0))

    kernel = functools.partial(_actor_critic_kernel, action_dim=action_dim,
                               has_actor=has_actor, has_critic=has_critic)
    return pl.pallas_call(
        kernel,
        out_shape=jax.ShapeDtypeStruct((padded_batch, out_pad), jnp.float32),
        grid_spec=pltpu.PrefetchScalarGridSpec(
            num_scalar_prefetch=0,
            grid=grid,
            in_specs=[state_spec] + param_specs,
            out_specs=out_spec,
        ),
        compiler_params=pltpu.CompilerParams(
            dimension_semantics=("parallel",),
            # Real footprint ~5-10 MiB; 32 MiB fits v7x (64 MiB physical) and
            # explicitly overrides v5e's 16 MiB scoped default.
            vmem_limit_bytes=32 * 1024 * 1024,
        ),
    )(state, *params)


# ----------------------------------------------------------------------------
# Parameter construction (PyTorch nn.Linear init, zero-padded, bf16 weights)
# ----------------------------------------------------------------------------
def _init_mlp_params(key, true_dims, padded_dims, last_col_offset=0):
    """Weights stored (in, out); real values zero-padded into aligned shapes."""
    params = []
    n_layers = len(true_dims) - 1
    for i in range(n_layers):
        key, kw, kb = jax.random.split(key, 3)
        bound = 1.0 / math.sqrt(true_dims[i])
        w = jax.random.uniform(kw, (true_dims[i], true_dims[i + 1]), jnp.float32,
                               minval=-bound, maxval=bound)
        b = jax.random.uniform(kb, (1, true_dims[i + 1]), jnp.float32,
                               minval=-bound, maxval=bound)
        off = last_col_offset if i == n_layers - 1 else 0
        wp = jnp.zeros((padded_dims[i], padded_dims[i + 1]), jnp.float32)
        wp = wp.at[:true_dims[i], off:off + true_dims[i + 1]].set(w)
        bp = jnp.zeros((1, padded_dims[i + 1]), jnp.float32)
        bp = bp.at[:, off:off + true_dims[i + 1]].set(b)
        params += [wp.astype(jnp.bfloat16), bp]   # bf16 weights, f32 biases
    return params


class ActorCriticPallas:
    """JAX/Pallas port of the PyTorch ActorCritic module."""

    def __init__(self, state_dim, action_dim, key):
        self.state_dim = state_dim
        self.action_dim = action_dim
        self.out_pad = _round_up(action_dim + 2, LANE)   # logp | value | entropy
        hidden_pad = _round_up(800, LANE)                # 800 -> 896 (= 7*128)
        state_pad = _round_up(state_dim, LANE)           # lane-dense state tile

        true_actor = [state_dim, 128, 800, 800, 128, action_dim]
        true_critic = [state_dim, 128, 800, 800, 128, 1]
        pad_dims = [state_pad, 128, hidden_pad, hidden_pad, 128, self.out_pad]

        k_actor, k_critic = jax.random.split(key)
        self.actor_params = tuple(_init_mlp_params(k_actor, true_actor, pad_dims, 0))
        self.critic_params = tuple(
            _init_mlp_params(k_critic, true_critic, pad_dims, action_dim))

    # ---- internal ----
    def _slab(self, state, *, has_actor, has_critic):
        # TODO(synk): for the tiny-batch act()/actor() rollout path the kernel
        # is bound by re-streaming ~2 MB of actor weights from HBM every call;
        # fix with cross-pallas_call weight prefetch (P10) or by batching env
        # steps per kernel invocation.
        params = ()
        if has_actor:
            params += self.actor_params
        if has_critic:
            params += self.critic_params
        return _forward_slab(state, params, action_dim=self.action_dim,
                             out_pad=self.out_pad,
                             has_actor=has_actor, has_critic=has_critic)

    # ---- public API matching the torch module ----
    def actor(self, state):
        slab = self._slab(state, has_actor=True, has_critic=False)
        logp = slab[:state.shape[0], :self.action_dim]
        return jnp.exp(logp)                             # action probabilities

    def critic(self, state):
        slab = self._slab(state, has_actor=False, has_critic=True)
        return slab[:state.shape[0], self.action_dim:self.action_dim + 1]

    def act(self, state, key):
        slab = self._slab(state, has_actor=True, has_critic=False)
        logp = slab[:state.shape[0], :self.action_dim]
        # Categorical sampling + gather: tiny glue in plain JAX on kernel log-probs.
        action = jax.random.categorical(key, logp, axis=-1)
        action_logprob = jnp.take_along_axis(logp, action[:, None], axis=-1)[:, 0]
        return action, action_logprob

    def evaluate(self, state, action):
        # One fused kernel: actor log-softmax + entropy + critic value.
        slab = self._slab(state, has_actor=True, has_critic=True)
        B, A = state.shape[0], self.action_dim
        logp_all = slab[:B, :A]
        action_logprobs = jnp.take_along_axis(
            logp_all, action[:, None].astype(jnp.int32), axis=-1)[:, 0]
        state_values = slab[:B, A:A + 1]
        dist_entropy = slab[:B, A + 1]
        return action_logprobs, state_values, dist_entropy


# ----------------------------------------------------------------------------
# Main
# ----------------------------------------------------------------------------
if __name__ == "__main__":
    key = jax.random.PRNGKey(0)
    k_model, k_state, k_act = jax.random.split(key, 3)

    batch = 2
    state_dim = 8
    action_dim = 4

    model = ActorCriticPallas(state_dim, action_dim, k_model)

    state = jax.random.normal(k_state, (batch, state_dim), jnp.float32)
    action = jnp.array([1, 0], dtype=jnp.int32)

    # act path (actor-only kernel, grid=1 rollout tile)
    sampled_action, sampled_logp = model.act(state, k_act)
    # evaluate path (fused actor+critic kernel)
    logp, values, entropy = model.evaluate(state, action)
    jax.block_until_ready((sampled_action, sampled_logp, logp, values, entropy))

    # also exercise the larger-batch (multi-tile / megacore) path once
    big_state = jax.random.normal(k_state, (300, state_dim), jnp.float32)
    big_action = jnp.zeros((300,), jnp.int32)
    big_out = model.evaluate(big_state, big_action)
    jax.block_until_ready(big_out)

    # sanity: probabilities sum to 1, shapes as in the torch module
    probs = model.actor(state)
    assert jnp.allclose(jnp.sum(probs, axis=-1), 1.0, atol=1e-5)
    assert values.shape == (batch, 1)
    assert logp.shape == (batch,)
    assert entropy.shape == (batch,)
    assert big_out[1].shape == (300, 1) and big_out[0].shape == (300,)
    # entropy of a categorical over 4 actions lies in [0, log(4)]
    assert bool(jnp.all(entropy >= -1e-4)) and bool(jnp.all(entropy <= math.log(4) + 1e-3))
    assert bool(jnp.all(big_out[2] >= -1e-4))

    print("KERNEL_OK")
</pallas_src>

<mosaic_0001>
module attributes {stable_mosaic.version = 11 : i64} {
  func.func @_actor_critic_kernel(%arg0: i32, %arg1: memref<8x128xf32, #tpu.memory_space<vmem>>, %arg2: memref<128x128xbf16, #tpu.memory_space<vmem>>, %arg3: memref<1x128xf32, #tpu.memory_space<vmem>>, %arg4: memref<128x896xbf16, #tpu.memory_space<vmem>>, %arg5: memref<1x896xf32, #tpu.memory_space<vmem>>, %arg6: memref<896x896xbf16, #tpu.memory_space<vmem>>, %arg7: memref<1x896xf32, #tpu.memory_space<vmem>>, %arg8: memref<896x128xbf16, #tpu.memory_space<vmem>>, %arg9: memref<1x128xf32, #tpu.memory_space<vmem>>, %arg10: memref<128x128xbf16, #tpu.memory_space<vmem>>, %arg11: memref<1x128xf32, #tpu.memory_space<vmem>>, %arg12: memref<8x128xf32, #tpu.memory_space<vmem>>) attributes {dimension_semantics = [#tpu.dimension_semantics<parallel>], iteration_bounds = array<i64: 1>, scalar_prefetch = 0 : i64, scratch_operands = 0 : i64, tpu.core_type = #tpu.core_type<tc>, window_params = [{transform_indices = @transform_0, window_bounds = array<i64: 8, 128>}, {pipeline_mode = #tpu.pipeline_mode<synchronous>, transform_indices = @transform_1, window_bounds = array<i64: 128, 128>}, {pipeline_mode = #tpu.pipeline_mode<synchronous>, transform_indices = @transform_2, window_bounds = array<i64: 1, 128>}, {pipeline_mode = #tpu.pipeline_mode<synchronous>, transform_indices = @transform_3, window_bounds = array<i64: 128, 896>}, {pipeline_mode = #tpu.pipeline_mode<synchronous>, transform_indices = @transform_4, window_bounds = array<i64: 1, 896>}, {pipeline_mode = #tpu.pipeline_mode<synchronous>, transform_indices = @transform_5, window_bounds = array<i64: 896, 896>}, {pipeline_mode = #tpu.pipeline_mode<synchronous>, transform_indices = @transform_6, window_bounds = array<i64: 1, 896>}, {pipeline_mode = #tpu.pipeline_mode<synchronous>, transform_indices = @transform_7, window_bounds = array<i64: 896, 128>}, {pipeline_mode = #tpu.pipeline_mode<synchronous>, transform_indices = @transform_8, window_bounds = array<i64: 1, 128>}, {pipeline_mode = #tpu.pipeline_mode<synchronous>, transform_indices = @transform_9, window_bounds = array<i64: 128, 128>}, {pipeline_mode = #tpu.pipeline_mode<synchronous>, transform_indices = @transform_10, window_bounds = array<i64: 1, 128>}, {transform_indices = @transform_11, window_bounds = array<i64: 8, 128>}]} {
    %c0 = arith.constant 0 : index
    %c0_0 = arith.constant 0 : index
    %0 = vector.load %arg1[%c0, %c0_0] : memref<8x128xf32, #tpu.memory_space<vmem>>, vector<8x128xf32>
    %1 = arith.truncf %0 : vector<8x128xf32> to vector<8x128xbf16>
    %2 = tpu.iota {dimensions = array<i32: 1>} : vector<8x128xi32>
    %cst = arith.constant 0.000000e+00 : f32
    %3 = vector.broadcast %cst : f32 to vector<8x128xf32>
    %c0_1 = arith.constant 0 : index
    %c0_2 = arith.constant 0 : index
    %4 = vector.load %arg2[%c0_1, %c0_2] : memref<128x128xbf16, #tpu.memory_space<vmem>>, vector<128x128xbf16>
    %cst_3 = arith.constant dense<0.000000e+00> : vector<8x128xf32>
    %5 = tpu.matmul %1, %4, %cst_3 {dimension_numbers = #tpu.dot_dimension_numbers<[1], [0], [0], [1], [0, 0, 1, 1], [], []>} : vector<8x128xbf16>, vector<128x128xbf16>, vector<8x128xf32> -> vector<8x128xf32>
    %c0_4 = arith.constant 0 : index
    %c0_5 = arith.constant 0 : index
    %6 = vector.load %arg3[%c0_4, %c0_5] : memref<1x128xf32, #tpu.memory_space<vmem>>, vector<1x128xf32>
    %7 = vector.broadcast %6 : vector<1x128xf32> to vector<8x128xf32>
    %8 = arith.addf %5, %7 : vector<8x128xf32>
    %cst_6 = arith.constant 0.000000e+00 : f32
    %9 = vector.broadcast %cst_6 : f32 to vector<8x128xf32>
    %10 = arith.maximumf %8, %9 : vector<8x128xf32>
    %11 = arith.truncf %10 : vector<8x128xf32> to vector<8x128xbf16>
    %c0_7 = arith.constant 0 : index
    %c0_8 = arith.constant 0 : index
    %12 = vector.load %arg4[%c0_7, %c0_8] : memref<128x896xbf16, #tpu.memory_space<vmem>>, vector<128x896xbf16>
    %cst_9 = arith.constant dense<0.000000e+00> : vector<8x896xf32>
    %13 = tpu.matmul %11, %12, %cst_9 {dimension_numbers = #tpu.dot_dimension_numbers<[1], [0], [0], [1], [0, 0, 1, 1], [], []>} : vector<8x128xbf16>, vector<128x896xbf16>, vector<8x896xf32> -> vector<8x896xf32>
    %c0_10 = arith.constant 0 : index
    %c0_11 = arith.constant 0 : index
    %14 = vector.load %arg5[%c0_10, %c0_11] : memref<1x896xf32, #tpu.memory_space<vmem>>, vector<1x896xf32>
    %15 = vector.broadcast %14 : vector<1x896xf32> to vector<8x896xf32>
    %16 = arith.addf %13, %15 : vector<8x896xf32>
    %cst_12 = arith.constant 0.000000e+00 : f32
    %17 = vector.broadcast %cst_12 : f32 to vector<8x896xf32>
    %18 = arith.maximumf %16, %17 : vector<8x896xf32>
    %19 = arith.truncf %18 : vector<8x896xf32> to vector<8x896xbf16>
    %c0_13 = arith.constant 0 : index
    %c0_14 = arith.constant 0 : index
    %20 = vector.load %arg6[%c0_13, %c0_14] : memref<896x896xbf16, #tpu.memory_space<vmem>>, vector<896x896xbf16>
    %cst_15 = arith.constant dense<0.000000e+00> : vector<8x896xf32>
    %21 = tpu.matmul %19, %20, %cst_15 {dimension_numbers = #tpu.dot_dimension_numbers<[1], [0], [0], [1], [0, 0, 1, 1], [], []>} : vector<8x896xbf16>, vector<896x896xbf16>, vector<8x896xf32> -> vector<8x896xf32>
    %c0_16 = arith.constant 0 : index
    %c0_17 = arith.constant 0 : index
    %22 = vector.load %arg7[%c0_16, %c0_17] : memref<1x896xf32, #tpu.memory_space<vmem>>, vector<1x896xf32>
    %23 = vector.broadcast %22 : vector<1x896xf32> to vector<8x896xf32>
    %24 = arith.addf %21, %23 : vector<8x896xf32>
    %cst_18 = arith.constant 0.000000e+00 : f32
    %25 = vector.broadcast %cst_18 : f32 to vector<8x896xf32>
    %26 = arith.maximumf %24, %25 : vector<8x896xf32>
    %27 = arith.truncf %26 : vector<8x896xf32> to vector<8x896xbf16>
    %c0_19 = arith.constant 0 : index
    %c0_20 = arith.constant 0 : index
    %28 = vector.load %arg8[%c0_19, %c0_20] : memref<896x128xbf16, #tpu.memory_space<vmem>>, vector<896x128xbf16>
    %cst_21 = arith.constant dense<0.000000e+00> : vector<8x128xf32>
    %29 = tpu.matmul %27, %28, %cst_21 {dimension_numbers = #tpu.dot_dimension_numbers<[1], [0], [0], [1], [0, 0, 1, 1], [], []>} : vector<8x896xbf16>, vector<896x128xbf16>, vector<8x128xf32> -> vector<8x128xf32>
    %c0_22 = arith.constant 0 : index
    %c0_23 = arith.constant 0 : index
    %30 = vector.load %arg9[%c0_22, %c0_23] : memref<1x128xf32, #tpu.memory_space<vmem>>, vector<1x128xf32>
    %31 = vector.broadcast %30 : vector<1x128xf32> to vector<8x128xf32>
    %32 = arith.addf %29, %31 : vector<8x128xf32>
    %cst_24 = arith.constant 0.000000e+00 : f32
    %33 = vector.broadcast %cst_24 : f32 to vector<8x128xf32>
    %34 = arith.maximumf %32, %33 : vector<8x128xf32>
    %35 = arith.truncf %34 : vector<8x128xf32> to vector<8x128xbf16>
    %c0_25 = arith.constant 0 : index
    %c0_26 = arith.constant 0 : index
    %36 = vector.load %arg10[%c0_25, %c0_26] : memref<128x128xbf16, #tpu.memory_space<vmem>>, vector<128x128xbf16>
    %cst_27 = arith.constant dense<0.000000e+00> : vector<8x128xf32>
    %37 = tpu.matmul %35, %36, %cst_27 {dimension_numbers = #tpu.dot_dimension_numbers<[1], [0], [0], [1], [0, 0, 1, 1], [], []>} : vector<8x128xbf16>, vector<128x128xbf16>, vector<8x128xf32> -> vector<8x128xf32>
    %c0_28 = arith.constant 0 : index
    %c0_29 = arith.constant 0 : index
    %38 = vector.load %arg11[%c0_28, %c0_29] : memref<1x128xf32, #tpu.memory_space<vmem>>, vector<1x128xf32>
    %39 = vector.broadcast %38 : vector<1x128xf32> to vector<8x128xf32>
    %40 = arith.addf %37, %39 : vector<8x128xf32>
    %c4_i32 = arith.constant 4 : i32
    %41 = vector.broadcast %c4_i32 : i32 to vector<8x128xi32>
    %42 = arith.cmpi slt, %2, %41 : vector<8x128xi32>
    %cst_30 = arith.constant -1.000000e+30 : f32
    %43 = vector.broadcast %cst_30 : f32 to vector<8x128xf32>
    %44 = arith.select %42, %40, %43 : vector<8x128xi1>, vector<8x128xf32>
    %cst_31 = arith.constant dense<0xFF800000> : vector<8xf32>
    %45 = vector.multi_reduction <maximumf>, %44, %cst_31 [1] : vector<8x128xf32> to vector<8xf32>
    %46 = vector.shape_cast %45 : vector<8xf32> to vector<8x1xf32>
    %47 = vector.broadcast %46 : vector<8x1xf32> to vector<8x128xf32>
    %48 = arith.subf %44, %47 : vector<8x128xf32>
    %49 = math.exp %48 : vector<8x128xf32>
    %cst_32 = arith.constant dense<0.000000e+00> : vector<8xf32>
    %50 = vector.multi_reduction <add>, %49, %cst_32 [1] : vector<8x128xf32> to vector<8xf32>
    %51 = vector.shape_cast %50 : vector<8xf32> to vector<8x1xf32>
    %52 = math.log %51 : vector<8x1xf32>
    %53 = arith.addf %46, %52 : vector<8x1xf32>
    %54 = vector.broadcast %53 : vector<8x1xf32> to vector<8x128xf32>
    %55 = arith.subf %44, %54 : vector<8x128xf32>
    %cst_33 = arith.constant 1.000000e+00 : f32
    %56 = vector.broadcast %cst_33 : f32 to vector<8x1xf32>
    %57 = arith.divf %56, %51 : vector<8x1xf32>
    %58 = vector.broadcast %57 : vector<8x1xf32> to vector<8x128xf32>
    %59 = arith.mulf %49, %58 : vector<8x128xf32>
    %60 = arith.mulf %59, %55 : vector<8x128xf32>
    %cst_34 = arith.constant 0.000000e+00 : f32
    %61 = vector.broadcast %cst_34 : f32 to vector<8x128xf32>
    %62 = arith.select %42, %60, %61 : vector<8x128xi1>, vector<8x128xf32>
    %cst_35 = arith.constant dense<0.000000e+00> : vector<8xf32>
    %63 = vector.multi_reduction <add>, %62, %cst_35 [1] : vector<8x128xf32> to vector<8xf32>
    %64 = vector.shape_cast %63 : vector<8xf32> to vector<8x1xf32>
    %cst_36 = arith.constant 0.000000e+00 : f32
    %65 = vector.broadcast %cst_36 : f32 to vector<8x1xf32>
    %66 = arith.subf %65, %64 : vector<8x1xf32>
    %67 = arith.select %42, %55, %3 : vector<8x128xi1>, vector<8x128xf32>
    %c5_i32 = arith.constant 5 : i32
    %68 = vector.broadcast %c5_i32 : i32 to vector<8x128xi32>
    %69 = arith.cmpi eq, %2, %68 : vector<8x128xi32>
    %70 = vector.shape_cast %66 : vector<8x1xf32> to vector<8x1xf32>
    %71 = vector.broadcast %70 : vector<8x1xf32> to vector<8x128xf32>
    %72 = arith.select %69, %71, %67 : vector<8x128xi1>, vector<8x128xf32>
    %c0_37 = arith.constant 0 : index
    %c0_38 = arith.constant 0 : index
    %73 = vector.load %arg12[%c0_37, %c0_38] : memref<8x128xf32, #tpu.memory_space<vmem>>, vector<8x128xf32>
    tpu.vector_store %arg12[%c0_37, %c0_38], %72 {strides = array<i32>} : memref<8x128xf32, #tpu.memory_space<vmem>>, vector<8x128xf32>,
    return
  }
  func.func @transform_0(%arg0: i32) -> (i32, i32) {
    %c0_i32 = arith.constant 0 : i32
    %c0_i32_0 = arith.constant 0 : i32
    return %arg0, %c0_i32 : i32, i32
  }
  func.func @transform_1(%arg0: i32) -> (i32, i32) {
    %c0_i32 = arith.constant 0 : i32
    %c0_i32_0 = arith.constant 0 : i32
    %c0_i32_1 = arith.constant 0 : i32
    return %c0_i32, %c0_i32_0 : i32, i32
  }
  func.func @transform_2(%arg0: i32) -> (i32, i32) {
    %c0_i32 = arith.constant 0 : i32
    %c0_i32_0 = arith.constant 0 : i32
    %c0_i32_1 = arith.constant 0 : i32
    return %c0_i32, %c0_i32_0 : i32, i32
  }
  func.func @transform_3(%arg0: i32) -> (i32, i32) {
    %c0_i32 = arith.constant 0 : i32
    %c0_i32_0 = arith.constant 0 : i32
    %c0_i32_1 = arith.constant 0 : i32
    return %c0_i32, %c0_i32_0 : i32, i32
  }
  func.func @transform_4(%arg0: i32) -> (i32, i32) {
    %c0_i32 = arith.constant 0 : i32
    %c0_i32_0 = arith.constant 0 : i32
    %c0_i32_1 = arith.constant 0 : i32
    return %c0_i32, %c0_i32_0 : i32, i32
  }
  func.func @transform_5(%arg0: i32) -> (i32, i32) {
    %c0_i32 = arith.constant 0 : i32
    %c0_i32_0 = arith.constant 0 : i32
    %c0_i32_1 = arith.constant 0 : i32
    return %c0_i32, %c0_i32_0 : i32, i32
  }
  func.func @transform_6(%arg0: i32) -> (i32, i32) {
    %c0_i32 = arith.constant 0 : i32
    %c0_i32_0 = arith.constant 0 : i32
    %c0_i32_1 = arith.constant 0 : i32
    return %c0_i32, %c0_i32_0 : i32, i32
  }
  func.func @transform_7(%arg0: i32) -> (i32, i32) {
    %c0_i32 = arith.constant 0 : i32
    %c0_i32_0 = arith.constant 0 : i32
    %c0_i32_1 = arith.constant 0 : i32
    return %c0_i32, %c0_i32_0 : i32, i32
  }
  func.func @transform_8(%arg0: i32) -> (i32, i32) {
    %c0_i32 = arith.constant 0 : i32
    %c0_i32_0 = arith.constant 0 : i32
    %c0_i32_1 = arith.constant 0 : i32
    return %c0_i32, %c0_i32_0 : i32, i32
  }
  func.func @transform_9(%arg0: i32) -> (i32, i32) {
    %c0_i32 = arith.constant 0 : i32
    %c0_i32_0 = arith.constant 0 : i32
    %c0_i32_1 = arith.constant 0 : i32
    return %c0_i32, %c0_i32_0 : i32, i32
  }
  func.func @transform_10(%arg0: i32) -> (i32, i32) {
    %c0_i32 = arith.constant 0 : i32
    %c0_i32_0 = arith.constant 0 : i32
    %c0_i32_1 = arith.constant 0 : i32
    return %c0_i32, %c0_i32_0 : i32, i32
  }
  func.func @transform_11(%arg0: i32) -> (i32, i32) {
    %c0_i32 = arith.constant 0 : i32
    %c0_i32_0 = arith.constant 0 : i32
    return %arg0, %c0_i32 : i32, i32
  }
}

</mosaic_0001>

<llo_original>
// kernel: _forward_slab.1
$region0: #{_forward_slab.1}
  #allocation0 [shape = 'u32[]', space=smem, size = 0x4, offset = 0x4, fixed_abs, tag = 'smem constant byte address 0x4 - core index']
  #allocation1 [shape = 'u32[144,128]{1,0:T(1,128)}', space=vmem, size = 0x12000, scoped, tag = 'internal scratch']
  %s0 = inlined_call_operand.vmem [shape: f32[8,128], index: 0, kind: input, shape index: {}]
  %s1 = inlined_call_operand.hbm [shape: bf16[128,128], index: 1, kind: input, shape index: {}]
  %s2 = inlined_call_operand.hbm [shape: f32[1,128], index: 2, kind: input, shape index: {}]
  %s3 = inlined_call_operand.hbm [shape: bf16[128,896], index: 3, kind: input, shape index: {}]
  %s4 = inlined_call_operand.hbm [shape: f32[1,896], index: 4, kind: input, shape index: {}]
  %s5 = inlined_call_operand.hbm [shape: bf16[896,896], index: 5, kind: input, shape index: {}]
  %s6 = inlined_call_operand.hbm [shape: f32[1,896], index: 6, kind: input, shape index: {}]
  %s7 = inlined_call_operand.hbm [shape: bf16[896,128], index: 7, kind: input, shape index: {}]
  %s8 = inlined_call_operand.hbm [shape: f32[1,128], index: 8, kind: input, shape index: {}]
  %s9 = inlined_call_operand.hbm [shape: bf16[128,128], index: 9, kind: input, shape index: {}]
  %s10 = inlined_call_operand.hbm [shape: f32[1,128], index: 10, kind: input, shape index: {}]
  %s11 = inlined_call_operand.hbm [shape: f32[8,128], index: 11, kind: output, shape index: {}]
  %s12 = sld [smem:[#allocation0]]
  $region94: #{_forward_slab.1} parent=0
    _
  %s14 = ssub.s32 1, %s12
  %s15 = scalar_select 0, %s14, %s12
  $region1: #{_forward_slab.1} parent=0
    #allocation2 [shape = 'u8[32768]{0}', space=vmem, size = 0x8000, scoped, tag = 'input window, operand 1, single buffered']
    #allocation3 [shape = 's32[1]{0}', space=sflag, size = 0x4, scoped, tag = 'scoped memory for _forward_slab.1']
    #allocation4 [shape = 's32[1]{0}', space=sflag, size = 0x4, scoped, tag = 'scoped memory for _forward_slab.1']
    #allocation5 [shape = 'u8[512]{0}', space=vmem, size = 0x400, scoped, tag = 'input window, operand 2, single buffered']
    #allocation6 [shape = 's32[1]{0}', space=sflag, size = 0x4, scoped, tag = 'scoped memory for _forward_slab.1']
    #allocation7 [shape = 'u8[229376]{0}', space=vmem, size = 0x38000, scoped, tag = 'input window, operand 3, single buffered']
    #allocation8 [shape = 'u8[3584]{0}', space=vmem, size = 0x1000, scoped, tag = 'input window, operand 4, single buffered']
    #allocation9 [shape = 's32[1]{0}', space=sflag, size = 0x4, scoped, tag = 'scoped memory for _forward_slab.1']
    #allocation10 [shape = 'u8[1605632]{0}', space=vmem, size = 0x188000, scoped, tag = 'input window, operand 5, single buffered']
    #allocation11 [shape = 'u8[3584]{0}', space=vmem, size = 0x1000, scoped, tag = 'input window, operand 6, single buffered']
    #allocation12 [shape = 's32[1]{0}', space=sflag, size = 0x4, scoped, tag = 'scoped memory for _forward_slab.1']
    #allocation13 [shape = 'u8[229376]{0}', space=vmem, size = 0x38000, scoped, tag = 'input window, operand 7, single buffered']
    #allocation14 [shape = 'u8[512]{0}', space=vmem, size = 0x400, scoped, tag = 'input window, operand 8, single buffered']
    #allocation15 [shape = 's32[1]{0}', space=sflag, size = 0x4, scoped, tag = 'scoped memory for _forward_slab.1']
    #allocation16 [shape = 'u8[32768]{0}', space=vmem, size = 0x8000, scoped, tag = 'input window, operand 9, single buffered']
    #allocation17 [shape = 'u8[512]{0}', space=vmem, size = 0x400, scoped, tag = 'input window, operand 10, single buffered']
    #allocation18 [shape = 's32[1]{0}', space=sflag, size = 0x4, scoped, tag = 'scoped memory for _forward_slab.1']
    #allocation19 [shape = 'u8[4096]{0}', space=vmem, size = 0x1000, scoped, tag = 'output window, operand 0, single buffered']
    %16 = vsyncpa [#allocation3], 0
    %17 = vsyncpa [#allocation6], 0
    %18 = vsyncpa [#allocation9], 0
    %19 = vsyncpa [#allocation12], 0
    %20 = vsyncpa [#allocation15], 0
    %21 = vsyncpa [#allocation18], 0
    %22 = vsyncpa [#allocation4], 0
    // Predicated region
    $region2: #{_forward_slab.1} parent=1 // pred_check
      _
    $region3: #{_forward_slab.1} parent=1 // pred_check_branch
      %24 = sbr.rel (0) target = $region5
    $region4: #{_forward_slab.1} parent=1 // pred_region
      _
    $region5: #{_forward_slab.1} parent=1 // pred_fallthru
      _
    // Predicated region
    $region6: #{_forward_slab.1} parent=1 // pred_check
      _
    $region7: #{_forward_slab.1} parent=1 // pred_check_branch
      %26 = sbr.rel (0) target = $region9
    $region8: #{_forward_slab.1} parent=1 // pred_region
      %s28 = ssub.s32 1024, 1024
      %29 = vsyncadd [#allocation3], %s28
      %s30 = sshll.u32 [#allocation2], 4
      %s31 = int_to_ptr.vmem [resolvable:$true] %s30
      %36 = dma.hbm_to_vmem [thread:$0]  %s1, 1024, %s31, [#allocation3], 64, 64, 4
    $region9: #{_forward_slab.1} parent=1 // pred_fallthru
      _
    // Predicated region
    $region10: #{_forward_slab.1} parent=1 // pred_check
      _
    $region11: #{_forward_slab.1} parent=1 // pred_check_branch
      %38 = sbr.rel (0) target = $region13
    $region12: #{_forward_slab.1} parent=1 // pred_region
      %s40 = ssub.s32 16, 16
      %41 = vsyncadd [#allocation6], %s40
      %s43 = sshll.u32 [#allocation5], 4
      %s44 = int_to_ptr.vmem [resolvable:$true] %s43
      %46 = dma.hbm_to_vmem [thread:$0]  %s2, 16, %s44, [#allocation6]
    $region13: #{_forward_slab.1} parent=1 // pred_fallthru
      _
    // Predicated region
    $region14: #{_forward_slab.1} parent=1 // pred_check
      _
    $region15: #{_forward_slab.1} parent=1 // pred_check_branch
      %48 = sbr.rel (0) target = $region17
    $region16: #{_forward_slab.1} parent=1 // pred_region
      %s50 = ssub.s32 7168, 7168
      %51 = vsyncadd [#allocation6], %s50
      %s52 = sshll.u32 [#allocation7], 4
      %s53 = int_to_ptr.vmem [resolvable:$true] %s52
      %58 = dma.hbm_to_vmem [thread:$0]  %s3, 7168, %s53, [#allocation6], 448, 448, 28
    $region17: #{_forward_slab.1} parent=1 // pred_fallthru
      _
    // Predicated region
    $region18: #{_forward_slab.1} parent=1 // pred_check
      _
    $region19: #{_forward_slab.1} parent=1 // pred_check_branch
      %60 = sbr.rel (0) target = $region21
    $region20: #{_forward_slab.1} parent=1 // pred_region
      %s62 = ssub.s32 112, 112
      %63 = vsyncadd [#allocation9], %s62
      %s65 = sshll.u32 [#allocation8], 4
      %s66 = int_to_ptr.vmem [resolvable:$true] %s65
      %68 = dma.hbm_to_vmem [thread:$0]  %s4, 112, %s66, [#allocation9]
    $region21: #{_forward_slab.1} parent=1 // pred_fallthru
      _
    // Predicated region
    $region22: #{_forward_slab.1} parent=1 // pred_check
      _
    $region23: #{_forward_slab.1} parent=1 // pred_check_branch
      %70 = sbr.rel (0) target = $region25
    $region24: #{_forward_slab.1} parent=1 // pred_region
      %s72 = ssub.s32 50176, 50176
      %73 = vsyncadd [#allocation9], %s72
      %s74 = sshll.u32 [#allocation10], 4
      %s75 = int_to_ptr.vmem [resolvable:$true] %s74
      %80 = dma.hbm_to_vmem [thread:$0]  %s5, 50176, %s75, [#allocation9], 448, 448, 28
    $region25: #{_forward_slab.1} parent=1 // pred_fallthru
      _
    // Predicated region
    $region26: #{_forward_slab.1} parent=1 // pred_check
      _
    $region27: #{_forward_slab.1} parent=1 // pred_check_branch
      %82 = sbr.rel (0) target = $region29
    $region28: #{_forward_slab.1} parent=1 // pred_region
      %s84 = ssub.s32 112, 112
      %85 = vsyncadd [#allocation12], %s84
      %s87 = sshll.u32 [#allocation11], 4
      %s88 = int_to_ptr.vmem [resolvable:$true] %s87
      %90 = dma.hbm_to_vmem [thread:$0]  %s6, 112, %s88, [#allocation12]
    $region29: #{_forward_slab.1} parent=1 // pred_fallthru
      _
    // Predicated region
    $region30: #{_forward_slab.1} parent=1 // pred_check
      _
    $region31: #{_forward_slab.1} parent=1 // pred_check_branch
      %92 = sbr.rel (0) target = $region33
    $region32: #{_forward_slab.1} parent=1 // pred_region
      %s94 = ssub.s32 7168, 7168
      %95 = vsyncadd [#allocation12], %s94
      %s96 = sshll.u32 [#allocation13], 4
      %s97 = int_to_ptr.vmem [resolvable:$true] %s96
      %102 = dma.hbm_to_vmem [thread:$0]  %s7, 7168, %s97, [#allocation12], 64, 64, 4
    $region33: #{_forward_slab.1} parent=1 // pred_fallthru
      _
    // Predicated region
    $region34: #{_forward_slab.1} parent=1 // pred_check
      _
    $region35: #{_forward_slab.1} parent=1 // pred_check_branch
      %104 = sbr.rel (0) target = $region37
    $region36: #{_forward_slab.1} parent=1 // pred_region
      %s106 = ssub.s32 16, 16
      %107 = vsyncadd [#allocation15], %s106
      %s109 = sshll.u32 [#allocation14], 4
      %s110 = int_to_ptr.vmem [resolvable:$true] %s109
      %112 = dma.hbm_to_vmem [thread:$0]  %s8, 16, %s110, [#allocation15]
    $region37: #{_forward_slab.1} parent=1 // pred_fallthru
      _
    // Predicated region
    $region38: #{_forward_slab.1} parent=1 // pred_check
      _
    $region39: #{_forward_slab.1} parent=1 // pred_check_branch
      %114 = sbr.rel (0) target = $region41
    $region40: #{_forward_slab.1} parent=1 // pred_region
      %s116 = ssub.s32 1024, 1024
      %117 = vsyncadd [#allocation15], %s116
      %s118 = sshll.u32 [#allocation16], 4
      %s119 = int_to_ptr.vmem [resolvable:$true] %s118
      %124 = dma.hbm_to_vmem [thread:$0]  %s9, 1024, %s119, [#allocation15], 64, 64, 4
    $region41: #{_forward_slab.1} parent=1 // pred_fallthru
      _
    // Predicated region
    $region42: #{_forward_slab.1} parent=1 // pred_check
      _
    $region43: #{_forward_slab.1} parent=1 // pred_check_branch
      %126 = sbr.rel (0) target = $region45
    $region44: #{_forward_slab.1} parent=1 // pred_region
      %s128 = ssub.s32 16, 16
      %129 = vsyncadd [#allocation18], %s128
      %s131 = sshll.u32 [#allocation17], 4
      %s132 = int_to_ptr.vmem [resolvable:$true] %s131
      %134 = dma.hbm_to_vmem [thread:$0]  %s10, 16, %s132, [#allocation18]
    $region45: #{_forward_slab.1} parent=1 // pred_fallthru
      _
    // Predicated region
    $region46: #{_forward_slab.1} parent=1 // pred_check
      _
    $region47: #{_forward_slab.1} parent=1 // pred_check_branch
      %136 = sbr.rel (0) target = $region49
    $region48: #{_forward_slab.1} parent=1 // pred_region
      %137 = dma.done [#allocation3], 1024
    $region49: #{_forward_slab.1} parent=1 // pred_fallthru
      _
    // Predicated region
    $region50: #{_forward_slab.1} parent=1 // pred_check
      _
    $region51: #{_forward_slab.1} parent=1 // pred_check_branch
      %139 = sbr.rel (0) target = $region53
    $region52: #{_forward_slab.1} parent=1 // pred_region
      %140 = dma.done [#allocation6], 16
    $region53: #{_forward_slab.1} parent=1 // pred_fallthru
      _
    // Predicated region
    $region54: #{_forward_slab.1} parent=1 // pred_check
      _
    $region55: #{_forward_slab.1} parent=1 // pred_check_branch
      %142 = sbr.rel (0) target = $region57
    $region56: #{_forward_slab.1} parent=1 // pred_region
      %143 = dma.done [#allocation6], 7168
    $region57: #{_forward_slab.1} parent=1 // pred_fallthru
      _
    // Predicated region
    $region58: #{_forward_slab.1} parent=1 // pred_check
      _
    $region59: #{_forward_slab.1} parent=1 // pred_check_branch
      %145 = sbr.rel (0) target = $region61
    $region60: #{_forward_slab.1} parent=1 // pred_region
      %146 = dma.done [#allocation9], 112
    $region61: #{_forward_slab.1} parent=1 // pred_fallthru
      _
    // Predicated region
    $region62: #{_forward_slab.1} parent=1 // pred_check
      _
    $region63: #{_forward_slab.1} parent=1 // pred_check_branch
      %148 = sbr.rel (0) target = $region65
    $region64: #{_forward_slab.1} parent=1 // pred_region
      %149 = dma.done [#allocation9], 50176
    $region65: #{_forward_slab.1} parent=1 // pred_fallthru
      _
    // Predicated region
    $region66: #{_forward_slab.1} parent=1 // pred_check
      _
    $region67: #{_forward_slab.1} parent=1 // pred_check_branch
      %151 = sbr.rel (0) target = $region69
    $region68: #{_forward_slab.1} parent=1 // pred_region
      %152 = dma.done [#allocation12], 112
    $region69: #{_forward_slab.1} parent=1 // pred_fallthru
      _
    // Predicated region
    $region70: #{_forward_slab.1} parent=1 // pred_check
      _
    $region71: #{_forward_slab.1} parent=1 // pred_check_branch
      %154 = sbr.rel (0) target = $region73
    $region72: #{_forward_slab.1} parent=1 // pred_region
      %155 = dma.done [#allocation12], 7168
    $region73: #{_forward_slab.1} parent=1 // pred_fallthru
      _
    // Predicated region
    $region74: #{_forward_slab.1} parent=1 // pred_check
      _
    $region75: #{_forward_slab.1} parent=1 // pred_check_branch
      %157 = sbr.rel (0) target = $region77
    $region76: #{_forward_slab.1} parent=1 // pred_region
      %158 = dma.done [#allocation15], 16
    $region77: #{_forward_slab.1} parent=1 // pred_fallthru
      _
    // Predicated region
    $region78: #{_forward_slab.1} parent=1 // pred_check
      _
    $region79: #{_forward_slab.1} parent=1 // pred_check_branch
      %160 = sbr.rel (0) target = $region81
    $region80: #{_forward_slab.1} parent=1 // pred_region
      %161 = dma.done [#allocation15], 1024
    $region81: #{_forward_slab.1} parent=1 // pred_fallthru
      _
    // Predicated region
    $region82: #{_forward_slab.1} parent=1 // pred_check
      _
    $region83: #{_forward_slab.1} parent=1 // pred_check_branch
      %163 = sbr.rel (0) target = $region85
    $region84: #{_forward_slab.1} parent=1 // pred_region
      %164 = dma.done [#allocation18], 16
    $region85: #{_forward_slab.1} parent=1 // pred_fallthru
      _
    %v166 = vld [vmem:[%s0] sm:$0xff]
    %v167 = vpack.c.bf16 %v166, %v166
    %v168 = vlaneseq
    %v169 = vand.u32 %v168, 127
    %v170 = vld [vmem:[#allocation2] sm:$0xf]
    %v171 = vld [vmem:[#allocation2 + $0x4] sm:$0xf]
    %v172 = vld [vmem:[#allocation2 + $0x8] sm:$0xf]
    %v173 = vld [vmem:[#allocation2 + $0xc] sm:$0xf]
    %v174 = vld [vmem:[#allocation2 + $0x10] sm:$0xf]
    %v175 = vld [vmem:[#allocation2 + $0x14] sm:$0xf]
    %v176 = vld [vmem:[#allocation2 + $0x18] sm:$0xf]
    %v177 = vld [vmem:[#allocation2 + $0x1c] sm:$0xf]
    %v178 = vld [vmem:[#allocation2 + $0x20] sm:$0xf]
    %v179 = vld [vmem:[#allocation2 + $0x24] sm:$0xf]
    %v180 = vld [vmem:[#allocation2 + $0x28] sm:$0xf]
    %v181 = vld [vmem:[#allocation2 + $0x2c] sm:$0xf]
    %v182 = vld [vmem:[#allocation2 + $0x30] sm:$0xf]
    %v183 = vld [vmem:[#allocation2 + $0x34] sm:$0xf]
    %v184 = vld [vmem:[#allocation2 + $0x38] sm:$0xf]
    %v185 = vld [vmem:[#allocation2 + $0x3c] sm:$0xf]
    %v186 = vld [vmem:[#allocation5] sm:$0x1]
    %v188 = vlaneseq
    %v189 = vshrl.u32 %v188, 7
    %v190 = vsub.s32 0, %v189
    %v191 = vrot.slane %v186, %v190
    %v209 = vunpack.c.l.b16 %v170
    %v210 = vunpack.c.l.b16 %v171
    %v211 = vunpack.c.l.b16 %v172
    %v212 = vunpack.c.l.b16 %v173
    %v213 = vunpack.c.l.b16 %v174
    %v214 = vunpack.c.l.b16 %v175
    %v215 = vunpack.c.l.b16 %v176
    %v216 = vunpack.c.l.b16 %v177
    %v217 = vunpack.c.l.b16 %v178
    %v218 = vunpack.c.l.b16 %v179
    %v219 = vunpack.c.l.b16 %v180
    %v220 = vunpack.c.l.b16 %v181
    %v221 = vunpack.c.l.b16 %v182
    %v222 = vunpack.c.l.b16 %v183
    %v223 = vunpack.c.l.b16 %v184
    %v224 = vunpack.c.l.b16 %v185
    %v225 = vpack.c.b16 %v210, %v209
    %v226 = vpack.c.b16 %v212, %v211
    %v227 = vpack.c.b16 %v214, %v213
    %v228 = vpack.c.b16 %v216, %v215
    %v229 = vpack.c.b16 %v218, %v217
    %v230 = vpack.c.b16 %v220, %v219
    %v231 = vpack.c.b16 %v222, %v221
    %v232 = vpack.c.b16 %v224, %v223
    %241 = vmatprep.subr.bf16.mxu0 0
    %242 = vmatpush1.bf16.msra.mxu0 %v225
    %243 = vmatprep.subr.bf16.mxu0 0
    %244 = vmatpush1.bf16.msra.mxu0 %v226
    %245 = vmatprep.subr.bf16.mxu0 0
    %246 = vmatpush1.bf16.msra.mxu0 %v227
    %247 = vmatprep.subr.bf16.mxu0 0
    %248 = vmatpush1.bf16.msra.mxu0 %v228
    %249 = vmatprep.subr.bf16.mxu0 0
    %250 = vmatpush1.bf16.msra.mxu0 %v229
    %251 = vmatprep.subr.bf16.mxu0 0
    %252 = vmatpush1.bf16.msra.mxu0 %v230
    %253 = vmatprep.subr.bf16.mxu0 0
    %254 = vmatpush1.bf16.msra.mxu0 %v231
    %255 = vmatprep.subr.bf16.mxu0 0
    %256 = vmatpush1.bf16.msra.mxu0 %v232
    %257 = vmatprep.subr.bf16.mxu0 0
    %258 = vmatpush1.bf16.msra.mxu0 0
    %259 = vmatprep.subr.bf16.mxu0 0
    %260 = vmatpush1.bf16.msra.mxu0 0
    %261 = vmatprep.subr.bf16.mxu0 0
    %262 = vmatpush1.bf16.msra.mxu0 0
    %263 = vmatprep.subr.bf16.mxu0 0
    %264 = vmatpush1.bf16.msra.mxu0 0
    %265 = vmatprep.subr.bf16.mxu0 0
    %266 = vmatpush1.bf16.msra.mxu0 0
    %267 = vmatprep.subr.bf16.mxu0 0
    %268 = vmatpush1.bf16.msra.mxu0 0
    %269 = vmatprep.subr.bf16.mxu0 0
    %270 = vmatpush1.bf16.msra.mxu0 0
    %271 = vmatprep.subr.bf16.mxu0 0
    %272 = vmatpush1.bf16.msra.mxu0 0
    %273 = vmatprep.mubr.bf16.mxu0 0
    %274 = vmatmul.mubr.bf16.gmra.mrb[0].mxu0 %v167
    %v275 = vpop.f32.mrb[0].mxu0
    %v276 = vadd.f32 %v191, %v275
    %v277 = vpop.f32.mrb[0].mxu0
    %v278 = vpop.f32.mrb[0].mxu0
    %v279 = vpop.f32.mrb[0].mxu0
    %280 = vdwg.mxu0
    %v281 = vmax.f32 %v276, 0.0
    %v282 = vpack.c.bf16 %v281, %v281
    %v283 = vld [vmem:[#allocation7] sm:$0xff]
    %v284 = vld [vmem:[#allocation7 + $0x8] sm:$0xff]
    %v285 = vld [vmem:[#allocation7 + $0x10] sm:$0xff]
    %v286 = vld [vmem:[#allocation7 + $0x18] sm:$0xf]
    %v287 = vld [vmem:[#allocation7 + $0x1c] sm:$0xff]
    %v288 = vld [vmem:[#allocation7 + $0x24] sm:$0xff]
    %v289 = vld [vmem:[#allocation7 + $0x2c] sm:$0xff]
    %v290 = vld [vmem:[#allocation7 + $0x34] sm:$0xf]
    %v291 = vld [vmem:[#allocation7 + $0x38] sm:$0xff]
    %v292 = vld [vmem:[#allocation7 + $0x40] sm:$0xff]
    %v293 = vld [vmem:[#allocation7 + $0x48] sm:$0xff]
    %v294 = vld [vmem:[#allocation7 + $0x50] sm:$0xf]
    %v295 = vld [vmem:[#allocation7 + $0x54] sm:$0xff]
    %v296 = vld [vmem:[#allocation7 + $0x5c] sm:$0xff]
    %v297 = vld [vmem:[#allocation7 + $0x64] sm:$0xff]
    %v298 = vld [vmem:[#allocation7 + $0x6c] sm:$0xf]
    %v299 = vld [vmem:[#allocation7 + $0x70] sm:$0xff]
    %v300 = vld [vmem:[#allocation7 + $0x78] sm:$0xff]
    %v301 = vld [vmem:[#allocation7 + $0x80] sm:$0xff]
    %v302 = vld [vmem:[#allocation7 + $0x88] sm:$0xf]
    %v303 = vld [vmem:[#allocation7 + $0x8c] sm:$0xff]
    %v304 = vld [vmem:[#allocation7 + $0x94] sm:$0xff]
    %v305 = vld [vmem:[#allocation7 + $0x9c] sm:$0xff]
    %v306 = vld [vmem:[#allocation7 + $0xa4] sm:$0xf]
    %v307 = vld [vmem:[#allocation7 + $0xa8] sm:$0xff]
    %v308 = vld [vmem:[#allocation7 + $0xb0] sm:$0xff]
    %v309 = vld [vmem:[#allocation7 + $0xb8] sm:$0xff]
    %v310 = vld [vmem:[#allocation7 + $0xc0] sm:$0xf]
    %v311 = vld [vmem:[#allocation7 + $0xc4] sm:$0xff]
    %v312 = vld [vmem:[#allocation7 + $0xcc] sm:$0xff]
    %v313 = vld [vmem:[#allocation7 + $0xd4] sm:$0xff]
    %v314 = vld [vmem:[#allocation7 + $0xdc] sm:$0xf]
    %v315 = vld [vmem:[#allocation7 + $0xe0] sm:$0xff]
    %v316 = vld [vmem:[#allocation7 + $0xe8] sm:$0xff]
    %v317 = vld [vmem:[#allocation7 + $0xf0] sm:$0xff]
    %v318 = vld [vmem:[#allocation7 + $0xf8] sm:$0xf]
    %v319 = vld [vmem:[#allocation7 + $0xfc] sm:$0xff]
    %v320 = vld [vmem:[#allocation7 + $0x104] sm:$0xff]
    %v321 = vld [vmem:[#allocation7 + $0x10c] sm:$0xff]
    %v322 = vld [vmem:[#allocation7 + $0x114] sm:$0xf]
    %v323 = vld [vmem:[#allocation7 + $0x118] sm:$0xff]
    %v324 = vld [vmem:[#allocation7 + $0x120] sm:$0xff]
    %v325 = vld [vmem:[#allocation7 + $0x128] sm:$0xff]
    %v326 = vld [vmem:[#allocation7 + $0x130] sm:$0xf]
    %v327 = vld [vmem:[#allocation7 + $0x134] sm:$0xff]
    %v328 = vld [vmem:[#allocation7 + $0x13c] sm:$0xff]
    %v329 = vld [vmem:[#allocation7 + $0x144] sm:$0xff]
    %v330 = vld [vmem:[#allocation7 + $0x14c] sm:$0xf]
    %v331 = vld [vmem:[#allocation7 + $0x150] sm:$0xff]
    %v332 = vld [vmem:[#allocation7 + $0x158] sm:$0xff]
    %v333 = vld [vmem:[#allocation7 + $0x160] sm:$0xff]
    %v334 = vld [vmem:[#allocation7 + $0x168] sm:$0xf]
    %v335 = vld [vmem:[#allocation7 + $0x16c] sm:$0xff]
    %v336 = vld [vmem:[#allocation7 + $0x174] sm:$0xff]
    %v337 = vld [vmem:[#allocation7 + $0x17c] sm:$0xff]
    %v338 = vld [vmem:[#allocation7 + $0x184] sm:$0xf]
    %v339 = vld [vmem:[#allocation7 + $0x188] sm:$0xff]
    %v340 = vld [vmem:[#allocation7 + $0x190] sm:$0xff]
    %v341 = vld [vmem:[#allocation7 + $0x198] sm:$0xff]
    %v342 = vld [vmem:[#allocation7 + $0x1a0] sm:$0xf]
    %v343 = vld [vmem:[#allocation7 + $0x1a4] sm:$0xff]
    %v344 = vld [vmem:[#allocation7 + $0x1ac] sm:$0xff]
    %v345 = vld [vmem:[#allocation7 + $0x1b4] sm:$0xff]
    %v346 = vld [vmem:[#allocation7 + $0x1bc] sm:$0xf]
    %v347 = vld [vmem:[#allocation8] sm:$0xff]
    %v349 = vlaneseq
    %v350 = vshrl.u32 %v349, 7
    %v351 = vsub.s32 0, %v350
    %v352 = vrot.slane %v347, %v351
    %v353 = vlaneseq
    %v354 = vshrl.u32 %v353, 7
    %v355 = vsub.s32 1, %v354
    %v356 = vrot.slane %v347, %v355
    %v357 = vlaneseq
    %v358 = vshrl.u32 %v357, 7
    %v359 = vsub.s32 2, %v358
    %v360 = vrot.slane %v347, %v359
    %v361 = vlaneseq
    %v362 = vshrl.u32 %v361, 7
    %v363 = vsub.s32 3, %v362
    %v364 = vrot.slane %v347, %v363
    %v365 = vlaneseq
    %v366 = vshrl.u32 %v365, 7
    %v367 = vsub.s32 4, %v366
    %v368 = vrot.slane %v347, %v367
    %v369 = vlaneseq
    %v370 = vshrl.u32 %v369, 7
    %v371 = vsub.s32 5, %v370
    %v372 = vrot.slane %v347, %v371
    %v373 = vlaneseq
    %v374 = vshrl.u32 %v373, 7
    %v375 = vsub.s32 6, %v374
    %v376 = vrot.slane %v347, %v375
    %v448 = vunpack.c.l.b16 %v283
    %v449 = vunpack.c.h.b16 %v283
    %v450 = vunpack.c.l.b16 %v284
    %v451 = vunpack.c.h.b16 %v284
    %v452 = vunpack.c.l.b16 %v285
    %v453 = vunpack.c.h.b16 %v285
    %v454 = vunpack.c.l.b16 %v286
    %v455 = vunpack.c.l.b16 %v287
    %v456 = vunpack.c.h.b16 %v287
    %v457 = vunpack.c.l.b16 %v288
    %v458 = vunpack.c.h.b16 %v288
    %v459 = vunpack.c.l.b16 %v289
    %v460 = vunpack.c.h.b16 %v289
    %v461 = vunpack.c.l.b16 %v290
    %v462 = vunpack.c.l.b16 %v291
    %v463 = vunpack.c.h.b16 %v291
    %v464 = vunpack.c.l.b16 %v292
    %v465 = vunpack.c.h.b16 %v292
    %v466 = vunpack.c.l.b16 %v293
    %v467 = vunpack.c.h.b16 %v293
    %v468 = vunpack.c.l.b16 %v294
    %v469 = vunpack.c.l.b16 %v295
    %v470 = vunpack.c.h.b16 %v295
    %v471 = vunpack.c.l.b16 %v296
    %v472 = vunpack.c.h.b16 %v296
    %v473 = vunpack.c.l.b16 %v297
    %v474 = vunpack.c.h.b16 %v297
    %v475 = vunpack.c.l.b16 %v298
    %v476 = vunpack.c.l.b16 %v299
    %v477 = vunpack.c.h.b16 %v299
    %v478 = vunpack.c.l.b16 %v300
    %v479 = vunpack.c.h.b16 %v300
    %v480 = vunpack.c.l.b16 %v301
    %v481 = vunpack.c.h.b16 %v301
    %v482 = vunpack.c.l.b16 %v302
    %v483 = vunpack.c.l.b16 %v303
    %v484 = vunpack.c.h.b16 %v303
    %v485 = vunpack.c.l.b16 %v304
    %v486 = vunpack.c.h.b16 %v304
    %v487 = vunpack.c.l.b16 %v305
    %v488 = vunpack.c.h.b16 %v305
    %v489 = vunpack.c.l.b16 %v306
    %v490 = vunpack.c.l.b16 %v307
    %v491 = vunpack.c.h.b16 %v307
    %v492 = vunpack.c.l.b16 %v308
    %v493 = vunpack.c.h.b16 %v308
    %v494 = vunpack.c.l.b16 %v309
    %v495 = vunpack.c.h.b16 %v309
    %v496 = vunpack.c.l.b16 %v310
    %v497 = vunpack.c.l.b16 %v311
    %v498 = vunpack.c.h.b16 %v311
    %v499 = vunpack.c.l.b16 %v312
    %v500 = vunpack.c.h.b16 %v312
    %v501 = vunpack.c.l.b16 %v313
    %v502 = vunpack.c.h.b16 %v313
    %v503 = vunpack.c.l.b16 %v314
    %v504 = vunpack.c.l.b16 %v315
    %v505 = vunpack.c.h.b16 %v315
    %v506 = vunpack.c.l.b16 %v316
    %v507 = vunpack.c.h.b16 %v316
    %v508 = vunpack.c.l.b16 %v317
    %v509 = vunpack.c.h.b16 %v317
    %v510 = vunpack.c.l.b16 %v318
    %v511 = vunpack.c.l.b16 %v319
    %v512 = vunpack.c.h.b16 %v319
    %v513 = vunpack.c.l.b16 %v320
    %v514 = vunpack.c.h.b16 %v320
    %v515 = vunpack.c.l.b16 %v321
    %v516 = vunpack.c.h.b16 %v321
    %v517 = vunpack.c.l.b16 %v322
    %v518 = vunpack.c.l.b16 %v323
    %v519 = vunpack.c.h.b16 %v323
    %v520 = vunpack.c.l.b16 %v324
    %v521 = vunpack.c.h.b16 %v324
    %v522 = vunpack.c.l.b16 %v325
    %v523 = vunpack.c.h.b16 %v325
    %v524 = vunpack.c.l.b16 %v326
    %v525 = vunpack.c.l.b16 %v327
    %v526 = vunpack.c.h.b16 %v327
    %v527 = vunpack.c.l.b16 %v328
    %v528 = vunpack.c.h.b16 %v328
    %v529 = vunpack.c.l.b16 %v329
    %v530 = vunpack.c.h.b16 %v329
    %v531 = vunpack.c.l.b16 %v330
    %v532 = vunpack.c.l.b16 %v331
    %v533 = vunpack.c.h.b16 %v331
    %v534 = vunpack.c.l.b16 %v332
    %v535 = vunpack.c.h.b16 %v332
    %v536 = vunpack.c.l.b16 %v333
    %v537 = vunpack.c.h.b16 %v333
    %v538 = vunpack.c.l.b16 %v334
    %v539 = vunpack.c.l.b16 %v335
    %v540 = vunpack.c.h.b16 %v335
    %v541 = vunpack.c.l.b16 %v336
    %v542 = vunpack.c.h.b16 %v336
    %v543 = vunpack.c.l.b16 %v337
    %v544 = vunpack.c.h.b16 %v337
    %v545 = vunpack.c.l.b16 %v338
    %v546 = vunpack.c.l.b16 %v339
    %v547 = vunpack.c.h.b16 %v339
    %v548 = vunpack.c.l.b16 %v340
    %v549 = vunpack.c.h.b16 %v340
    %v550 = vunpack.c.l.b16 %v341
    %v551 = vunpack.c.h.b16 %v341
    %v552 = vunpack.c.l.b16 %v342
    %v553 = vunpack.c.l.b16 %v343
    %v554 = vunpack.c.h.b16 %v343
    %v555 = vunpack.c.l.b16 %v344
    %v556 = vunpack.c.h.b16 %v344
    %v557 = vunpack.c.l.b16 %v345
    %v558 = vunpack.c.h.b16 %v345
    %v559 = vunpack.c.l.b16 %v346
    %v560 = vpack.c.b16 %v455, %v448
    %v561 = vpack.c.b16 %v456, %v449
    %v562 = vpack.c.b16 %v457, %v450
    %v563 = vpack.c.b16 %v458, %v451
    %v564 = vpack.c.b16 %v459, %v452
    %v565 = vpack.c.b16 %v460, %v453
    %v566 = vpack.c.b16 %v461, %v454
    %v567 = vpack.c.b16 %v469, %v462
    %v568 = vpack.c.b16 %v470, %v463
    %v569 = vpack.c.b16 %v471, %v464
    %v570 = vpack.c.b16 %v472, %v465
    %v571 = vpack.c.b16 %v473, %v466
    %v572 = vpack.c.b16 %v474, %v467
    %v573 = vpack.c.b16 %v475, %v468
    %v574 = vpack.c.b16 %v483, %v476
    %v575 = vpack.c.b16 %v484, %v477
    %v576 = vpack.c.b16 %v485, %v478
    %v577 = vpack.c.b16 %v486, %v479
    %v578 = vpack.c.b16 %v487, %v480
    %v579 = vpack.c.b16 %v488, %v481
    %v580 = vpack.c.b16 %v489, %v482
    %v581 = vpack.c.b16 %v497, %v490
    %v582 = vpack.c.b16 %v498, %v491
    %v583 = vpack.c.b16 %v499, %v492
    %v584 = vpack.c.b16 %v500, %v493
    %v585 = vpack.c.b16 %v501, %v494
    %v586 = vpack.c.b16 %v502, %v495
    %v587 = vpack.c.b16 %v503, %v496
    %v588 = vpack.c.b16 %v511, %v504
    %v589 = vpack.c.b16 %v512, %v505
    %v590 = vpack.c.b16 %v513, %v506
    %v591 = vpack.c.b16 %v514, %v507
    %v592 = vpack.c.b16 %v515, %v508
    %v593 = vpack.c.b16 %v516, %v509
    %v594 = vpack.c.b16 %v517, %v510
    %v595 = vpack.c.b16 %v525, %v518
    %v596 = vpack.c.b16 %v526, %v519
    %v597 = vpack.c.b16 %v527, %v520
    %v598 = vpack.c.b16 %v528, %v521
    %v599 = vpack.c.b16 %v529, %v522
    %v600 = vpack.c.b16 %v530, %v523
    %v601 = vpack.c.b16 %v531, %v524
    %v602 = vpack.c.b16 %v539, %v532
    %v603 = vpack.c.b16 %v540, %v533
    %v604 = vpack.c.b16 %v541, %v534
    %v605 = vpack.c.b16 %v542, %v535
    %v606 = vpack.c.b16 %v543, %v536
    %v607 = vpack.c.b16 %v544, %v537
    %v608 = vpack.c.b16 %v545, %v538
    %v609 = vpack.c.b16 %v553, %v546
    %v610 = vpack.c.b16 %v554, %v547
    %v611 = vpack.c.b16 %v555, %v548
    %v612 = vpack.c.b16 %v556, %v549
    %v613 = vpack.c.b16 %v557, %v550
    %v614 = vpack.c.b16 %v558, %v551
    %v615 = vpack.c.b16 %v559, %v552
    %672 = vmatprep.subr.bf16.mxu0 %v561
    %673 = vmatpush1.bf16.msra.mxu0 %v560
    %674 = vmatprep.subr.bf16.mxu0 %v568
    %675 = vmatpush1.bf16.msra.mxu0 %v567
    %676 = vmatprep.subr.bf16.mxu0 %v575
    %677 = vmatpush1.bf16.msra.mxu0 %v574
    %678 = vmatprep.subr.bf16.mxu0 %v582
    %679 = vmatpush1.bf16.msra.mxu0 %v581
    %680 = vmatprep.subr.bf16.mxu0 %v589
    %681 = vmatpush1.bf16.msra.mxu0 %v588
    %682 = vmatprep.subr.bf16.mxu0 %v596
    %683 = vmatpush1.bf16.msra.mxu0 %v595
    %684 = vmatprep.subr.bf16.mxu0 %v603
    %685 = vmatpush1.bf16.msra.mxu0 %v602
    %686 = vmatprep.subr.bf16.mxu0 %v610
    %687 = vmatpush1.bf16.msra.mxu0 %v609
    %688 = vmatprep.subr.bf16.mxu0 0
    %689 = vmatpush1.bf16.msra.mxu0 0
    %690 = vmatprep.subr.bf16.mxu0 0
    %691 = vmatpush1.bf16.msra.mxu0 0
    %692 = vmatprep.subr.bf16.mxu0 0
    %693 = vmatpush1.bf16.msra.mxu0 0
    %694 = vmatprep.subr.bf16.mxu0 0
    %695 = vmatpush1.bf16.msra.mxu0 0
    %696 = vmatprep.subr.bf16.mxu0 0
    %697 = vmatpush1.bf16.msra.mxu0 0
    %698 = vmatprep.subr.bf16.mxu0 0
    %699 = vmatpush1.bf16.msra.mxu0 0
    %700 = vmatprep.subr.bf16.mxu0 0
    %701 = vmatpush1.bf16.msra.mxu0 0
    %702 = vmatprep.subr.bf16.mxu0 0
    %703 = vmatpush1.bf16.msra.mxu0 0
    %704 = vmatprep.mubr.bf16.mxu0 0
    %705 = vmatmul.mubr.bf16.gmra.mrb[0].mxu0 %v282
    %v706 = vpop.f32.mrb[0].mxu0
    %v707 = vadd.f32 %v352, %v706
    %v708 = vpop.f32.mrb[0].mxu0
    %v709 = vadd.f32 %v356, %v708
    %v710 = vpop.f32.mrb[0].mxu0
    %v711 = vpop.f32.mrb[0].mxu0
    %712 = vdwg.mxu0
    %713 = vmatprep.subr.bf16.mxu0 %v563
    %714 = vmatpush1.bf16.msra.mxu0 %v562
    %715 = vmatprep.subr.bf16.mxu0 %v570
    %716 = vmatpush1.bf16.msra.mxu0 %v569
    %717 = vmatprep.subr.bf16.mxu0 %v577
    %718 = vmatpush1.bf16.msra.mxu0 %v576
    %719 = vmatprep.subr.bf16.mxu0 %v584
    %720 = vmatpush1.bf16.msra.mxu0 %v583
    %721 = vmatprep.subr.bf16.mxu0 %v591
    %722 = vmatpush1.bf16.msra.mxu0 %v590
    %723 = vmatprep.subr.bf16.mxu0 %v598
    %724 = vmatpush1.bf16.msra.mxu0 %v597
    %725 = vmatprep.subr.bf16.mxu0 %v605
    %726 = vmatpush1.bf16.msra.mxu0 %v604
    %727 = vmatprep.subr.bf16.mxu0 %v612
    %728 = vmatpush1.bf16.msra.mxu0 %v611
    %729 = vmatprep.subr.bf16.mxu0 0
    %730 = vmatpush1.bf16.msra.mxu0 0
    %731 = vmatprep.subr.bf16.mxu0 0
    %732 = vmatpush1.bf16.msra.mxu0 0
    %733 = vmatprep.subr.bf16.mxu0 0
    %734 = vmatpush1.bf16.msra.mxu0 0
    %735 = vmatprep.subr.bf16.mxu0 0
    %736 = vmatpush1.bf16.msra.mxu0 0
    %737 = vmatprep.subr.bf16.mxu0 0
    %738 = vmatpush1.bf16.msra.mxu0 0
    %739 = vmatprep.subr.bf16.mxu0 0
    %740 = vmatpush1.bf16.msra.mxu0 0
    %741 = vmatprep.subr.bf16.mxu0 0
    %742 = vmatpush1.bf16.msra.mxu0 0
    %743 = vmatprep.subr.bf16.mxu0 0
    %744 = vmatpush1.bf16.msra.mxu0 0
    %745 = vmatprep.mubr.bf16.mxu0 0
    %746 = vmatmul.mubr.bf16.gmra.mrb[0].mxu0 %v282
    %v747 = vpop.f32.mrb[0].mxu0
    %v748 = vadd.f32 %v360, %v747
    %v749 = vpop.f32.mrb[0].mxu0
    %v750 = vadd.f32 %v364, %v749
    %v751 = vpop.f32.mrb[0].mxu0
    %v752 = vpop.f32.mrb[0].mxu0
    %753 = vdwg.mxu0
    %754 = vmatprep.subr.bf16.mxu0 %v565
    %755 = vmatpush1.bf16.msra.mxu0 %v564
    %756 = vmatprep.subr.bf16.mxu0 %v572
    %757 = vmatpush1.bf16.msra.mxu0 %v571
    %758 = vmatprep.subr.bf16.mxu0 %v579
    %759 = vmatpush1.bf16.msra.mxu0 %v578
    %760 = vmatprep.subr.bf16.mxu0 %v586
    %761 = vmatpush1.bf16.msra.mxu0 %v585
    %762 = vmatprep.subr.bf16.mxu0 %v593
    %763 = vmatpush1.bf16.msra.mxu0 %v592
    %764 = vmatprep.subr.bf16.mxu0 %v600
    %765 = vmatpush1.bf16.msra.mxu0 %v599
    %766 = vmatprep.subr.bf16.mxu0 %v607
    %767 = vmatpush1.bf16.msra.mxu0 %v606
    %768 = vmatprep.subr.bf16.mxu0 %v614
    %769 = vmatpush1.bf16.msra.mxu0 %v613
    %770 = vmatprep.subr.bf16.mxu0 0
    %771 = vmatpush1.bf16.msra.mxu0 0
    %772 = vmatprep.subr.bf16.mxu0 0
    %773 = vmatpush1.bf16.msra.mxu0 0
    %774 = vmatprep.subr.bf16.mxu0 0
    %775 = vmatpush1.bf16.msra.mxu0 0
    %776 = vmatprep.subr.bf16.mxu0 0
    %777 = vmatpush1.bf16.msra.mxu0 0
    %778 = vmatprep.subr.bf16.mxu0 0
    %779 = vmatpush1.bf16.msra.mxu0 0
    %780 = vmatprep.subr.bf16.mxu0 0
    %781 = vmatpush1.bf16.msra.mxu0 0
    %782 = vmatprep.subr.bf16.mxu0 0
    %783 = vmatpush1.bf16.msra.mxu0 0
    %784 = vmatprep.subr.bf16.mxu0 0
    %785 = vmatpush1.bf16.msra.mxu0 0
    %786 = vmatprep.mubr.bf16.mxu0 0
    %787 = vmatmul.mubr.bf16.gmra.mrb[0].mxu0 %v282
    %v788 = vpop.f32.mrb[0].mxu0
    %v789 = vadd.f32 %v368, %v788
    %v790 = vpop.f32.mrb[0].mxu0
    %v791 = vadd.f32 %v372, %v790
    %v792 = vpop.f32.mrb[0].mxu0
    %v793 = vpop.f32.mrb[0].mxu0
    %794 = vdwg.mxu0
    %795 = vmatprep.subr.bf16.mxu0 0
    %796 = vmatpush1.bf16.msra.mxu0 %v566
    %797 = vmatprep.subr.bf16.mxu0 0
    %798 = vmatpush1.bf16.msra.mxu0 %v573
    %799 = vmatprep.subr.bf16.mxu0 0
    %800 = vmatpush1.bf16.msra.mxu0 %v580
    %801 = vmatprep.subr.bf16.mxu0 0
    %802 = vmatpush1.bf16.msra.mxu0 %v587
    %803 = vmatprep.subr.bf16.mxu0 0
    %804 = vmatpush1.bf16.msra.mxu0 %v594
    %805 = vmatprep.subr.bf16.mxu0 0
    %806 = vmatpush1.bf16.msra.mxu0 %v601
    %807 = vmatprep.subr.bf16.mxu0 0
    %808 = vmatpush1.bf16.msra.mxu0 %v608
    %809 = vmatprep.subr.bf16.mxu0 0
    %810 = vmatpush1.bf16.msra.mxu0 %v615
    %811 = vmatprep.subr.bf16.mxu0 0
    %812 = vmatpush1.bf16.msra.mxu0 0
    %813 = vmatprep.subr.bf16.mxu0 0
    %814 = vmatpush1.bf16.msra.mxu0 0
    %815 = vmatprep.subr.bf16.mxu0 0
    %816 = vmatpush1.bf16.msra.mxu0 0
    %817 = vmatprep.subr.bf16.mxu0 0
    %818 = vmatpush1.bf16.msra.mxu0 0
    %819 = vmatprep.subr.bf16.mxu0 0
    %820 = vmatpush1.bf16.msra.mxu0 0
    %821 = vmatprep.subr.bf16.mxu0 0
    %822 = vmatpush1.bf16.msra.mxu0 0
    %823 = vmatprep.subr.bf16.mxu0 0
    %824 = vmatpush1.bf16.msra.mxu0 0
    %825 = vmatprep.subr.bf16.mxu0 0
    %826 = vmatpush1.bf16.msra.mxu0 0
    %827 = vmatprep.mubr.bf16.mxu0 0
    %828 = vmatmul.mubr.bf16.gmra.mrb[0].mxu0 %v282
    %v829 = vpop.f32.mrb[0].mxu0
    %v830 = vadd.f32 %v376, %v829
    %v831 = vpop.f32.mrb[0].mxu0
    %v832 = vpop.f32.mrb[0].mxu0
    %v833 = vpop.f32.mrb[0].mxu0
    %834 = vdwg.mxu0
    %v835 = vmax.f32 %v707, 0.0
    %v836 = vmax.f32 %v709, 0.0
    %v837 = vmax.f32 %v748, 0.0
    %v838 = vmax.f32 %v750, 0.0
    %v839 = vmax.f32 %v789, 0.0
    %v840 = vmax.f32 %v791, 0.0
    %v841 = vmax.f32 %v830, 0.0
    %v842 = vpack.c.bf16 %v835, %v835
    %v843 = vpack.c.bf16 %v836, %v836
    %v844 = vpack.c.bf16 %v837, %v837
    %v845 = vpack.c.bf16 %v838, %v838
    %v846 = vpack.c.bf16 %v839, %v839
    %v847 = vpack.c.bf16 %v840, %v840
    %v848 = vpack.c.bf16 %v841, %v841
    %v849 = vld [vmem:[#allocation10] sm:$0xff]
    %v850 = vld [vmem:[#allocation10 + $0x8] sm:$0xff]
    %v851 = vld [vmem:[#allocation10 + $0x10] sm:$0xff]
    %v852 = vld [vmem:[#allocation10 + $0x18] sm:$0xf]
    %v853 = vld [vmem:[#allocation10 + $0x1c] sm:$0xff]
    %v854 = vld [vmem:[#allocation10 + $0x24] sm:$0xff]
    %v855 = vld [vmem:[#allocation10 + $0x2c] sm:$0xff]
    %v856 = vld [vmem:[#allocation10 + $0x34] sm:$0xf]
    %v857 = vld [vmem:[#allocation10 + $0x38] sm:$0xff]
    %v858 = vld [vmem:[#allocation10 + $0x40] sm:$0xff]
    %v859 = vld [vmem:[#allocation10 + $0x48] sm:$0xff]
    %v860 = vld [vmem:[#allocation10 + $0x50] sm:$0xf]
    %v861 = vld [vmem:[#allocation10 + $0x54] sm:$0xff]
    %v862 = vld [vmem:[#allocation10 + $0x5c] sm:$0xff]
    %v863 = vld [vmem:[#allocation10 + $0x64] sm:$0xff]
    %v864 = vld [vmem:[#allocation10 + $0x6c] sm:$0xf]
    %v865 = vld [vmem:[#allocation10 + $0x70] sm:$0xff]
    %v866 = vld [vmem:[#allocation10 + $0x78] sm:$0xff]
    %v867 = vld [vmem:[#allocation10 + $0x80] sm:$0xff]
    %v868 = vld [vmem:[#allocation10 + $0x88] sm:$0xf]
    %v869 = vld [vmem:[#allocation10 + $0x8c] sm:$0xff]
    %v870 = vld [vmem:[#allocation10 + $0x94] sm:$0xff]
    %v871 = vld [vmem:[#allocation10 + $0x9c] sm:$0xff]
    %v872 = vld [vmem:[#allocation10 + $0xa4] sm:$0xf]
    %v873 = vld [vmem:[#allocation10 + $0xa8] sm:$0xff]
    %v874 = vld [vmem:[#allocation10 + $0xb0] sm:$0xff]
    %v875 = vld [vmem:[#allocation10 + $0xb8] sm:$0xff]
    %v876 = vld [vmem:[#allocation10 + $0xc0] sm:$0xf]
    %v877 = vld [vmem:[#allocation10 + $0xc4] sm:$0xff]
    %v878 = vld [vmem:[#allocation10 + $0xcc] sm:$0xff]
    %v879 = vld [vmem:[#allocation10 + $0xd4] sm:$0xff]
    %v880 = vld [vmem:[#allocation10 + $0xdc] sm:$0xf]
    %v881 = vld [vmem:[#allocation10 + $0xe0] sm:$0xff]
    %v882 = vld [vmem:[#allocation10 + $0xe8] sm:$0xff]
    %v883 = vld [vmem:[#allocation10 + $0xf0] sm:$0xff]
    %v884 = vld [vmem:[#allocation10 + $0xf8] sm:$0xf]
    %v885 = vld [vmem:[#allocation10 + $0xfc] sm:$0xff]
    %v886 = vld [vmem:[#allocation10 + $0x104] sm:$0xff]
    %v887 = vld [vmem:[#allocation10 + $0x10c] sm:$0xff]
    %v888 = vld [vmem:[#allocation10 + $0x114] sm:$0xf]
    %v889 = vld [vmem:[#allocation10 + $0x118] sm:$0xff]
    %v890 = vld [vmem:[#allocation10 + $0x120] sm:$0xff]
    %v891 = vld [vmem:[#allocation10 + $0x128] sm:$0xff]
    %v892 = vld [vmem:[#allocation10 + $0x130] sm:$0xf]
    %v893 = vld [vmem:[#allocation10 + $0x134] sm:$0xff]
    %v894 = vld [vmem:[#allocation10 + $0x13c] sm:$0xff]
    %v895 = vld [vmem:[#allocation10 + $0x144] sm:$0xff]
    %v896 = vld [vmem:[#allocation10 + $0x14c] sm:$0xf]
    %v897 = vld [vmem:[#allocation10 + $0x150] sm:$0xff]
    %v898 = vld [vmem:[#allocation10 + $0x158] sm:$0xff]
    %v899 = vld [vmem:[#allocation10 + $0x160] sm:$0xff]
    %v900 = vld [vmem:[#allocation10 + $0x168] sm:$0xf]
    %v901 = vld [vmem:[#allocation10 + $0x16c] sm:$0xff]
    %v902 = vld [vmem:[#allocation10 + $0x174] sm:$0xff]
    %v903 = vld [vmem:[#allocation10 + $0x17c] sm:$0xff]
    %v904 = vld [vmem:[#allocation10 + $0x184] sm:$0xf]
    %v905 = vld [vmem:[#allocation10 + $0x188] sm:$0xff]
    %v906 = vld [vmem:[#allocation10 + $0x190] sm:$0xff]
    %v907 = vld [vmem:[#allocation10 + $0x198] sm:$0xff]
    %v908 = vld [vmem:[#allocation10 + $0x1a0] sm:$0xf]
    %v909 = vld [vmem:[#allocation10 + $0x1a4] sm:$0xff]
    %v910 = vld [vmem:[#allocation10 + $0x1ac] sm:$0xff]
    %v911 = vld [vmem:[#allocation10 + $0x1b4] sm:$0xff]
    %v912 = vld [vmem:[#allocation10 + $0x1bc] sm:$0xf]
    %v913 = vld [vmem:[#allocation10 + $0x1c0] sm:$0xff]
    %v914 = vld [vmem:[#allocation10 + $0x1c8] sm:$0xff]
    %v915 = vld [vmem:[#allocation10 + $0x1d0] sm:$0xff]
    %v916 = vld [vmem:[#allocation10 + $0x1d8] sm:$0xf]
    %v917 = vld [vmem:[#allocation10 + $0x1dc] sm:$0xff]
    %v918 = vld [vmem:[#allocation10 + $0x1e4] sm:$0xff]
    %v919 = vld [vmem:[#allocation10 + $0x1ec] sm:$0xff]
    %v920 = vld [vmem:[#allocation10 + $0x1f4] sm:$0xf]
    %v921 = vld [vmem:[#allocation10 + $0x1f8] sm:$0xff]
    %v922 = vld [vmem:[#allocation10 + $0x200] sm:$0xff]
    %v923 = vld [vmem:[#allocation10 + $0x208] sm:$0xff]
    %v924 = vld [vmem:[#allocation10 + $0x210] sm:$0xf]
    %v925 = vld [vmem:[#allocation10 + $0x214] sm:$0xff]
    %v926 = vld [vmem:[#allocation10 + $0x21c] sm:$0xff]
    %v927 = vld [vmem:[#allocation10 + $0x224] sm:$0xff]
    %v928 = vld [vmem:[#allocation10 + $0x22c] sm:$0xf]
    %v929 = vld [vmem:[#allocation10 + $0x230] sm:$0xff]
    %v930 = vld [vmem:[#allocation10 + $0x238] sm:$0xff]
    %v931 = vld [vmem:[#allocation10 + $0x240] sm:$0xff]
    %v932 = vld [vmem:[#allocation10 + $0x248] sm:$0xf]
    %v933 = vld [vmem:[#allocation10 + $0x24c] sm:$0xff]
    %v934 = vld [vmem:[#allocation10 + $0x254] sm:$0xff]
    %v935 = vld [vmem:[#allocation10 + $0x25c] sm:$0xff]
    %v936 = vld [vmem:[#allocation10 + $0x264] sm:$0xf]
    %v937 = vld [vmem:[#allocation10 + $0x268] sm:$0xff]
    %v938 = vld [vmem:[#allocation10 + $0x270] sm:$0xff]
    %v939 = vld [vmem:[#allocation10 + $0x278] sm:$0xff]
    %v940 = vld [vmem:[#allocation10 + $0x280] sm:$0xf]
    %v941 = vld [vmem:[#allocation10 + $0x284] sm:$0xff]
    %v942 = vld [vmem:[#allocation10 + $0x28c] sm:$0xff]
    %v943 = vld [vmem:[#allocation10 + $0x294] sm:$0xff]
    %v944 = vld [vmem:[#allocation10 + $0x29c] sm:$0xf]
    %v945 = vld [vmem:[#allocation10 + $0x2a0] sm:$0xff]
    %v946 = vld [vmem:[#allocation10 + $0x2a8] sm:$0xff]
    %v947 = vld [vmem:[#allocation10 + $0x2b0] sm:$0xff]
    %v948 = vld [vmem:[#allocation10 + $0x2b8] sm:$0xf]
    %v949 = vld [vmem:[#allocation10 + $0x2bc] sm:$0xff]
    %v950 = vld [vmem:[#allocation10 + $0x2c4] sm:$0xff]
    %v951 = vld [vmem:[#allocation10 + $0x2cc] sm:$0xff]
    %v952 = vld [vmem:[#allocation10 + $0x2d4] sm:$0xf]
    %v953 = vld [vmem:[#allocation10 + $0x2d8] sm:$0xff]
    %v954 = vld [vmem:[#allocation10 + $0x2e0] sm:$0xff]
    %v955 = vld [vmem:[#allocation10 + $0x2e8] sm:$0xff]
    %v956 = vld [vmem:[#allocation10 + $0x2f0] sm:$0xf]
    %v957 = vld [vmem:[#allocation10 + $0x2f4] sm:$0xff]
    %v958 = vld [vmem:[#allocation10 + $0x2fc] sm:$0xff]
    %v959 = vld [vmem:[#allocation10 + $0x304] sm:$0xff]
    %v960 = vld [vmem:[#allocation10 + $0x30c] sm:$0xf]
    %v961 = vld [vmem:[#allocation10 + $0x310] sm:$0xff]
    %v962 = vld [vmem:[#allocation10 + $0x318] sm:$0xff]
    %v963 = vld [vmem:[#allocation10 + $0x320] sm:$0xff]
    %v964 = vld [vmem:[#allocation10 + $0x328] sm:$0xf]
    %v965 = vld [vmem:[#allocation10 + $0x32c] sm:$0xff]
    %v966 = vld [vmem:[#allocation10 + $0x334] sm:$0xff]
    %v967 = vld [vmem:[#allocation10 + $0x33c] sm:$0xff]
    %v968 = vld [vmem:[#allocation10 + $0x344] sm:$0xf]
    %v969 = vld [vmem:[#allocation10 + $0x348] sm:$0xff]
    %v970 = vld [vmem:[#allocation10 + $0x350] sm:$0xff]
    %v971 = vld [vmem:[#allocation10 + $0x358] sm:$0xff]
    %v972 = vld [vmem:[#allocation10 + $0x360] sm:$0xf]
    %v973 = vld [vmem:[#allocation10 + $0x364] sm:$0xff]
    %v974 = vld [vmem:[#allocation10 + $0x36c] sm:$0xff]
    %v975 = vld [vmem:[#allocation10 + $0x374] sm:$0xff]
    %v976 = vld [vmem:[#allocation10 + $0x37c] sm:$0xf]
    %v977 = vld [vmem:[#allocation10 + $0x380] sm:$0xff]
    %v978 = vld [vmem:[#allocation10 + $0x388] sm:$0xff]
    %v979 = vld [vmem:[#allocation10 + $0x390] sm:$0xff]
    %v980 = vld [vmem:[#allocation10 + $0x398] sm:$0xf]
    %v981 = vld [vmem:[#allocation10 + $0x39c] sm:$0xff]
    %v982 = vld [vmem:[#allocation10 + $0x3a4] sm:$0xff]
    %v983 = vld [vmem:[#allocation10 + $0x3ac] sm:$0xff]
    %v984 = vld [vmem:[#allocation10 + $0x3b4] sm:$0xf]
    %v985 = vld [vmem:[#allocation10 + $0x3b8] sm:$0xff]
    %v986 = vld [vmem:[#allocation10 + $0x3c0] sm:$0xff]
    %v987 = vld [vmem:[#allocation10 + $0x3c8] sm:$0xff]
    %v988 = vld [vmem:[#allocation10 + $0x3d0] sm:$0xf]
    %v989 = vld [vmem:[#allocation10 + $0x3d4] sm:$0xff]
    %v990 = vld [vmem:[#allocation10 + $0x3dc] sm:$0xff]
    %v991 = vld [vmem:[#allocation10 + $0x3e4] sm:$0xff]
    %v992 = vld [vmem:[#allocation10 + $0x3ec] sm:$0xf]
    %v993 = vld [vmem:[#allocation10 + $0x3f0] sm:$0xff]
    %v994 = vld [vmem:[#allocation10 + $0x3f8] sm:$0xff]
    %v995 = vld [vmem:[#allocation10 + $0x400] sm:$0xff]
    %v996 = vld [vmem:[#allocation10 + $0x408] sm:$0xf]
    %v997 = vld [vmem:[#allocation10 + $0x40c] sm:$0xff]
    %v998 = vld [vmem:[#allocation10 + $0x414] sm:$0xff]
    %v999 = vld [vmem:[#allocation10 + $0x41c] sm:$0xff]
    %v1000 = vld [vmem:[#allocation10 + $0x424] sm:$0xf]
    %v1001 = vld [vmem:[#allocation10 + $0x428] sm:$0xff]
    %v1002 = vld [vmem:[#allocation10 + $0x430] sm:$0xff]
    %v1003 = vld [vmem:[#allocation10 + $0x438] sm:$0xff]
    %v1004 = vld [vmem:[#allocation10 + $0x440] sm:$0xf]
    %v1005 = vld [vmem:[#allocation10 + $0x444] sm:$0xff]
    %v1006 = vld [vmem:[#allocation10 + $0x44c] sm:$0xff]
    %v1007 = vld [vmem:[#allocation10 + $0x454] sm:$0xff]
    %v1008 = vld [vmem:[#allocation10 + $0x45c] sm:$0xf]
    %v1009 = vld [vmem:[#allocation10 + $0x460] sm:$0xff]
    %v1010 = vld [vmem:[#allocation10 + $0x468] sm:$0xff]
    %v1011 = vld [vmem:[#allocation10 + $0x470] sm:$0xff]
    %v1012 = vld [vmem:[#allocation10 + $0x478] sm:$0xf]
    %v1013 = vld [vmem:[#allocation10 + $0x47c] sm:$0xff]
    %v1014 = vld [vmem:[#allocation10 + $0x484] sm:$0xff]
    %v1015 = vld [vmem:[#allocation10 + $0x48c] sm:$0xff]
    %v1016 = vld [vmem:[#allocation10 + $0x494] sm:$0xf]
    %v1017 = vld [vmem:[#allocation10 + $0x498] sm:$0xff]
    %v1018 = vld [vmem:[#allocation10 + $0x4a0] sm:$0xff]
    %v1019 = vld [vmem:[#allocation10 + $0x4a8] sm:$0xff]
    %v1020 = vld [vmem:[#allocation10 + $0x4b0] sm:$0xf]
    %v1021 = vld [vmem:[#allocation10 + $0x4b4] sm:$0xff]
    %v1022 = vld [vmem:[#allocation10 + $0x4bc] sm:$0xff]
    %v1023 = vld [vmem:[#allocation10 + $0x4c4] sm:$0xff]
    %v1024 = vld [vmem:[#allocation10 + $0x4cc] sm:$0xf]
    %v1025 = vld [vmem:[#allocation10 + $0x4d0] sm:$0xff]
    %v1026 = vld [vmem:[#allocation10 + $0x4d8] sm:$0xff]
    %v1027 = vld [vmem:[#allocation10 + $0x4e0] sm:$0xff]
    %v1028 = vld [vmem:[#allocation10 + $0x4e8] sm:$0xf]
    %v1029 = vld [vmem:[#allocation10 + $0x4ec] sm:$0xff]
    %v1030 = vld [vmem:[#allocation10 + $0x4f4] sm:$0xff]
    %v1031 = vld [vmem:[#allocation10 + $0x4fc] sm:$0xff]
    %v1032 = vld [vmem:[#allocation10 + $0x504] sm:$0xf]
    %v1033 = vld [vmem:[#allocation10 + $0x508] sm:$0xff]
    %v1034 = vld [vmem:[#allocation10 + $0x510] sm:$0xff]
    %v1035 = vld [vmem:[#allocation10 + $0x518] sm:$0xff]
    %v1036 = vld [vmem:[#allocation10 + $0x520] sm:$0xf]
    %v1037 = vld [vmem:[#allocation10 + $0x524] sm:$0xff]
    %v1038 = vld [vmem:[#allocation10 + $0x52c] sm:$0xff]
    %v1039 = vld [vmem:[#allocation10 + $0x534] sm:$0xff]
    %v1040 = vld [vmem:[#allocation10 + $0x53c] sm:$0xf]
    %v1041 = vld [vmem:[#allocation10 + $0x540] sm:$0xff]
    %v1042 = vld [vmem:[#allocation10 + $0x548] sm:$0xff]
    %v1043 = vld [vmem:[#allocation10 + $0x550] sm:$0xff]
    %v1044 = vld [vmem:[#allocation10 + $0x558] sm:$0xf]
    %v1045 = vld [vmem:[#allocation10 + $0x55c] sm:$0xff]
    %v1046 = vld [vmem:[#allocation10 + $0x564] sm:$0xff]
    %v1047 = vld [vmem:[#allocation10 + $0x56c] sm:$0xff]
    %v1048 = vld [vmem:[#allocation10 + $0x574] sm:$0xf]
    %v1049 = vld [vmem:[#allocation10 + $0x578] sm:$0xff]
    %v1050 = vld [vmem:[#allocation10 + $0x580] sm:$0xff]
    %v1051 = vld [vmem:[#allocation10 + $0x588] sm:$0xff]
    %v1052 = vld [vmem:[#allocation10 + $0x590] sm:$0xf]
    %v1053 = vld [vmem:[#allocation10 + $0x594] sm:$0xff]
    %v1054 = vld [vmem:[#allocation10 + $0x59c] sm:$0xff]
    %v1055 = vld [vmem:[#allocation10 + $0x5a4] sm:$0xff]
    %v1056 = vld [vmem:[#allocation10 + $0x5ac] sm:$0xf]
    %v1057 = vld [vmem:[#allocation10 + $0x5b0] sm:$0xff]
    %v1058 = vld [vmem:[#allocation10 + $0x5b8] sm:$0xff]
    %v1059 = vld [vmem:[#allocation10 + $0x5c0] sm:$0xff]
    %v1060 = vld [vmem:[#allocation10 + $0x5c8] sm:$0xf]
    %v1061 = vld [vmem:[#allocation10 + $0x5cc] sm:$0xff]
    %v1062 = vld [vmem:[#allocation10 + $0x5d4] sm:$0xff]
    %v1063 = vld [vmem:[#allocation10 + $0x5dc] sm:$0xff]
    %v1064 = vld [vmem:[#allocation10 + $0x5e4] sm:$0xf]
    %v1065 = vld [vmem:[#allocation10 + $0x5e8] sm:$0xff]
    %v1066 = vld [vmem:[#allocation10 + $0x5f0] sm:$0xff]
    %v1067 = vld [vmem:[#allocation10 + $0x5f8] sm:$0xff]
    %v1068 = vld [vmem:[#allocation10 + $0x600] sm:$0xf]
    %v1069 = vld [vmem:[#allocation10 + $0x604] sm:$0xff]
    %v1070 = vld [vmem:[#allocation10 + $0x60c] sm:$0xff]
    %v1071 = vld [vmem:[#allocation10 + $0x614] sm:$0xff]
    %v1072 = vld [vmem:[#allocation10 + $0x61c] sm:$0xf]
    %v1073 = vld [vmem:[#allocation10 + $0x620] sm:$0xff]
    %v1074 = vld [vmem:[#allocation10 + $0x628] sm:$0xff]
    %v1075 = vld [vmem:[#allocation10 + $0x630] sm:$0xff]
    %v1076 = vld [vmem:[#allocation10 + $0x638] sm:$0xf]
    %v1077 = vld [vmem:[#allocation10 + $0x63c] sm:$0xff]
    %v1078 = vld [vmem:[#allocation10 + $0x644] sm:$0xff]
    %v1079 = vld [vmem:[#allocation10 + $0x64c] sm:$0xff]
    %v1080 = vld [vmem:[#allocation10 + $0x654] sm:$0xf]
    %v1081 = vld [vmem:[#allocation10 + $0x658] sm:$0xff]
    %v1082 = vld [vmem:[#allocation10 + $0x660] sm:$0xff]
    %v1083 = vld [vmem:[#allocation10 + $0x668] sm:$0xff]
    %v1084 = vld [vmem:[#allocation10 + $0x670] sm:$0xf]
    %v1085 = vld [vmem:[#allocation10 + $0x674] sm:$0xff]
    %v1086 = vld [vmem:[#allocation10 + $0x67c] sm:$0xff]
    %v1087 = vld [vmem:[#allocation10 + $0x684] sm:$0xff]
    %v1088 = vld [vmem:[#allocation10 + $0x68c] sm:$0xf]
    %v1089 = vld [vmem:[#allocation10 + $0x690] sm:$0xff]
    %v1090 = vld [vmem:[#allocation10 + $0x698] sm:$0xff]
    %v1091 = vld [vmem:[#allocation10 + $0x6a0] sm:$0xff]
    %v1092 = vld [vmem:[#allocation10 + $0x6a8] sm:$0xf]
    %v1093 = vld [vmem:[#allocation10 + $0x6ac] sm:$0xff]
    %v1094 = vld [vmem:[#allocation10 + $0x6b4] sm:$0xff]
    %v1095 = vld [vmem:[#allocation10 + $0x6bc] sm:$0xff]
    %v1096 = vld [vmem:[#allocation10 + $0x6c4] sm:$0xf]
    %v1097 = vld [vmem:[#allocation10 + $0x6c8] sm:$0xff]
    %v1098 = vld [vmem:[#allocation10 + $0x6d0] sm:$0xff]
    %v1099 = vld [vmem:[#allocation10 + $0x6d8] sm:$0xff]
    %v1100 = vld [vmem:[#allocation10 + $0x6e0] sm:$0xf]
    %v1101 = vld [vmem:[#allocation10 + $0x6e4] sm:$0xff]
    %v1102 = vld [vmem:[#allocation10 + $0x6ec] sm:$0xff]
    %v1103 = vld [vmem:[#allocation10 + $0x6f4] sm:$0xff]
    %v1104 = vld [vmem:[#allocation10 + $0x6fc] sm:$0xf]
    %v1105 = vld [vmem:[#allocation10 + $0x700] sm:$0xff]
    %v1106 = vld [vmem:[#allocation10 + $0x708] sm:$0xff]
    %v1107 = vld [vmem:[#allocation10 + $0x710] sm:$0xff]
    %v1108 = vld [vmem:[#allocation10 + $0x718] sm:$0xf]
    %v1109 = vld [vmem:[#allocation10 + $0x71c] sm:$0xff]
    %v1110 = vld [vmem:[#allocation10 + $0x724] sm:$0xff]
    %v1111 = vld [vmem:[#allocation10 + $0x72c] sm:$0xff]
    %v1112 = vld [vmem:[#allocation10 + $0x734] sm:$0xf]
    %v1113 = vld [vmem:[#allocation10 + $0x738] sm:$0xff]
    %v1114 = vld [vmem:[#allocation10 + $0x740] sm:$0xff]
    %v1115 = vld [vmem:[#allocation10 + $0x748] sm:$0xff]
    %v1116 = vld [vmem:[#allocation10 + $0x750] sm:$0xf]
    %v1117 = vld [vmem:[#allocation10 + $0x754] sm:$0xff]
    %v1118 = vld [vmem:[#allocation10 + $0x75c] sm:$0xff]
    %v1119 = vld [vmem:[#allocation10 + $0x764] sm:$0xff]
    %v1120 = vld [vmem:[#allocation10 + $0x76c] sm:$0xf]
    %v1121 = vld [vmem:[#allocation10 + $0x770] sm:$0xff]
    %v1122 = vld [vmem:[#allocation10 + $0x778] sm:$0xff]
    %v1123 = vld [vmem:[#allocation10 + $0x780] sm:$0xff]
    %v1124 = vld [vmem:[#allocation10 + $0x788] sm:$0xf]
    %v1125 = vld [vmem:[#allocation10 + $0x78c] sm:$0xff]
    %v1126 = vld [vmem:[#allocation10 + $0x794] sm:$0xff]
    %v1127 = vld [vmem:[#allocation10 + $0x79c] sm:$0xff]
    %v1128 = vld [vmem:[#allocation10 + $0x7a4] sm:$0xf]
    %v1129 = vld [vmem:[#allocation10 + $0x7a8] sm:$0xff]
    %v1130 = vld [vmem:[#allocation10 + $0x7b0] sm:$0xff]
    %v1131 = vld [vmem:[#allocation10 + $0x7b8] sm:$0xff]
    %v1132 = vld [vmem:[#allocation10 + $0x7c0] sm:$0xf]
    %v1133 = vld [vmem:[#allocation10 + $0x7c4] sm:$0xff]
    %v1134 = vld [vmem:[#allocation10 + $0x7cc] sm:$0xff]
    %v1135 = vld [vmem:[#allocation10 + $0x7d4] sm:$0xff]
    %v1136 = vld [vmem:[#allocation10 + $0x7dc] sm:$0xf]
    %v1137 = vld [vmem:[#allocation10 + $0x7e0] sm:$0xff]
    %v1138 = vld [vmem:[#allocation10 + $0x7e8] sm:$0xff]
    %v1139 = vld [vmem:[#allocation10 + $0x7f0] sm:$0xff]
    %v1140 = vld [vmem:[#allocation10 + $0x7f8] sm:$0xf]
    %v1141 = vld [vmem:[#allocation10 + $0x7fc] sm:$0xff]
    %v1142 = vld [vmem:[#allocation10 + $0x804] sm:$0xff]
    %v1143 = vld [vmem:[#allocation10 + $0x80c] sm:$0xff]
    %v1144 = vld [vmem:[#allocation10 + $0x814] sm:$0xf]
    %v1145 = vld [vmem:[#allocation10 + $0x818] sm:$0xff]
    %v1146 = vld [vmem:[#allocation10 + $0x820] sm:$0xff]
    %v1147 = vld [vmem:[#allocation10 + $0x828] sm:$0xff]
    %v1148 = vld [vmem:[#allocation10 + $0x830] sm:$0xf]
    %v1149 = vld [vmem:[#allocation10 + $0x834] sm:$0xff]
    %v1150 = vld [vmem:[#allocation10 + $0x83c] sm:$0xff]
    %v1151 = vld [vmem:[#allocation10 + $0x844] sm:$0xff]
    %v1152 = vld [vmem:[#allocation10 + $0x84c] sm:$0xf]
    %v1153 = vld [vmem:[#allocation10 + $0x850] sm:$0xff]
    %v1154 = vld [vmem:[#allocation10 + $0x858] sm:$0xff]
    %v1155 = vld [vmem:[#allocation10 + $0x860] sm:$0xff]
    %v1156 = vld [vmem:[#allocation10 + $0x868] sm:$0xf]
    %v1157 = vld [vmem:[#allocation10 + $0x86c] sm:$0xff]
    %v1158 = vld [vmem:[#allocation10 + $0x874] sm:$0xff]
    %v1159 = vld [vmem:[#allocation10 + $0x87c] sm:$0xff]
    %v1160 = vld [vmem:[#allocation10 + $0x884] sm:$0xf]
    %v1161 = vld [vmem:[#allocation10 + $0x888] sm:$0xff]
    %v1162 = vld [vmem:[#allocation10 + $0x890] sm:$0xff]
    %v1163 = vld [vmem:[#allocation10 + $0x898] sm:$0xff]
    %v1164 = vld [vmem:[#allocation10 + $0x8a0] sm:$0xf]
    %v1165 = vld [vmem:[#allocation10 + $0x8a4] sm:$0xff]
    %v1166 = vld [vmem:[#allocation10 + $0x8ac] sm:$0xff]
    %v1167 = vld [vmem:[#allocation10 + $0x8b4] sm:$0xff]
    %v1168 = vld [vmem:[#allocation10 + $0x8bc] sm:$0xf]
    %v1169 = vld [vmem:[#allocation10 + $0x8c0] sm:$0xff]
    %v1170 = vld [vmem:[#allocation10 + $0x8c8] sm:$0xff]
    %v1171 = vld [vmem:[#allocation10 + $0x8d0] sm:$0xff]
    %v1172 = vld [vmem:[#allocation10 + $0x8d8] sm:$0xf]
    %v1173 = vld [vmem:[#allocation10 + $0x8dc] sm:$0xff]
    %v1174 = vld [vmem:[#allocation10 + $0x8e4] sm:$0xff]
    %v1175 = vld [vmem:[#allocation10 + $0x8ec] sm:$0xff]
    %v1176 = vld [vmem:[#allocation10 + $0x8f4] sm:$0xf]
    %v1177 = vld [vmem:[#allocation10 + $0x8f8] sm:$0xff]
    %v1178 = vld [vmem:[#allocation10 + $0x900] sm:$0xff]
    %v1179 = vld [vmem:[#allocation10 + $0x908] sm:$0xff]
    %v1180 = vld [vmem:[#allocation10 + $0x910] sm:$0xf]
    %v1181 = vld [vmem:[#allocation10 + $0x914] sm:$0xff]
    %v1182 = vld [vmem:[#allocation10 + $0x91c] sm:$0xff]
    %v1183 = vld [vmem:[#allocation10 + $0x924] sm:$0xff]
    %v1184 = vld [vmem:[#allocation10 + $0x92c] sm:$0xf]
    %v1185 = vld [vmem:[#allocation10 + $0x930] sm:$0xff]
    %v1186 = vld [vmem:[#allocation10 + $0x938] sm:$0xff]
    %v1187 = vld [vmem:[#allocation10 + $0x940] sm:$0xff]
    %v1188 = vld [vmem:[#allocation10 + $0x948] sm:$0xf]
    %v1189 = vld [vmem:[#allocation10 + $0x94c] sm:$0xff]
    %v1190 = vld [vmem:[#allocation10 + $0x954] sm:$0xff]
    %v1191 = vld [vmem:[#allocation10 + $0x95c] sm:$0xff]
    %v1192 = vld [vmem:[#allocation10 + $0x964] sm:$0xf]
    %v1193 = vld [vmem:[#allocation10 + $0x968] sm:$0xff]
    %v1194 = vld [vmem:[#allocation10 + $0x970] sm:$0xff]
    %v1195 = vld [vmem:[#allocation10 + $0x978] sm:$0xff]
    %v1196 = vld [vmem:[#allocation10 + $0x980] sm:$0xf]
    %v1197 = vld [vmem:[#allocation10 + $0x984] sm:$0xff]
    %v1198 = vld [vmem:[#allocation10 + $0x98c] sm:$0xff]
    %v1199 = vld [vmem:[#allocation10 + $0x994] sm:$0xff]
    %v1200 = vld [vmem:[#allocation10 + $0x99c] sm:$0xf]
    %v1201 = vld [vmem:[#allocation10 + $0x9a0] sm:$0xff]
    %v1202 = vld [vmem:[#allocation10 + $0x9a8] sm:$0xff]
    %v1203 = vld [vmem:[#allocation10 + $0x9b0] sm:$0xff]
    %v1204 = vld [vmem:[#allocation10 + $0x9b8] sm:$0xf]
    %v1205 = vld [vmem:[#allocation10 + $0x9bc] sm:$0xff]
    %v1206 = vld [vmem:[#allocation10 + $0x9c4] sm:$0xff]
    %v1207 = vld [vmem:[#allocation10 + $0x9cc] sm:$0xff]
    %v1208 = vld [vmem:[#allocation10 + $0x9d4] sm:$0xf]
    %v1209 = vld [vmem:[#allocation10 + $0x9d8] sm:$0xff]
    %v1210 = vld [vmem:[#allocation10 + $0x9e0] sm:$0xff]
    %v1211 = vld [vmem:[#allocation10 + $0x9e8] sm:$0xff]
    %v1212 = vld [vmem:[#allocation10 + $0x9f0] sm:$0xf]
    %v1213 = vld [vmem:[#allocation10 + $0x9f4] sm:$0xff]
    %v1214 = vld [vmem:[#allocation10 + $0x9fc] sm:$0xff]
    %v1215 = vld [vmem:[#allocation10 + $0xa04] sm:$0xff]
    %v1216 = vld [vmem:[#allocation10 + $0xa0c] sm:$0xf]
    %v1217 = vld [vmem:[#allocation10 + $0xa10] sm:$0xff]
    %v1218 = vld [vmem:[#allocation10 + $0xa18] sm:$0xff]
    %v1219 = vld [vmem:[#allocation10 + $0xa20] sm:$0xff]
    %v1220 = vld [vmem:[#allocation10 + $0xa28] sm:$0xf]
    %v1221 = vld [vmem:[#allocation10 + $0xa2c] sm:$0xff]
    %v1222 = vld [vmem:[#allocation10 + $0xa34] sm:$0xff]
    %v1223 = vld [vmem:[#allocation10 + $0xa3c] sm:$0xff]
    %v1224 = vld [vmem:[#allocation10 + $0xa44] sm:$0xf]
    %v1225 = vld [vmem:[#allocation10 + $0xa48] sm:$0xff]
    %v1226 = vld [vmem:[#allocation10 + $0xa50] sm:$0xff]
    %v1227 = vld [vmem:[#allocation10 + $0xa58] sm:$0xff]
    %v1228 = vld [vmem:[#allocation10 + $0xa60] sm:$0xf]
    %v1229 = vld [vmem:[#allocation10 + $0xa64] sm:$0xff]
    %v1230 = vld [vmem:[#allocation10 + $0xa6c] sm:$0xff]
    %v1231 = vld [vmem:[#allocation10 + $0xa74] sm:$0xff]
    %v1232 = vld [vmem:[#allocation10 + $0xa7c] sm:$0xf]
    %v1233 = vld [vmem:[#allocation10 + $0xa80] sm:$0xff]
    %v1234 = vld [vmem:[#allocation10 + $0xa88] sm:$0xff]
    %v1235 = vld [vmem:[#allocation10 + $0xa90] sm:$0xff]
    %v1236 = vld [vmem:[#allocation10 + $0xa98] sm:$0xf]
    %v1237 = vld [vmem:[#allocation10 + $0xa9c] sm:$0xff]
    %v1238 = vld [vmem:[#allocation10 + $0xaa4] sm:$0xff]
    %v1239 = vld [vmem:[#allocation10 + $0xaac] sm:$0xff]
    %v1240 = vld [vmem:[#allocation10 + $0xab4] sm:$0xf]
    %v1241 = vld [vmem:[#allocation10 + $0xab8] sm:$0xff]
    %v1242 = vld [vmem:[#allocation10 + $0xac0] sm:$0xff]
    %v1243 = vld [vmem:[#allocation10 + $0xac8] sm:$0xff]
    %v1244 = vld [vmem:[#allocation10 + $0xad0] sm:$0xf]
    %v1245 = vld [vmem:[#allocation10 + $0xad4] sm:$0xff]
    %v1246 = vld [vmem:[#allocation10 + $0xadc] sm:$0xff]
    %v1247 = vld [vmem:[#allocation10 + $0xae4] sm:$0xff]
    %v1248 = vld [vmem:[#allocation10 + $0xaec] sm:$0xf]
    %v1249 = vld [vmem:[#allocation10 + $0xaf0] sm:$0xff]
    %v1250 = vld [vmem:[#allocation10 + $0xaf8] sm:$0xff]
    %v1251 = vld [vmem:[#allocation10 + $0xb00] sm:$0xff]
    %v1252 = vld [vmem:[#allocation10 + $0xb08] sm:$0xf]
    %v1253 = vld [vmem:[#allocation10 + $0xb0c] sm:$0xff]
    %v1254 = vld [vmem:[#allocation10 + $0xb14] sm:$0xff]
    %v1255 = vld [vmem:[#allocation10 + $0xb1c] sm:$0xff]
    %v1256 = vld [vmem:[#allocation10 + $0xb24] sm:$0xf]
    %v1257 = vld [vmem:[#allocation10 + $0xb28] sm:$0xff]
    %v1258 = vld [vmem:[#allocation10 + $0xb30] sm:$0xff]
    %v1259 = vld [vmem:[#allocation10 + $0xb38] sm:$0xff]
    %v1260 = vld [vmem:[#allocation10 + $0xb40] sm:$0xf]
    %v1261 = vld [vmem:[#allocation10 + $0xb44] sm:$0xff]
    %v1262 = vld [vmem:[#allocation10 + $0xb4c] sm:$0xff]
    %v1263 = vld [vmem:[#allocation10 + $0xb54] sm:$0xff]
    %v1264 = vld [vmem:[#allocation10 + $0xb5c] sm:$0xf]
    %v1265 = vld [vmem:[#allocation10 + $0xb60] sm:$0xff]
    %v1266 = vld [vmem:[#allocation10 + $0xb68] sm:$0xff]
    %v1267 = vld [vmem:[#allocation10 + $0xb70] sm:$0xff]
    %v1268 = vld [vmem:[#allocation10 + $0xb78] sm:$0xf]
    %v1269 = vld [vmem:[#allocation10 + $0xb7c] sm:$0xff]
    %v1270 = vld [vmem:[#allocation10 + $0xb84] sm:$0xff]
    %v1271 = vld [vmem:[#allocation10 + $0xb8c] sm:$0xff]
    %v1272 = vld [vmem:[#allocation10 + $0xb94] sm:$0xf]
    %v1273 = vld [vmem:[#allocation10 + $0xb98] sm:$0xff]
    %v1274 = vld [vmem:[#allocation10 + $0xba0] sm:$0xff]
    %v1275 = vld [vmem:[#allocation10 + $0xba8] sm:$0xff]
    %v1276 = vld [vmem:[#allocation10 + $0xbb0] sm:$0xf]
    %v1277 = vld [vmem:[#allocation10 + $0xbb4] sm:$0xff]
    %v1278 = vld [vmem:[#allocation10 + $0xbbc] sm:$0xff]
    %v1279 = vld [vmem:[#allocation10 + $0xbc4] sm:$0xff]
    %v1280 = vld [vmem:[#allocation10 + $0xbcc] sm:$0xf]
    %v1281 = vld [vmem:[#allocation10 + $0xbd0] sm:$0xff]
    %v1282 = vld [vmem:[#allocation10 + $0xbd8] sm:$0xff]
    %v1283 = vld [vmem:[#allocation10 + $0xbe0] sm:$0xff]
    %v1284 = vld [vmem:[#allocation10 + $0xbe8] sm:$0xf]
    %v1285 = vld [vmem:[#allocation10 + $0xbec] sm:$0xff]
    %v1286 = vld [vmem:[#allocation10 + $0xbf4] sm:$0xff]
    %v1287 = vld [vmem:[#allocation10 + $0xbfc] sm:$0xff]
    %v1288 = vld [vmem:[#allocation10 + $0xc04] sm:$0xf]
    %v1289 = vld [vmem:[#allocation10 + $0xc08] sm:$0xff]
    %v1290 = vld [vmem:[#allocation10 + $0xc10] sm:$0xff]
    %v1291 = vld [vmem:[#allocation10 + $0xc18] sm:$0xff]
    %v1292 = vld [vmem:[#allocation10 + $0xc20] sm:$0xf]
    %v1293 = vld [vmem:[#allocation10 + $0xc24] sm:$0xff]
    %v1294 = vld [vmem:[#allocation10 + $0xc2c] sm:$0xff]
    %v1295 = vld [vmem:[#allocation10 + $0xc34] sm:$0xff]
    %v1296 = vld [vmem:[#allocation10 + $0xc3c] sm:$0xf]
    %v1297 = vld [vmem:[#allocation11] sm:$0xff]
    %v1299 = vlaneseq
    %v1300 = vshrl.u32 %v1299, 7
    %v1301 = vsub.s32 0, %v1300
    %v1302 = vrot.slane %v1297, %v1301
    %v1303 = vlaneseq
    %v1304 = vshrl.u32 %v1303, 7
    %v1305 = vsub.s32 1, %v1304
    %v1306 = vrot.slane %v1297, %v1305
    %v1307 = vlaneseq
    %v1308 = vshrl.u32 %v1307, 7
    %v1309 = vsub.s32 2, %v1308
    %v1310 = vrot.slane %v1297, %v1309
    %v1311 = vlaneseq
    %v1312 = vshrl.u32 %v1311, 7
    %v1313 = vsub.s32 3, %v1312
    %v1314 = vrot.slane %v1297, %v1313
    %v1315 = vlaneseq
    %v1316 = vshrl.u32 %v1315, 7
    %v1317 = vsub.s32 4, %v1316
    %v1318 = vrot.slane %v1297, %v1317
    %v1319 = vlaneseq
    %v1320 = vshrl.u32 %v1319, 7
    %v1321 = vsub.s32 5, %v1320
    %v1322 = vrot.slane %v1297, %v1321
    %v1323 = vlaneseq
    %v1324 = vshrl.u32 %v1323, 7
    %v1325 = vsub.s32 6, %v1324
    %v1326 = vrot.slane %v1297, %v1325
    %v1782 = vunpack.c.l.b16 %v849
    %v1783 = vunpack.c.h.b16 %v849
    %v1784 = vunpack.c.l.b16 %v850
    %v1785 = vunpack.c.h.b16 %v850
    %v1786 = vunpack.c.l.b16 %v851
    %v1787 = vunpack.c.h.b16 %v851
    %v1788 = vunpack.c.l.b16 %v852
    %v1789 = vunpack.c.l.b16 %v853
    %v1790 = vunpack.c.h.b16 %v853
    %v1791 = vunpack.c.l.b16 %v854
    %v1792 = vunpack.c.h.b16 %v854
    %v1793 = vunpack.c.l.b16 %v855
    %v1794 = vunpack.c.h.b16 %v855
    %v1795 = vunpack.c.l.b16 %v856
    %v1796 = vunpack.c.l.b16 %v857
    %v1797 = vunpack.c.h.b16 %v857
    %v1798 = vunpack.c.l.b16 %v858
    %v1799 = vunpack.c.h.b16 %v858
    %v1800 = vunpack.c.l.b16 %v859
    %v1801 = vunpack.c.h.b16 %v859
    %v1802 = vunpack.c.l.b16 %v860
    %v1803 = vunpack.c.l.b16 %v861
    %v1804 = vunpack.c.h.b16 %v861
    %v1805 = vunpack.c.l.b16 %v862
    %v1806 = vunpack.c.h.b16 %v862
    %v1807 = vunpack.c.l.b16 %v863
    %v1808 = vunpack.c.h.b16 %v863
    %v1809 = vunpack.c.l.b16 %v864
    %v1810 = vunpack.c.l.b16 %v865
    %v1811 = vunpack.c.h.b16 %v865
    %v1812 = vunpack.c.l.b16 %v866
    %v1813 = vunpack.c.h.b16 %v866
    %v1814 = vunpack.c.l.b16 %v867
    %v1815 = vunpack.c.h.b16 %v867
    %v1816 = vunpack.c.l.b16 %v868
    %v1817 = vunpack.c.l.b16 %v869
    %v1818 = vunpack.c.h.b16 %v869
    %v1819 = vunpack.c.l.b16 %v870
    %v1820 = vunpack.c.h.b16 %v870
    %v1821 = vunpack.c.l.b16 %v871
    %v1822 = vunpack.c.h.b16 %v871
    %v1823 = vunpack.c.l.b16 %v872
    %v1824 = vunpack.c.l.b16 %v873
    %v1825 = vunpack.c.h.b16 %v873
    %v1826 = vunpack.c.l.b16 %v874
    %v1827 = vunpack.c.h.b16 %v874
    %v1828 = vunpack.c.l.b16 %v875
    %v1829 = vunpack.c.h.b16 %v875
    %v1830 = vunpack.c.l.b16 %v876
    %v1831 = vunpack.c.l.b16 %v877
    %v1832 = vunpack.c.h.b16 %v877
    %v1833 = vunpack.c.l.b16 %v878
    %v1834 = vunpack.c.h.b16 %v878
    %v1835 = vunpack.c.l.b16 %v879
    %v1836 = vunpack.c.h.b16 %v879
    %v1837 = vunpack.c.l.b16 %v880
    %v1838 = vunpack.c.l.b16 %v881
    %v1839 = vunpack.c.h.b16 %v881
    %v1840 = vunpack.c.l.b16 %v882
    %v1841 = vunpack.c.h.b16 %v882
    %v1842 = vunpack.c.l.b16 %v883
    %v1843 = vunpack.c.h.b16 %v883
    %v1844 = vunpack.c.l.b16 %v884
    %v1845 = vunpack.c.l.b16 %v885
    %v1846 = vunpack.c.h.b16 %v885
    %v1847 = vunpack.c.l.b16 %v886
    %v1848 = vunpack.c.h.b16 %v886
    %v1849 = vunpack.c.l.b16 %v887
    %v1850 = vunpack.c.h.b16 %v887
    %v1851 = vunpack.c.l.b16 %v888
    %v1852 = vunpack.c.l.b16 %v889
    %v1853 = vunpack.c.h.b16 %v889
    %v1854 = vunpack.c.l.b16 %v890
    %v1855 = vunpack.c.h.b16 %v890
    %v1856 = vunpack.c.l.b16 %v891
    %v1857 = vunpack.c.h.b16 %v891
    %v1858 = vunpack.c.l.b16 %v892
    %v1859 = vunpack.c.l.b16 %v893
    %v1860 = vunpack.c.h.b16 %v893
    %v1861 = vunpack.c.l.b16 %v894
    %v1862 = vunpack.c.h.b16 %v894
    %v1863 = vunpack.c.l.b16 %v895
    %v1864 = vunpack.c.h.b16 %v895
    %v1865 = vunpack.c.l.b16 %v896
    %v1866 = vunpack.c.l.b16 %v897
    %v1867 = vunpack.c.h.b16 %v897
    %v1868 = vunpack.c.l.b16 %v898
    %v1869 = vunpack.c.h.b16 %v898
    %v1870 = vunpack.c.l.b16 %v899
    %v1871 = vunpack.c.h.b16 %v899
    %v1872 = vunpack.c.l.b16 %v900
    %v1873 = vunpack.c.l.b16 %v901
    %v1874 = vunpack.c.h.b16 %v901
    %v1875 = vunpack.c.l.b16 %v902
    %v1876 = vunpack.c.h.b16 %v902
    %v1877 = vunpack.c.l.b16 %v903
    %v1878 = vunpack.c.h.b16 %v903
    %v1879 = vunpack.c.l.b16 %v904
    %v1880 = vunpack.c.l.b16 %v905
    %v1881 = vunpack.c.h.b16 %v905
    %v1882 = vunpack.c.l.b16 %v906
    %v1883 = vunpack.c.h.b16 %v906
    %v1884 = vunpack.c.l.b16 %v907
    %v1885 = vunpack.c.h.b16 %v907
    %v1886 = vunpack.c.l.b16 %v908
    %v1887 = vunpack.c.l.b16 %v909
    %v1888 = vunpack.c.h.b16 %v909
    %v1889 = vunpack.c.l.b16 %v910
    %v1890 = vunpack.c.h.b16 %v910
    %v1891 = vunpack.c.l.b16 %v911
    %v1892 = vunpack.c.h.b16 %v911
    %v1893 = vunpack.c.l.b16 %v912
    %v1894 = vunpack.c.l.b16 %v913
    %v1895 = vunpack.c.h.b16 %v913
    %v1896 = vunpack.c.l.b16 %v914
    %v1897 = vunpack.c.h.b16 %v914
    %v1898 = vunpack.c.l.b16 %v915
    %v1899 = vunpack.c.h.b16 %v915
    %v1900 = vunpack.c.l.b16 %v916
    %v1901 = vunpack.c.l.b16 %v917
    %v1902 = vunpack.c.h.b16 %v917
    %v1903 = vunpack.c.l.b16 %v918
    %v1904 = vunpack.c.h.b16 %v918
    %v1905 = vunpack.c.l.b16 %v919
    %v1906 = vunpack.c.h.b16 %v919
    %v1907 = vunpack.c.l.b16 %v920
    %v1908 = vunpack.c.l.b16 %v921
    %v1909 = vunpack.c.h.b16 %v921
    %v1910 = vunpack.c.l.b16 %v922
    %v1911 = vunpack.c.h.b16 %v922
    %v1912 = vunpack.c.l.b16 %v923
    %v1913 = vunpack.c.h.b16 %v923
    %v1914 = vunpack.c.l.b16 %v924
    %v1915 = vunpack.c.l.b16 %v925
    %v1916 = vunpack.c.h.b16 %v925
    %v1917 = vunpack.c.l.b16 %v926
    %v1918 = vunpack.c.h.b16 %v926
    %v1919 = vunpack.c.l.b16 %v927
    %v1920 = vunpack.c.h.b16 %v927
    %v1921 = vunpack.c.l.b16 %v928
    %v1922 = vunpack.c.l.b16 %v929
    %v1923 = vunpack.c.h.b16 %v929
    %v1924 = vunpack.c.l.b16 %v930
    %v1925 = vunpack.c.h.b16 %v930
    %v1926 = vunpack.c.l.b16 %v931
    %v1927 = vunpack.c.h.b16 %v931
    %v1928 = vunpack.c.l.b16 %v932
    %v1929 = vunpack.c.l.b16 %v933
    %v1930 = vunpack.c.h.b16 %v933
    %v1931 = vunpack.c.l.b16 %v934
    %v1932 = vunpack.c.h.b16 %v934
    %v1933 = vunpack.c.l.b16 %v935
    %v1934 = vunpack.c.h.b16 %v935
    %v1935 = vunpack.c.l.b16 %v936
    %v1936 = vunpack.c.l.b16 %v937
    %v1937 = vunpack.c.h.b16 %v937
    %v1938 = vunpack.c.l.b16 %v938
    %v1939 = vunpack.c.h.b16 %v938
    %v1940 = vunpack.c.l.b16 %v939
    %v1941 = vunpack.c.h.b16 %v939
    %v1942 = vunpack.c.l.b16 %v940
    %v1943 = vunpack.c.l.b16 %v941
    %v1944 = vunpack.c.h.b16 %v941
    %v1945 = vunpack.c.l.b16 %v942
    %v1946 = vunpack.c.h.b16 %v942
    %v1947 = vunpack.c.l.b16 %v943
    %v1948 = vunpack.c.h.b16 %v943
    %v1949 = vunpack.c.l.b16 %v944
    %v1950 = vunpack.c.l.b16 %v945
    %v1951 = vunpack.c.h.b16 %v945
    %v1952 = vunpack.c.l.b16 %v946
    %v1953 = vunpack.c.h.b16 %v946
    %v1954 = vunpack.c.l.b16 %v947
    %v1955 = vunpack.c.h.b16 %v947
    %v1956 = vunpack.c.l.b16 %v948
    %v1957 = vunpack.c.l.b16 %v949
    %v1958 = vunpack.c.h.b16 %v949
    %v1959 = vunpack.c.l.b16 %v950
    %v1960 = vunpack.c.h.b16 %v950
    %v1961 = vunpack.c.l.b16 %v951
    %v1962 = vunpack.c.h.b16 %v951
    %v1963 = vunpack.c.l.b16 %v952
    %v1964 = vunpack.c.l.b16 %v953
    %v1965 = vunpack.c.h.b16 %v953
    %v1966 = vunpack.c.l.b16 %v954
    %v1967 = vunpack.c.h.b16 %v954
    %v1968 = vunpack.c.l.b16 %v955
    %v1969 = vunpack.c.h.b16 %v955
    %v1970 = vunpack.c.l.b16 %v956
    %v1971 = vunpack.c.l.b16 %v957
    %v1972 = vunpack.c.h.b16 %v957
    %v1973 = vunpack.c.l.b16 %v958
    %v1974 = vunpack.c.h.b16 %v958
    %v1975 = vunpack.c.l.b16 %v959
    %v1976 = vunpack.c.h.b16 %v959
    %v1977 = vunpack.c.l.b16 %v960
    %v1978 = vunpack.c.l.b16 %v961
    %v1979 = vunpack.c.h.b16 %v961
    %v1980 = vunpack.c.l.b16 %v962
    %v1981 = vunpack.c.h.b16 %v962
    %v1982 = vunpack.c.l.b16 %v963
    %v1983 = vunpack.c.h.b16 %v963
    %v1984 = vunpack.c.l.b16 %v964
    %v1985 = vunpack.c.l.b16 %v965
    %v1986 = vunpack.c.h.b16 %v965
    %v1987 = vunpack.c.l.b16 %v966
    %v1988 = vunpack.c.h.b16 %v966
    %v1989 = vunpack.c.l.b16 %v967
    %v1990 = vunpack.c.h.b16 %v967
    %v1991 = vunpack.c.l.b16 %v968
    %v1992 = vunpack.c.l.b16 %v969
    %v1993 = vunpack.c.h.b16 %v969
    %v1994 = vunpack.c.l.b16 %v970
    %v1995 = vunpack.c.h.b16 %v970
    %v1996 = vunpack.c.l.b16 %v971
    %v1997 = vunpack.c.h.b16 %v971
    %v1998 = vunpack.c.l.b16 %v972
    %v1999 = vunpack.c.l.b16 %v973
    %v2000 = vunpack.c.h.b16 %v973
    %v2001 = vunpack.c.l.b16 %v974
    %v2002 = vunpack.c.h.b16 %v974
    %v2003 = vunpack.c.l.b16 %v975
    %v2004 = vunpack.c.h.b16 %v975
    %v2005 = vunpack.c.l.b16 %v976
    %v2006 = vunpack.c.l.b16 %v977
    %v2007 = vunpack.c.h.b16 %v977
    %v2008 = vunpack.c.l.b16 %v978
    %v2009 = vunpack.c.h.b16 %v978
    %v2010 = vunpack.c.l.b16 %v979
    %v2011 = vunpack.c.h.b16 %v979
    %v2012 = vunpack.c.l.b16 %v980
    %v2013 = vunpack.c.l.b16 %v981
    %v2014 = vunpack.c.h.b16 %v981
    %v2015 = vunpack.c.l.b16 %v982
    %v2016 = vunpack.c.h.b16 %v982
    %v2017 = vunpack.c.l.b16 %v983
    %v2018 = vunpack.c.h.b16 %v983
    %v2019 = vunpack.c.l.b16 %v984
    %v2020 = vunpack.c.l.b16 %v985
    %v2021 = vunpack.c.h.b16 %v985
    %v2022 = vunpack.c.l.b16 %v986
    %v2023 = vunpack.c.h.b16 %v986
    %v2024 = vunpack.c.l.b16 %v987
    %v2025 = vunpack.c.h.b16 %v987
    %v2026 = vunpack.c.l.b16 %v988
    %v2027 = vunpack.c.l.b16 %v989
    %v2028 = vunpack.c.h.b16 %v989
    %v2029 = vunpack.c.l.b16 %v990
    %v2030 = vunpack.c.h.b16 %v990
    %v2031 = vunpack.c.l.b16 %v991
    %v2032 = vunpack.c.h.b16 %v991
    %v2033 = vunpack.c.l.b16 %v992
    %v2034 = vunpack.c.l.b16 %v993
    %v2035 = vunpack.c.h.b16 %v993
    %v2036 = vunpack.c.l.b16 %v994
    %v2037 = vunpack.c.h.b16 %v994
    %v2038 = vunpack.c.l.b16 %v995
    %v2039 = vunpack.c.h.b16 %v995
    %v2040 = vunpack.c.l.b16 %v996
    %v2041 = vunpack.c.l.b16 %v997
    %v2042 = vunpack.c.h.b16 %v997
    %v2043 = vunpack.c.l.b16 %v998
    %v2044 = vunpack.c.h.b16 %v998
    %v2045 = vunpack.c.l.b16 %v999
    %v2046 = vunpack.c.h.b16 %v999
    %v2047 = vunpack.c.l.b16 %v1000
    %v2048 = vunpack.c.l.b16 %v1001
    %v2049 = vunpack.c.h.b16 %v1001
    %v2050 = vunpack.c.l.b16 %v1002
    %v2051 = vunpack.c.h.b16 %v1002
    %v2052 = vunpack.c.l.b16 %v1003
    %v2053 = vunpack.c.h.b16 %v1003
    %v2054 = vunpack.c.l.b16 %v1004
    %v2055 = vunpack.c.l.b16 %v1005
    %v2056 = vunpack.c.h.b16 %v1005
    %v2057 = vunpack.c.l.b16 %v1006
    %v2058 = vunpack.c.h.b16 %v1006
    %v2059 = vunpack.c.l.b16 %v1007
    %v2060 = vunpack.c.h.b16 %v1007
    %v2061 = vunpack.c.l.b16 %v1008
    %v2062 = vunpack.c.l.b16 %v1009
    %v2063 = vunpack.c.h.b16 %v1009
    %v2064 = vunpack.c.l.b16 %v1010
    %v2065 = vunpack.c.h.b16 %v1010
    %v2066 = vunpack.c.l.b16 %v1011
    %v2067 = vunpack.c.h.b16 %v1011
    %v2068 = vunpack.c.l.b16 %v1012
    %v2069 = vunpack.c.l.b16 %v1013
    %v2070 = vunpack.c.h.b16 %v1013
    %v2071 = vunpack.c.l.b16 %v1014
    %v2072 = vunpack.c.h.b16 %v1014
    %v2073 = vunpack.c.l.b16 %v1015
    %v2074 = vunpack.c.h.b16 %v1015
    %v2075 = vunpack.c.l.b16 %v1016
    %v2076 = vunpack.c.l.b16 %v1017
    %v2077 = vunpack.c.h.b16 %v1017
    %v2078 = vunpack.c.l.b16 %v1018
    %v2079 = vunpack.c.h.b16 %v1018
    %v2080 = vunpack.c.l.b16 %v1019
    %v2081 = vunpack.c.h.b16 %v1019
    %v2082 = vunpack.c.l.b16 %v1020
    %v2083 = vunpack.c.l.b16 %v1021
    %v2084 = vunpack.c.h.b16 %v1021
    %v2085 = vunpack.c.l.b16 %v1022
    %v2086 = vunpack.c.h.b16 %v1022
    %v2087 = vunpack.c.l.b16 %v1023
    %v2088 = vunpack.c.h.b16 %v1023
    %v2089 = vunpack.c.l.b16 %v1024
    %v2090 = vunpack.c.l.b16 %v1025
    %v2091 = vunpack.c.h.b16 %v1025
    %v2092 = vunpack.c.l.b16 %v1026
    %v2093 = vunpack.c.h.b16 %v1026
    %v2094 = vunpack.c.l.b16 %v1027
    %v2095 = vunpack.c.h.b16 %v1027
    %v2096 = vunpack.c.l.b16 %v1028
    %v2097 = vunpack.c.l.b16 %v1029
    %v2098 = vunpack.c.h.b16 %v1029
    %v2099 = vunpack.c.l.b16 %v1030
    %v2100 = vunpack.c.h.b16 %v1030
    %v2101 = vunpack.c.l.b16 %v1031
    %v2102 = vunpack.c.h.b16 %v1031
    %v2103 = vunpack.c.l.b16 %v1032
    %v2104 = vunpack.c.l.b16 %v1033
    %v2105 = vunpack.c.h.b16 %v1033
    %v2106 = vunpack.c.l.b16 %v1034
    %v2107 = vunpack.c.h.b16 %v1034
    %v2108 = vunpack.c.l.b16 %v1035
    %v2109 = vunpack.c.h.b16 %v1035
    %v2110 = vunpack.c.l.b16 %v1036
    %v2111 = vunpack.c.l.b16 %v1037
    %v2112 = vunpack.c.h.b16 %v1037
    %v2113 = vunpack.c.l.b16 %v1038
    %v2114 = vunpack.c.h.b16 %v1038
    %v2115 = vunpack.c.l.b16 %v1039
    %v2116 = vunpack.c.h.b16 %v1039
    %v2117 = vunpack.c.l.b16 %v1040
    %v2118 = vunpack.c.l.b16 %v1041
    %v2119 = vunpack.c.h.b16 %v1041
    %v2120 = vunpack.c.l.b16 %v1042
    %v2121 = vunpack.c.h.b16 %v1042
    %v2122 = vunpack.c.l.b16 %v1043
    %v2123 = vunpack.c.h.b16 %v1043
    %v2124 = vunpack.c.l.b16 %v1044
    %v2125 = vunpack.c.l.b16 %v1045
    %v2126 = vunpack.c.h.b16 %v1045
    %v2127 = vunpack.c.l.b16 %v1046
    %v2128 = vunpack.c.h.b16 %v1046
    %v2129 = vunpack.c.l.b16 %v1047
    %v2130 = vunpack.c.h.b16 %v1047
    %v2131 = vunpack.c.l.b16 %v1048
    %v2132 = vunpack.c.l.b16 %v1049
    %v2133 = vunpack.c.h.b16 %v1049
    %v2134 = vunpack.c.l.b16 %v1050
    %v2135 = vunpack.c.h.b16 %v1050
    %v2136 = vunpack.c.l.b16 %v1051
    %v2137 = vunpack.c.h.b16 %v1051
    %v2138 = vunpack.c.l.b16 %v1052
    %v2139 = vunpack.c.l.b16 %v1053
    %v2140 = vunpack.c.h.b16 %v1053
    %v2141 = vunpack.c.l.b16 %v1054
    %v2142 = vunpack.c.h.b16 %v1054
    %v2143 = vunpack.c.l.b16 %v1055
    %v2144 = vunpack.c.h.b16 %v1055
    %v2145 = vunpack.c.l.b16 %v1056
    %v2146 = vunpack.c.l.b16 %v1057
    %v2147 = vunpack.c.h.b16 %v1057
    %v2148 = vunpack.c.l.b16 %v1058
    %v2149 = vunpack.c.h.b16 %v1058
    %v2150 = vunpack.c.l.b16 %v1059
    %v2151 = vunpack.c.h.b16 %v1059
    %v2152 = vunpack.c.l.b16 %v1060
    %v2153 = vunpack.c.l.b16 %v1061
    %v2154 = vunpack.c.h.b16 %v1061
    %v2155 = vunpack.c.l.b16 %v1062
    %v2156 = vunpack.c.h.b16 %v1062
    %v2157 = vunpack.c.l.b16 %v1063
    %v2158 = vunpack.c.h.b16 %v1063
    %v2159 = vunpack.c.l.b16 %v1064
    %v2160 = vunpack.c.l.b16 %v1065
    %v2161 = vunpack.c.h.b16 %v1065
    %v2162 = vunpack.c.l.b16 %v1066
    %v2163 = vunpack.c.h.b16 %v1066
    %v2164 = vunpack.c.l.b16 %v1067
    %v2165 = vunpack.c.h.b16 %v1067
    %v2166 = vunpack.c.l.b16 %v1068
    %v2167 = vunpack.c.l.b16 %v1069
    %v2168 = vunpack.c.h.b16 %v1069
    %v2169 = vunpack.c.l.b16 %v1070
    %v2170 = vunpack.c.h.b16 %v1070
    %v2171 = vunpack.c.l.b16 %v1071
    %v2172 = vunpack.c.h.b16 %v1071
    %v2173 = vunpack.c.l.b16 %v1072
    %v2174 = vunpack.c.l.b16 %v1073
    %v2175 = vunpack.c.h.b16 %v1073
    %v2176 = vunpack.c.l.b16 %v1074
    %v2177 = vunpack.c.h.b16 %v1074
    %v2178 = vunpack.c.l.b16 %v1075
    %v2179 = vunpack.c.h.b16 %v1075
    %v2180 = vunpack.c.l.b16 %v1076
    %v2181 = vunpack.c.l.b16 %v1077
    %v2182 = vunpack.c.h.b16 %v1077
    %v2183 = vunpack.c.l.b16 %v1078
    %v2184 = vunpack.c.h.b16 %v1078
    %v2185 = vunpack.c.l.b16 %v1079
    %v2186 = vunpack.c.h.b16 %v1079
    %v2187 = vunpack.c.l.b16 %v1080
    %v2188 = vunpack.c.l.b16 %v1081
    %v2189 = vunpack.c.h.b16 %v1081
    %v2190 = vunpack.c.l.b16 %v1082
    %v2191 = vunpack.c.h.b16 %v1082
    %v2192 = vunpack.c.l.b16 %v1083
    %v2193 = vunpack.c.h.b16 %v1083
    %v2194 = vunpack.c.l.b16 %v1084
    %v2195 = vunpack.c.l.b16 %v1085
    %v2196 = vunpack.c.h.b16 %v1085
    %v2197 = vunpack.c.l.b16 %v1086
    %v2198 = vunpack.c.h.b16 %v1086
    %v2199 = vunpack.c.l.b16 %v1087
    %v2200 = vunpack.c.h.b16 %v1087
    %v2201 = vunpack.c.l.b16 %v1088
    %v2202 = vunpack.c.l.b16 %v1089
    %v2203 = vunpack.c.h.b16 %v1089
    %v2204 = vunpack.c.l.b16 %v1090
    %v2205 = vunpack.c.h.b16 %v1090
    %v2206 = vunpack.c.l.b16 %v1091
    %v2207 = vunpack.c.h.b16 %v1091
    %v2208 = vunpack.c.l.b16 %v1092
    %v2209 = vunpack.c.l.b16 %v1093
    %v2210 = vunpack.c.h.b16 %v1093
    %v2211 = vunpack.c.l.b16 %v1094
    %v2212 = vunpack.c.h.b16 %v1094
    %v2213 = vunpack.c.l.b16 %v1095
    %v2214 = vunpack.c.h.b16 %v1095
    %v2215 = vunpack.c.l.b16 %v1096
    %v2216 = vunpack.c.l.b16 %v1097
    %v2217 = vunpack.c.h.b16 %v1097
    %v2218 = vunpack.c.l.b16 %v1098
    %v2219 = vunpack.c.h.b16 %v1098
    %v2220 = vunpack.c.l.b16 %v1099
    %v2221 = vunpack.c.h.b16 %v1099
    %v2222 = vunpack.c.l.b16 %v1100
    %v2223 = vunpack.c.l.b16 %v1101
    %v2224 = vunpack.c.h.b16 %v1101
    %v2225 = vunpack.c.l.b16 %v1102
    %v2226 = vunpack.c.h.b16 %v1102
    %v2227 = vunpack.c.l.b16 %v1103
    %v2228 = vunpack.c.h.b16 %v1103
    %v2229 = vunpack.c.l.b16 %v1104
    %v2230 = vunpack.c.l.b16 %v1105
    %v2231 = vunpack.c.h.b16 %v1105
    %v2232 = vunpack.c.l.b16 %v1106
    %v2233 = vunpack.c.h.b16 %v1106
    %v2234 = vunpack.c.l.b16 %v1107
    %v2235 = vunpack.c.h.b16 %v1107
    %v2236 = vunpack.c.l.b16 %v1108
    %v2237 = vunpack.c.l.b16 %v1109
    %v2238 = vunpack.c.h.b16 %v1109
    %v2239 = vunpack.c.l.b16 %v1110
    %v2240 = vunpack.c.h.b16 %v1110
    %v2241 = vunpack.c.l.b16 %v1111
    %v2242 = vunpack.c.h.b16 %v1111
    %v2243 = vunpack.c.l.b16 %v1112
    %v2244 = vunpack.c.l.b16 %v1113
    %v2245 = vunpack.c.h.b16 %v1113
    %v2246 = vunpack.c.l.b16 %v1114
    %v2247 = vunpack.c.h.b16 %v1114
    %v2248 = vunpack.c.l.b16 %v1115
    %v2249 = vunpack.c.h.b16 %v1115
    %v2250 = vunpack.c.l.b16 %v1116
    %v2251 = vunpack.c.l.b16 %v1117
    %v2252 = vunpack.c.h.b16 %v1117
    %v2253 = vunpack.c.l.b16 %v1118
    %v2254 = vunpack.c.h.b16 %v1118
    %v2255 = vunpack.c.l.b16 %v1119
    %v2256 = vunpack.c.h.b16 %v1119
    %v2257 = vunpack.c.l.b16 %v1120
    %v2258 = vunpack.c.l.b16 %v1121
    %v2259 = vunpack.c.h.b16 %v1121
    %v2260 = vunpack.c.l.b16 %v1122
    %v2261 = vunpack.c.h.b16 %v1122
    %v2262 = vunpack.c.l.b16 %v1123
    %v2263 = vunpack.c.h.b16 %v1123
    %v2264 = vunpack.c.l.b16 %v1124
    %v2265 = vunpack.c.l.b16 %v1125
    %v2266 = vunpack.c.h.b16 %v1125
    %v2267 = vunpack.c.l.b16 %v1126
    %v2268 = vunpack.c.h.b16 %v1126
    %v2269 = vunpack.c.l.b16 %v1127
    %v2270 = vunpack.c.h.b16 %v1127
    %v2271 = vunpack.c.l.b16 %v1128
    %v2272 = vunpack.c.l.b16 %v1129
    %v2273 = vunpack.c.h.b16 %v1129
    %v2274 = vunpack.c.l.b16 %v1130
    %v2275 = vunpack.c.h.b16 %v1130
    %v2276 = vunpack.c.l.b16 %v1131
    %v2277 = vunpack.c.h.b16 %v1131
    %v2278 = vunpack.c.l.b16 %v1132
    %v2279 = vunpack.c.l.b16 %v1133
    %v2280 = vunpack.c.h.b16 %v1133
    %v2281 = vunpack.c.l.b16 %v1134
    %v2282 = vunpack.c.h.b16 %v1134
    %v2283 = vunpack.c.l.b16 %v1135
    %v2284 = vunpack.c.h.b16 %v1135
    %v2285 = vunpack.c.l.b16 %v1136
    %v2286 = vunpack.c.l.b16 %v1137
    %v2287 = vunpack.c.h.b16 %v1137
    %v2288 = vunpack.c.l.b16 %v1138
    %v2289 = vunpack.c.h.b16 %v1138
    %v2290 = vunpack.c.l.b16 %v1139
    %v2291 = vunpack.c.h.b16 %v1139
    %v2292 = vunpack.c.l.b16 %v1140
    %v2293 = vunpack.c.l.b16 %v1141
    %v2294 = vunpack.c.h.b16 %v1141
    %v2295 = vunpack.c.l.b16 %v1142
    %v2296 = vunpack.c.h.b16 %v1142
    %v2297 = vunpack.c.l.b16 %v1143
    %v2298 = vunpack.c.h.b16 %v1143
    %v2299 = vunpack.c.l.b16 %v1144
    %v2300 = vunpack.c.l.b16 %v1145
    %v2301 = vunpack.c.h.b16 %v1145
    %v2302 = vunpack.c.l.b16 %v1146
    %v2303 = vunpack.c.h.b16 %v1146
    %v2304 = vunpack.c.l.b16 %v1147
    %v2305 = vunpack.c.h.b16 %v1147
    %v2306 = vunpack.c.l.b16 %v1148
    %v2307 = vunpack.c.l.b16 %v1149
    %v2308 = vunpack.c.h.b16 %v1149
    %v2309 = vunpack.c.l.b16 %v1150
    %v2310 = vunpack.c.h.b16 %v1150
    %v2311 = vunpack.c.l.b16 %v1151
    %v2312 = vunpack.c.h.b16 %v1151
    %v2313 = vunpack.c.l.b16 %v1152
    %v2314 = vunpack.c.l.b16 %v1153
    %v2315 = vunpack.c.h.b16 %v1153
    %v2316 = vunpack.c.l.b16 %v1154
    %v2317 = vunpack.c.h.b16 %v1154
    %v2318 = vunpack.c.l.b16 %v1155
    %v2319 = vunpack.c.h.b16 %v1155
    %v2320 = vunpack.c.l.b16 %v1156
    %v2321 = vunpack.c.l.b16 %v1157
    %v2322 = vunpack.c.h.b16 %v1157
    %v2323 = vunpack.c.l.b16 %v1158
    %v2324 = vunpack.c.h.b16 %v1158
    %v2325 = vunpack.c.l.b16 %v1159
    %v2326 = vunpack.c.h.b16 %v1159
    %v2327 = vunpack.c.l.b16 %v1160
    %v2328 = vunpack.c.l.b16 %v1161
    %v2329 = vunpack.c.h.b16 %v1161
    %v2330 = vunpack.c.l.b16 %v1162
    %v2331 = vunpack.c.h.b16 %v1162
    %v2332 = vunpack.c.l.b16 %v1163
    %v2333 = vunpack.c.h.b16 %v1163
    %v2334 = vunpack.c.l.b16 %v1164
    %v2335 = vunpack.c.l.b16 %v1165
    %v2336 = vunpack.c.h.b16 %v1165
    %v2337 = vunpack.c.l.b16 %v1166
    %v2338 = vunpack.c.h.b16 %v1166
    %v2339 = vunpack.c.l.b16 %v1167
    %v2340 = vunpack.c.h.b16 %v1167
    %v2341 = vunpack.c.l.b16 %v1168
    %v2342 = vunpack.c.l.b16 %v1169
    %v2343 = vunpack.c.h.b16 %v1169
    %v2344 = vunpack.c.l.b16 %v1170
    %v2345 = vunpack.c.h.b16 %v1170
    %v2346 = vunpack.c.l.b16 %v1171
    %v2347 = vunpack.c.h.b16 %v1171
    %v2348 = vunpack.c.l.b16 %v1172
    %v2349 = vunpack.c.l.b16 %v1173
    %v2350 = vunpack.c.h.b16 %v1173
    %v2351 = vunpack.c.l.b16 %v1174
    %v2352 = vunpack.c.h.b16 %v1174
    %v2353 = vunpack.c.l.b16 %v1175
    %v2354 = vunpack.c.h.b16 %v1175
    %v2355 = vunpack.c.l.b16 %v1176
    %v2356 = vunpack.c.l.b16 %v1177
    %v2357 = vunpack.c.h.b16 %v1177
    %v2358 = vunpack.c.l.b16 %v1178
    %v2359 = vunpack.c.h.b16 %v1178
    %v2360 = vunpack.c.l.b16 %v1179
    %v2361 = vunpack.c.h.b16 %v1179
    %v2362 = vunpack.c.l.b16 %v1180
    %v2363 = vunpack.c.l.b16 %v1181
    %v2364 = vunpack.c.h.b16 %v1181
    %v2365 = vunpack.c.l.b16 %v1182
    %v2366 = vunpack.c.h.b16 %v1182
    %v2367 = vunpack.c.l.b16 %v1183
    %v2368 = vunpack.c.h.b16 %v1183
    %v2369 = vunpack.c.l.b16 %v1184
    %v2370 = vunpack.c.l.b16 %v1185
    %v2371 = vunpack.c.h.b16 %v1185
    %v2372 = vunpack.c.l.b16 %v1186
    %v2373 = vunpack.c.h.b16 %v1186
    %v2374 = vunpack.c.l.b16 %v1187
    %v2375 = vunpack.c.h.b16 %v1187
    %v2376 = vunpack.c.l.b16 %v1188
    %v2377 = vunpack.c.l.b16 %v1189
    %v2378 = vunpack.c.h.b16 %v1189
    %v2379 = vunpack.c.l.b16 %v1190
    %v2380 = vunpack.c.h.b16 %v1190
    %v2381 = vunpack.c.l.b16 %v1191
    %v2382 = vunpack.c.h.b16 %v1191
    %v2383 = vunpack.c.l.b16 %v1192
    %v2384 = vunpack.c.l.b16 %v1193
    %v2385 = vunpack.c.h.b16 %v1193
    %v2386 = vunpack.c.l.b16 %v1194
    %v2387 = vunpack.c.h.b16 %v1194
    %v2388 = vunpack.c.l.b16 %v1195
    %v2389 = vunpack.c.h.b16 %v1195
    %v2390 = vunpack.c.l.b16 %v1196
    %v2391 = vunpack.c.l.b16 %v1197
    %v2392 = vunpack.c.h.b16 %v1197
    %v2393 = vunpack.c.l.b16 %v1198
    %v2394 = vunpack.c.h.b16 %v1198
    %v2395 = vunpack.c.l.b16 %v1199
    %v2396 = vunpack.c.h.b16 %v1199
    %v2397 = vunpack.c.l.b16 %v1200
    %v2398 = vunpack.c.l.b16 %v1201
    %v2399 = vunpack.c.h.b16 %v1201
    %v2400 = vunpack.c.l.b16 %v1202
    %v2401 = vunpack.c.h.b16 %v1202
    %v2402 = vunpack.c.l.b16 %v1203
    %v2403 = vunpack.c.h.b16 %v1203
    %v2404 = vunpack.c.l.b16 %v1204
    %v2405 = vunpack.c.l.b16 %v1205
    %v2406 = vunpack.c.h.b16 %v1205
    %v2407 = vunpack.c.l.b16 %v1206
    %v2408 = vunpack.c.h.b16 %v1206
    %v2409 = vunpack.c.l.b16 %v1207
    %v2410 = vunpack.c.h.b16 %v1207
    %v2411 = vunpack.c.l.b16 %v1208
    %v2412 = vunpack.c.l.b16 %v1209
    %v2413 = vunpack.c.h.b16 %v1209
    %v2414 = vunpack.c.l.b16 %v1210
    %v2415 = vunpack.c.h.b16 %v1210
    %v2416 = vunpack.c.l.b16 %v1211
    %v2417 = vunpack.c.h.b16 %v1211
    %v2418 = vunpack.c.l.b16 %v1212
    %v2419 = vunpack.c.l.b16 %v1213
    %v2420 = vunpack.c.h.b16 %v1213
    %v2421 = vunpack.c.l.b16 %v1214
    %v2422 = vunpack.c.h.b16 %v1214
    %v2423 = vunpack.c.l.b16 %v1215
    %v2424 = vunpack.c.h.b16 %v1215
    %v2425 = vunpack.c.l.b16 %v1216
    %v2426 = vunpack.c.l.b16 %v1217
    %v2427 = vunpack.c.h.b16 %v1217
    %v2428 = vunpack.c.l.b16 %v1218
    %v2429 = vunpack.c.h.b16 %v1218
    %v2430 = vunpack.c.l.b16 %v1219
    %v2431 = vunpack.c.h.b16 %v1219
    %v2432 = vunpack.c.l.b16 %v1220
    %v2433 = vunpack.c.l.b16 %v1221
    %v2434 = vunpack.c.h.b16 %v1221
    %v2435 = vunpack.c.l.b16 %v1222
    %v2436 = vunpack.c.h.b16 %v1222
    %v2437 = vunpack.c.l.b16 %v1223
    %v2438 = vunpack.c.h.b16 %v1223
    %v2439 = vunpack.c.l.b16 %v1224
    %v2440 = vunpack.c.l.b16 %v1225
    %v2441 = vunpack.c.h.b16 %v1225
    %v2442 = vunpack.c.l.b16 %v1226
    %v2443 = vunpack.c.h.b16 %v1226
    %v2444 = vunpack.c.l.b16 %v1227
    %v2445 = vunpack.c.h.b16 %v1227
    %v2446 = vunpack.c.l.b16 %v1228
    %v2447 = vunpack.c.l.b16 %v1229
    %v2448 = vunpack.c.h.b16 %v1229
    %v2449 = vunpack.c.l.b16 %v1230
    %v2450 = vunpack.c.h.b16 %v1230
    %v2451 = vunpack.c.l.b16 %v1231
    %v2452 = vunpack.c.h.b16 %v1231
    %v2453 = vunpack.c.l.b16 %v1232
    %v2454 = vunpack.c.l.b16 %v1233
    %v2455 = vunpack.c.h.b16 %v1233
    %v2456 = vunpack.c.l.b16 %v1234
    %v2457 = vunpack.c.h.b16 %v1234
    %v2458 = vunpack.c.l.b16 %v1235
    %v2459 = vunpack.c.h.b16 %v1235
    %v2460 = vunpack.c.l.b16 %v1236
    %v2461 = vunpack.c.l.b16 %v1237
    %v2462 = vunpack.c.h.b16 %v1237
    %v2463 = vunpack.c.l.b16 %v1238
    %v2464 = vunpack.c.h.b16 %v1238
    %v2465 = vunpack.c.l.b16 %v1239
    %v2466 = vunpack.c.h.b16 %v1239
    %v2467 = vunpack.c.l.b16 %v1240
    %v2468 = vunpack.c.l.b16 %v1241
    %v2469 = vunpack.c.h.b16 %v1241
    %v2470 = vunpack.c.l.b16 %v1242
    %v2471 = vunpack.c.h.b16 %v1242
    %v2472 = vunpack.c.l.b16 %v1243
    %v2473 = vunpack.c.h.b16 %v1243
    %v2474 = vunpack.c.l.b16 %v1244
    %v2475 = vunpack.c.l.b16 %v1245
    %v2476 = vunpack.c.h.b16 %v1245
    %v2477 = vunpack.c.l.b16 %v1246
    %v2478 = vunpack.c.h.b16 %v1246
    %v2479 = vunpack.c.l.b16 %v1247
    %v2480 = vunpack.c.h.b16 %v1247
    %v2481 = vunpack.c.l.b16 %v1248
    %v2482 = vunpack.c.l.b16 %v1249
    %v2483 = vunpack.c.h.b16 %v1249
    %v2484 = vunpack.c.l.b16 %v1250
    %v2485 = vunpack.c.h.b16 %v1250
    %v2486 = vunpack.c.l.b16 %v1251
    %v2487 = vunpack.c.h.b16 %v1251
    %v2488 = vunpack.c.l.b16 %v1252
    %v2489 = vunpack.c.l.b16 %v1253
    %v2490 = vunpack.c.h.b16 %v1253
    %v2491 = vunpack.c.l.b16 %v1254
    %v2492 = vunpack.c.h.b16 %v1254
    %v2493 = vunpack.c.l.b16 %v1255
    %v2494 = vunpack.c.h.b16 %v1255
    %v2495 = vunpack.c.l.b16 %v1256
    %v2496 = vunpack.c.l.b16 %v1257
    %v2497 = vunpack.c.h.b16 %v1257
    %v2498 = vunpack.c.l.b16 %v1258
    %v2499 = vunpack.c.h.b16 %v1258
    %v2500 = vunpack.c.l.b16 %v1259
    %v2501 = vunpack.c.h.b16 %v1259
    %v2502 = vunpack.c.l.b16 %v1260
    %v2503 = vunpack.c.l.b16 %v1261
    %v2504 = vunpack.c.h.b16 %v1261
    %v2505 = vunpack.c.l.b16 %v1262
    %v2506 = vunpack.c.h.b16 %v1262
    %v2507 = vunpack.c.l.b16 %v1263
    %v2508 = vunpack.c.h.b16 %v1263
    %v2509 = vunpack.c.l.b16 %v1264
    %v2510 = vunpack.c.l.b16 %v1265
    %v2511 = vunpack.c.h.b16 %v1265
    %v2512 = vunpack.c.l.b16 %v1266
    %v2513 = vunpack.c.h.b16 %v1266
    %v2514 = vunpack.c.l.b16 %v1267
    %v2515 = vunpack.c.h.b16 %v1267
    %v2516 = vunpack.c.l.b16 %v1268
    %v2517 = vunpack.c.l.b16 %v1269
    %v2518 = vunpack.c.h.b16 %v1269
    %v2519 = vunpack.c.l.b16 %v1270
    %v2520 = vunpack.c.h.b16 %v1270
    %v2521 = vunpack.c.l.b16 %v1271
    %v2522 = vunpack.c.h.b16 %v1271
    %v2523 = vunpack.c.l.b16 %v1272
    %v2524 = vunpack.c.l.b16 %v1273
    %v2525 = vunpack.c.h.b16 %v1273
    %v2526 = vunpack.c.l.b16 %v1274
    %v2527 = vunpack.c.h.b16 %v1274
    %v2528 = vunpack.c.l.b16 %v1275
    %v2529 = vunpack.c.h.b16 %v1275
    %v2530 = vunpack.c.l.b16 %v1276
    %v2531 = vunpack.c.l.b16 %v1277
    %v2532 = vunpack.c.h.b16 %v1277
    %v2533 = vunpack.c.l.b16 %v1278
    %v2534 = vunpack.c.h.b16 %v1278
    %v2535 = vunpack.c.l.b16 %v1279
    %v2536 = vunpack.c.h.b16 %v1279
    %v2537 = vunpack.c.l.b16 %v1280
    %v2538 = vunpack.c.l.b16 %v1281
    %v2539 = vunpack.c.h.b16 %v1281
    %v2540 = vunpack.c.l.b16 %v1282
    %v2541 = vunpack.c.h.b16 %v1282
    %v2542 = vunpack.c.l.b16 %v1283
    %v2543 = vunpack.c.h.b16 %v1283
    %v2544 = vunpack.c.l.b16 %v1284
    %v2545 = vunpack.c.l.b16 %v1285
    %v2546 = vunpack.c.h.b16 %v1285
    %v2547 = vunpack.c.l.b16 %v1286
    %v2548 = vunpack.c.h.b16 %v1286
    %v2549 = vunpack.c.l.b16 %v1287
    %v2550 = vunpack.c.h.b16 %v1287
    %v2551 = vunpack.c.l.b16 %v1288
    %v2552 = vunpack.c.l.b16 %v1289
    %v2553 = vunpack.c.h.b16 %v1289
    %v2554 = vunpack.c.l.b16 %v1290
    %v2555 = vunpack.c.h.b16 %v1290
    %v2556 = vunpack.c.l.b16 %v1291
    %v2557 = vunpack.c.h.b16 %v1291
    %v2558 = vunpack.c.l.b16 %v1292
    %v2559 = vunpack.c.l.b16 %v1293
    %v2560 = vunpack.c.h.b16 %v1293
    %v2561 = vunpack.c.l.b16 %v1294
    %v2562 = vunpack.c.h.b16 %v1294
    %v2563 = vunpack.c.l.b16 %v1295
    %v2564 = vunpack.c.h.b16 %v1295
    %v2565 = vunpack.c.l.b16 %v1296
    %v2566 = vpack.c.b16 %v1789, %v1782
    %v2567 = vpack.c.b16 %v1790, %v1783
    %v2568 = vpack.c.b16 %v1791, %v1784
    %v2569 = vpack.c.b16 %v1792, %v1785
    %v2570 = vpack.c.b16 %v1793, %v1786
    %v2571 = vpack.c.b16 %v1794, %v1787
    %v2572 = vpack.c.b16 %v1795, %v1788
    %v2573 = vpack.c.b16 %v1803, %v1796
    %v2574 = vpack.c.b16 %v1804, %v1797
    %v2575 = vpack.c.b16 %v1805, %v1798
    %v2576 = vpack.c.b16 %v1806, %v1799
    %v2577 = vpack.c.b16 %v1807, %v1800
    %v2578 = vpack.c.b16 %v1808, %v1801
    %v2579 = vpack.c.b16 %v1809, %v1802
    %v2580 = vpack.c.b16 %v1817, %v1810
    %v2581 = vpack.c.b16 %v1818, %v1811
    %v2582 = vpack.c.b16 %v1819, %v1812
    %v2583 = vpack.c.b16 %v1820, %v1813
    %v2584 = vpack.c.b16 %v1821, %v1814
    %v2585 = vpack.c.b16 %v1822, %v1815
    %v2586 = vpack.c.b16 %v1823, %v1816
    %v2587 = vpack.c.b16 %v1831, %v1824
    %v2588 = vpack.c.b16 %v1832, %v1825
    %v2589 = vpack.c.b16 %v1833, %v1826
    %v2590 = vpack.c.b16 %v1834, %v1827
    %v2591 = vpack.c.b16 %v1835, %v1828
    %v2592 = vpack.c.b16 %v1836, %v1829
    %v2593 = vpack.c.b16 %v1837, %v1830
    %v2594 = vpack.c.b16 %v1845, %v1838
    %v2595 = vpack.c.b16 %v1846, %v1839
    %v2596 = vpack.c.b16 %v1847, %v1840
    %v2597 = vpack.c.b16 %v1848, %v1841
    %v2598 = vpack.c.b16 %v1849, %v1842
    %v2599 = vpack.c.b16 %v1850, %v1843
    %v2600 = vpack.c.b16 %v1851, %v1844
    %v2601 = vpack.c.b16 %v1859, %v1852
    %v2602 = vpack.c.b16 %v1860, %v1853
    %v2603 = vpack.c.b16 %v1861, %v1854
    %v2604 = vpack.c.b16 %v1862, %v1855
    %v2605 = vpack.c.b16 %v1863, %v1856
    %v2606 = vpack.c.b16 %v1864, %v1857
    %v2607 = vpack.c.b16 %v1865, %v1858
    %v2608 = vpack.c.b16 %v1873, %v1866
    %v2609 = vpack.c.b16 %v1874, %v1867
    %v2610 = vpack.c.b16 %v1875, %v1868
    %v2611 = vpack.c.b16 %v1876, %v1869
    %v2612 = vpack.c.b16 %v1877, %v1870
    %v2613 = vpack.c.b16 %v1878, %v1871
    %v2614 = vpack.c.b16 %v1879, %v1872
    %v2615 = vpack.c.b16 %v1887, %v1880
    %v2616 = vpack.c.b16 %v1888, %v1881
    %v2617 = vpack.c.b16 %v1889, %v1882
    %v2618 = vpack.c.b16 %v1890, %v1883
    %v2619 = vpack.c.b16 %v1891, %v1884
    %v2620 = vpack.c.b16 %v1892, %v1885
    %v2621 = vpack.c.b16 %v1893, %v1886
    %v2622 = vpack.c.b16 %v1901, %v1894
    %v2623 = vpack.c.b16 %v1902, %v1895
    %v2624 = vpack.c.b16 %v1903, %v1896
    %v2625 = vpack.c.b16 %v1904, %v1897
    %v2626 = vpack.c.b16 %v1905, %v1898
    %v2627 = vpack.c.b16 %v1906, %v1899
    %v2628 = vpack.c.b16 %v1907, %v1900
    %v2629 = vpack.c.b16 %v1915, %v1908
    %v2630 = vpack.c.b16 %v1916, %v1909
    %v2631 = vpack.c.b16 %v1917, %v1910
    %v2632 = vpack.c.b16 %v1918, %v1911
    %v2633 = vpack.c.b16 %v1919, %v1912
    %v2634 = vpack.c.b16 %v1920, %v1913
    %v2635 = vpack.c.b16 %v1921, %v1914
    %v2636 = vpack.c.b16 %v1929, %v1922
    %v2637 = vpack.c.b16 %v1930, %v1923
    %v2638 = vpack.c.b16 %v1931, %v1924
    %v2639 = vpack.c.b16 %v1932, %v1925
    %v2640 = vpack.c.b16 %v1933, %v1926
    %v2641 = vpack.c.b16 %v1934, %v1927
    %v2642 = vpack.c.b16 %v1935, %v1928
    %v2643 = vpack.c.b16 %v1943, %v1936
    %v2644 = vpack.c.b16 %v1944, %v1937
    %v2645 = vpack.c.b16 %v1945, %v1938
    %v2646 = vpack.c.b16 %v1946, %v1939
    %v2647 = vpack.c.b16 %v1947, %v1940
    %v2648 = vpack.c.b16 %v1948, %v1941
    %v2649 = vpack.c.b16 %v1949, %v1942
    %v2650 = vpack.c.b16 %v1957, %v1950
    %v2651 = vpack.c.b16 %v1958, %v1951
    %v2652 = vpack.c.b16 %v1959, %v1952
    %v2653 = vpack.c.b16 %v1960, %v1953
    %v2654 = vpack.c.b16 %v1961, %v1954
    %v2655 = vpack.c.b16 %v1962, %v1955
    %v2656 = vpack.c.b16 %v1963, %v1956
    %v2657 = vpack.c.b16 %v1971, %v1964
    %v2658 = vpack.c.b16 %v1972, %v1965
    %v2659 = vpack.c.b16 %v1973, %v1966
    %v2660 = vpack.c.b16 %v1974, %v1967
    %v2661 = vpack.c.b16 %v1975, %v1968
    %v2662 = vpack.c.b16 %v1976, %v1969
    %v2663 = vpack.c.b16 %v1977, %v1970
    %v2664 = vpack.c.b16 %v1985, %v1978
    %v2665 = vpack.c.b16 %v1986, %v1979
    %v2666 = vpack.c.b16 %v1987, %v1980
    %v2667 = vpack.c.b16 %v1988, %v1981
    %v2668 = vpack.c.b16 %v1989, %v1982
    %v2669 = vpack.c.b16 %v1990, %v1983
    %v2670 = vpack.c.b16 %v1991, %v1984
    %v2671 = vpack.c.b16 %v1999, %v1992
    %v2672 = vpack.c.b16 %v2000, %v1993
    %v2673 = vpack.c.b16 %v2001, %v1994
    %v2674 = vpack.c.b16 %v2002, %v1995
    %v2675 = vpack.c.b16 %v2003, %v1996
    %v2676 = vpack.c.b16 %v2004, %v1997
    %v2677 = vpack.c.b16 %v2005, %v1998
    %v2678 = vpack.c.b16 %v2013, %v2006
    %v2679 = vpack.c.b16 %v2014, %v2007
    %v2680 = vpack.c.b16 %v2015, %v2008
    %v2681 = vpack.c.b16 %v2016, %v2009
    %v2682 = vpack.c.b16 %v2017, %v2010
    %v2683 = vpack.c.b16 %v2018, %v2011
    %v2684 = vpack.c.b16 %v2019, %v2012
    %v2685 = vpack.c.b16 %v2027, %v2020
    %v2686 = vpack.c.b16 %v2028, %v2021
    %v2687 = vpack.c.b16 %v2029, %v2022
    %v2688 = vpack.c.b16 %v2030, %v2023
    %v2689 = vpack.c.b16 %v2031, %v2024
    %v2690 = vpack.c.b16 %v2032, %v2025
    %v2691 = vpack.c.b16 %v2033, %v2026
    %v2692 = vpack.c.b16 %v2041, %v2034
    %v2693 = vpack.c.b16 %v2042, %v2035
    %v2694 = vpack.c.b16 %v2043, %v2036
    %v2695 = vpack.c.b16 %v2044, %v2037
    %v2696 = vpack.c.b16 %v2045, %v2038
    %v2697 = vpack.c.b16 %v2046, %v2039
    %v2698 = vpack.c.b16 %v2047, %v2040
    %v2699 = vpack.c.b16 %v2055, %v2048
    %v2700 = vpack.c.b16 %v2056, %v2049
    %v2701 = vpack.c.b16 %v2057, %v2050
    %v2702 = vpack.c.b16 %v2058, %v2051
    %v2703 = vpack.c.b16 %v2059, %v2052
    %v2704 = vpack.c.b16 %v2060, %v2053
    %v2705 = vpack.c.b16 %v2061, %v2054
    %v2706 = vpack.c.b16 %v2069, %v2062
    %v2707 = vpack.c.b16 %v2070, %v2063
    %v2708 = vpack.c.b16 %v2071, %v2064
    %v2709 = vpack.c.b16 %v2072, %v2065
    %v2710 = vpack.c.b16 %v2073, %v2066
    %v2711 = vpack.c.b16 %v2074, %v2067
    %v2712 = vpack.c.b16 %v2075, %v2068
    %v2713 = vpack.c.b16 %v2083, %v2076
    %v2714 = vpack.c.b16 %v2084, %v2077
    %v2715 = vpack.c.b16 %v2085, %v2078
    %v2716 = vpack.c.b16 %v2086, %v2079
    %v2717 = vpack.c.b16 %v2087, %v2080
    %v2718 = vpack.c.b16 %v2088, %v2081
    %v2719 = vpack.c.b16 %v2089, %v2082
    %v2720 = vpack.c.b16 %v2097, %v2090
    %v2721 = vpack.c.b16 %v2098, %v2091
    %v2722 = vpack.c.b16 %v2099, %v2092
    %v2723 = vpack.c.b16 %v2100, %v2093
    %v2724 = vpack.c.b16 %v2101, %v2094
    %v2725 = vpack.c.b16 %v2102, %v2095
    %v2726 = vpack.c.b16 %v2103, %v2096
    %v2727 = vpack.c.b16 %v2111, %v2104
    %v2728 = vpack.c.b16 %v2112, %v2105
    %v2729 = vpack.c.b16 %v2113, %v2106
    %v2730 = vpack.c.b16 %v2114, %v2107
    %v2731 = vpack.c.b16 %v2115, %v2108
    %v2732 = vpack.c.b16 %v2116, %v2109
    %v2733 = vpack.c.b16 %v2117, %v2110
    %v2734 = vpack.c.b16 %v2125, %v2118
    %v2735 = vpack.c.b16 %v2126, %v2119
    %v2736 = vpack.c.b16 %v2127, %v2120
    %v2737 = vpack.c.b16 %v2128, %v2121
    %v2738 = vpack.c.b16 %v2129, %v2122
    %v2739 = vpack.c.b16 %v2130, %v2123
    %v2740 = vpack.c.b16 %v2131, %v2124
    %v2741 = vpack.c.b16 %v2139, %v2132
    %v2742 = vpack.c.b16 %v2140, %v2133
    %v2743 = vpack.c.b16 %v2141, %v2134
    %v2744 = vpack.c.b16 %v2142, %v2135
    %v2745 = vpack.c.b16 %v2143, %v2136
    %v2746 = vpack.c.b16 %v2144, %v2137
    %v2747 = vpack.c.b16 %v2145, %v2138
    %v2748 = vpack.c.b16 %v2153, %v2146
    %v2749 = vpack.c.b16 %v2154, %v2147
    %v2750 = vpack.c.b16 %v2155, %v2148
    %v2751 = vpack.c.b16 %v2156, %v2149
    %v2752 = vpack.c.b16 %v2157, %v2150
    %v2753 = vpack.c.b16 %v2158, %v2151
    %v2754 = vpack.c.b16 %v2159, %v2152
    %v2755 = vpack.c.b16 %v2167, %v2160
    %v2756 = vpack.c.b16 %v2168, %v2161
    %v2757 = vpack.c.b16 %v2169, %v2162
    %v2758 = vpack.c.b16 %v2170, %v2163
    %v2759 = vpack.c.b16 %v2171, %v2164
    %v2760 = vpack.c.b16 %v2172, %v2165
    %v2761 = vpack.c.b16 %v2173, %v2166
    %v2762 = vpack.c.b16 %v2181, %v2174
    %v2763 = vpack.c.b16 %v2182, %v2175
    %v2764 = vpack.c.b16 %v2183, %v2176
    %v2765 = vpack.c.b16 %v2184, %v2177
    %v2766 = vpack.c.b16 %v2185, %v2178
    %v2767 = vpack.c.b16 %v2186, %v2179
    %v2768 = vpack.c.b16 %v2187, %v2180
    %v2769 = vpack.c.b16 %v2195, %v2188
    %v2770 = vpack.c.b16 %v2196, %v2189
    %v2771 = vpack.c.b16 %v2197, %v2190
    %v2772 = vpack.c.b16 %v2198, %v2191
    %v2773 = vpack.c.b16 %v2199, %v2192
    %v2774 = vpack.c.b16 %v2200, %v2193
    %v2775 = vpack.c.b16 %v2201, %v2194
    %v2776 = vpack.c.b16 %v2209, %v2202
    %v2777 = vpack.c.b16 %v2210, %v2203
    %v2778 = vpack.c.b16 %v2211, %v2204
    %v2779 = vpack.c.b16 %v2212, %v2205
    %v2780 = vpack.c.b16 %v2213, %v2206
    %v2781 = vpack.c.b16 %v2214, %v2207
    %v2782 = vpack.c.b16 %v2215, %v2208
    %v2783 = vpack.c.b16 %v2223, %v2216
    %v2784 = vpack.c.b16 %v2224, %v2217
    %v2785 = vpack.c.b16 %v2225, %v2218
    %v2786 = vpack.c.b16 %v2226, %v2219
    %v2787 = vpack.c.b16 %v2227, %v2220
    %v2788 = vpack.c.b16 %v2228, %v2221
    %v2789 = vpack.c.b16 %v2229, %v2222
    %v2790 = vpack.c.b16 %v2237, %v2230
    %v2791 = vpack.c.b16 %v2238, %v2231
    %v2792 = vpack.c.b16 %v2239, %v2232
    %v2793 = vpack.c.b16 %v2240, %v2233
    %v2794 = vpack.c.b16 %v2241, %v2234
    %v2795 = vpack.c.b16 %v2242, %v2235
    %v2796 = vpack.c.b16 %v2243, %v2236
    %v2797 = vpack.c.b16 %v2251, %v2244
    %v2798 = vpack.c.b16 %v2252, %v2245
    %v2799 = vpack.c.b16 %v2253, %v2246
    %v2800 = vpack.c.b16 %v2254, %v2247
    %v2801 = vpack.c.b16 %v2255, %v2248
    %v2802 = vpack.c.b16 %v2256, %v2249
    %v2803 = vpack.c.b16 %v2257, %v2250
    %v2804 = vpack.c.b16 %v2265, %v2258
    %v2805 = vpack.c.b16 %v2266, %v2259
    %v2806 = vpack.c.b16 %v2267, %v2260
    %v2807 = vpack.c.b16 %v2268, %v2261
    %v2808 = vpack.c.b16 %v2269, %v2262
    %v2809 = vpack.c.b16 %v2270, %v2263
    %v2810 = vpack.c.b16 %v2271, %v2264
    %v2811 = vpack.c.b16 %v2279, %v2272
    %v2812 = vpack.c.b16 %v2280, %v2273
    %v2813 = vpack.c.b16 %v2281, %v2274
    %v2814 = vpack.c.b16 %v2282, %v2275
    %v2815 = vpack.c.b16 %v2283, %v2276
    %v2816 = vpack.c.b16 %v2284, %v2277
    %v2817 = vpack.c.b16 %v2285, %v2278
    %v2818 = vpack.c.b16 %v2293, %v2286
    %v2819 = vpack.c.b16 %v2294, %v2287
    %v2820 = vpack.c.b16 %v2295, %v2288
    %v2821 = vpack.c.b16 %v2296, %v2289
    %v2822 = vpack.c.b16 %v2297, %v2290
    %v2823 = vpack.c.b16 %v2298, %v2291
    %v2824 = vpack.c.b16 %v2299, %v2292
    %v2825 = vpack.c.b16 %v2307, %v2300
    %v2826 = vpack.c.b16 %v2308, %v2301
    %v2827 = vpack.c.b16 %v2309, %v2302
    %v2828 = vpack.c.b16 %v2310, %v2303
    %v2829 = vpack.c.b16 %v2311, %v2304
    %v2830 = vpack.c.b16 %v2312, %v2305
    %v2831 = vpack.c.b16 %v2313, %v2306
    %v2832 = vpack.c.b16 %v2321, %v2314
    %v2833 = vpack.c.b16 %v2322, %v2315
    %v2834 = vpack.c.b16 %v2323, %v2316
    %v2835 = vpack.c.b16 %v2324, %v2317
    %v2836 = vpack.c.b16 %v2325, %v2318
    %v2837 = vpack.c.b16 %v2326, %v2319
    %v2838 = vpack.c.b16 %v2327, %v2320
    %v2839 = vpack.c.b16 %v2335, %v2328
    %v2840 = vpack.c.b16 %v2336, %v2329
    %v2841 = vpack.c.b16 %v2337, %v2330
    %v2842 = vpack.c.b16 %v2338, %v2331
    %v2843 = vpack.c.b16 %v2339, %v2332
    %v2844 = vpack.c.b16 %v2340, %v2333
    %v2845 = vpack.c.b16 %v2341, %v2334
    %v2846 = vpack.c.b16 %v2349, %v2342
    %v2847 = vpack.c.b16 %v2350, %v2343
    %v2848 = vpack.c.b16 %v2351, %v2344
    %v2849 = vpack.c.b16 %v2352, %v2345
    %v2850 = vpack.c.b16 %v2353, %v2346
    %v2851 = vpack.c.b16 %v2354, %v2347
    %v2852 = vpack.c.b16 %v2355, %v2348
    %v2853 = vpack.c.b16 %v2363, %v2356
    %v2854 = vpack.c.b16 %v2364, %v2357
    %v2855 = vpack.c.b16 %v2365, %v2358
    %v2856 = vpack.c.b16 %v2366, %v2359
    %v2857 = vpack.c.b16 %v2367, %v2360
    %v2858 = vpack.c.b16 %v2368, %v2361
    %v2859 = vpack.c.b16 %v2369, %v2362
    %v2860 = vpack.c.b16 %v2377, %v2370
    %v2861 = vpack.c.b16 %v2378, %v2371
    %v2862 = vpack.c.b16 %v2379, %v2372
    %v2863 = vpack.c.b16 %v2380, %v2373
    %v2864 = vpack.c.b16 %v2381, %v2374
    %v2865 = vpack.c.b16 %v2382, %v2375
    %v2866 = vpack.c.b16 %v2383, %v2376
    %v2867 = vpack.c.b16 %v2391, %v2384
    %v2868 = vpack.c.b16 %v2392, %v2385
    %v2869 = vpack.c.b16 %v2393, %v2386
    %v2870 = vpack.c.b16 %v2394, %v2387
    %v2871 = vpack.c.b16 %v2395, %v2388
    %v2872 = vpack.c.b16 %v2396, %v2389
    %v2873 = vpack.c.b16 %v2397, %v2390
    %v2874 = vpack.c.b16 %v2405, %v2398
    %v2875 = vpack.c.b16 %v2406, %v2399
    %v2876 = vpack.c.b16 %v2407, %v2400
    %v2877 = vpack.c.b16 %v2408, %v2401
    %v2878 = vpack.c.b16 %v2409, %v2402
    %v2879 = vpack.c.b16 %v2410, %v2403
    %v2880 = vpack.c.b16 %v2411, %v2404
    %v2881 = vpack.c.b16 %v2419, %v2412
    %v2882 = vpack.c.b16 %v2420, %v2413
    %v2883 = vpack.c.b16 %v2421, %v2414
    %v2884 = vpack.c.b16 %v2422, %v2415
    %v2885 = vpack.c.b16 %v2423, %v2416
    %v2886 = vpack.c.b16 %v2424, %v2417
    %v2887 = vpack.c.b16 %v2425, %v2418
    %v2888 = vpack.c.b16 %v2433, %v2426
    %v2889 = vpack.c.b16 %v2434, %v2427
    %v2890 = vpack.c.b16 %v2435, %v2428
    %v2891 = vpack.c.b16 %v2436, %v2429
    %v2892 = vpack.c.b16 %v2437, %v2430
    %v2893 = vpack.c.b16 %v2438, %v2431
    %v2894 = vpack.c.b16 %v2439, %v2432
    %v2895 = vpack.c.b16 %v2447, %v2440
    %v2896 = vpack.c.b16 %v2448, %v2441
    %v2897 = vpack.c.b16 %v2449, %v2442
    %v2898 = vpack.c.b16 %v2450, %v2443
    %v2899 = vpack.c.b16 %v2451, %v2444
    %v2900 = vpack.c.b16 %v2452, %v2445
    %v2901 = vpack.c.b16 %v2453, %v2446
    %v2902 = vpack.c.b16 %v2461, %v2454
    %v2903 = vpack.c.b16 %v2462, %v2455
    %v2904 = vpack.c.b16 %v2463, %v2456
    %v2905 = vpack.c.b16 %v2464, %v2457
    %v2906 = vpack.c.b16 %v2465, %v2458
    %v2907 = vpack.c.b16 %v2466, %v2459
    %v2908 = vpack.c.b16 %v2467, %v2460
    %v2909 = vpack.c.b16 %v2475, %v2468
    %v2910 = vpack.c.b16 %v2476, %v2469
    %v2911 = vpack.c.b16 %v2477, %v2470
    %v2912 = vpack.c.b16 %v2478, %v2471
    %v2913 = vpack.c.b16 %v2479, %v2472
    %v2914 = vpack.c.b16 %v2480, %v2473
    %v2915 = vpack.c.b16 %v2481, %v2474
    %v2916 = vpack.c.b16 %v2489, %v2482
    %v2917 = vpack.c.b16 %v2490, %v2483
    %v2918 = vpack.c.b16 %v2491, %v2484
    %v2919 = vpack.c.b16 %v2492, %v2485
    %v2920 = vpack.c.b16 %v2493, %v2486
    %v2921 = vpack.c.b16 %v2494, %v2487
    %v2922 = vpack.c.b16 %v2495, %v2488
    %v2923 = vpack.c.b16 %v2503, %v2496
    %v2924 = vpack.c.b16 %v2504, %v2497
    %v2925 = vpack.c.b16 %v2505, %v2498
    %v2926 = vpack.c.b16 %v2506, %v2499
    %v2927 = vpack.c.b16 %v2507, %v2500
    %v2928 = vpack.c.b16 %v2508, %v2501
    %v2929 = vpack.c.b16 %v2509, %v2502
    %v2930 = vpack.c.b16 %v2517, %v2510
    %v2931 = vpack.c.b16 %v2518, %v2511
    %v2932 = vpack.c.b16 %v2519, %v2512
    %v2933 = vpack.c.b16 %v2520, %v2513
    %v2934 = vpack.c.b16 %v2521, %v2514
    %v2935 = vpack.c.b16 %v2522, %v2515
    %v2936 = vpack.c.b16 %v2523, %v2516
    %v2937 = vpack.c.b16 %v2531, %v2524
    %v2938 = vpack.c.b16 %v2532, %v2525
    %v2939 = vpack.c.b16 %v2533, %v2526
    %v2940 = vpack.c.b16 %v2534, %v2527
    %v2941 = vpack.c.b16 %v2535, %v2528
    %v2942 = vpack.c.b16 %v2536, %v2529
    %v2943 = vpack.c.b16 %v2537, %v2530
    %v2944 = vpack.c.b16 %v2545, %v2538
    %v2945 = vpack.c.b16 %v2546, %v2539
    %v2946 = vpack.c.b16 %v2547, %v2540
    %v2947 = vpack.c.b16 %v2548, %v2541
    %v2948 = vpack.c.b16 %v2549, %v2542
    %v2949 = vpack.c.b16 %v2550, %v2543
    %v2950 = vpack.c.b16 %v2551, %v2544
    %v2951 = vpack.c.b16 %v2559, %v2552
    %v2952 = vpack.c.b16 %v2560, %v2553
    %v2953 = vpack.c.b16 %v2561, %v2554
    %v2954 = vpack.c.b16 %v2562, %v2555
    %v2955 = vpack.c.b16 %v2563, %v2556
    %v2956 = vpack.c.b16 %v2564, %v2557
    %v2957 = vpack.c.b16 %v2565, %v2558
    %3350 = vmatprep.subr.bf16.mxu0 %v2567
    %3351 = vmatpush1.bf16.msra.mxu0 %v2566
    %3352 = vmatprep.subr.bf16.mxu0 %v2574
    %3353 = vmatpush1.bf16.msra.mxu0 %v2573
    %3354 = vmatprep.subr.bf16.mxu0 %v2581
    %3355 = vmatpush1.bf16.msra.mxu0 %v2580
    %3356 = vmatprep.subr.bf16.mxu0 %v2588
    %3357 = vmatpush1.bf16.msra.mxu0 %v2587
    %3358 = vmatprep.subr.bf16.mxu0 %v2595
    %3359 = vmatpush1.bf16.msra.mxu0 %v2594
    %3360 = vmatprep.subr.bf16.mxu0 %v2602
    %3361 = vmatpush1.bf16.msra.mxu0 %v2601
    %3362 = vmatprep.subr.bf16.mxu0 %v2609
    %3363 = vmatpush1.bf16.msra.mxu0 %v2608
    %3364 = vmatprep.subr.bf16.mxu0 %v2616
    %3365 = vmatpush1.bf16.msra.mxu0 %v2615
    %3366 = vmatprep.subr.bf16.mxu0 %v2623
    %3367 = vmatpush1.bf16.msra.mxu0 %v2622
    %3368 = vmatprep.subr.bf16.mxu0 %v2630
    %3369 = vmatpush1.bf16.msra.mxu0 %v2629
    %3370 = vmatprep.subr.bf16.mxu0 %v2637
    %3371 = vmatpush1.bf16.msra.mxu0 %v2636
    %3372 = vmatprep.subr.bf16.mxu0 %v2644
    %3373 = vmatpush1.bf16.msra.mxu0 %v2643
    %3374 = vmatprep.subr.bf16.mxu0 %v2651
    %3375 = vmatpush1.bf16.msra.mxu0 %v2650
    %3376 = vmatprep.subr.bf16.mxu0 %v2658
    %3377 = vmatpush1.bf16.msra.mxu0 %v2657
    %3378 = vmatprep.subr.bf16.mxu0 %v2665
    %3379 = vmatpush1.bf16.msra.mxu0 %v2664
    %3380 = vmatprep.subr.bf16.mxu0 %v2672
    %3381 = vmatpush1.bf16.msra.mxu0 %v2671
    %3382 = vmatprep.mubr.bf16.mxu0 %v843
    %3383 = vmatmul.mubr.bf16.gmra.mrb[0].mxu0 %v842
    %v3384 = vpop.f32.mrb[0].mxu0
    %v3385 = vadd.f32 %v1302, %v3384
    %v3386 = vpop.f32.mrb[0].mxu0
    %v3387 = vadd.f32 %v1306, %v3386
    %v3388 = vpop.f32.mrb[0].mxu0
    %v3389 = vpop.f32.mrb[0].mxu0
    %3390 = vdwg.mxu0
    %3391 = vmatprep.subr.bf16.mxu0 %v2679
    %3392 = vmatpush1.bf16.msra.mxu0 %v2678
    %3393 = vmatprep.subr.bf16.mxu0 %v2686
    %3394 = vmatpush1.bf16.msra.mxu0 %v2685
    %3395 = vmatprep.subr.bf16.mxu0 %v2693
    %3396 = vmatpush1.bf16.msra.mxu0 %v2692
    %3397 = vmatprep.subr.bf16.mxu0 %v2700
    %3398 = vmatpush1.bf16.msra.mxu0 %v2699
    %3399 = vmatprep.subr.bf16.mxu0 %v2707
    %3400 = vmatpush1.bf16.msra.mxu0 %v2706
    %3401 = vmatprep.subr.bf16.mxu0 %v2714
    %3402 = vmatpush1.bf16.msra.mxu0 %v2713
    %3403 = vmatprep.subr.bf16.mxu0 %v2721
    %3404 = vmatpush1.bf16.msra.mxu0 %v2720
    %3405 = vmatprep.subr.bf16.mxu0 %v2728
    %3406 = vmatpush1.bf16.msra.mxu0 %v2727
    %3407 = vmatprep.subr.bf16.mxu0 %v2735
    %3408 = vmatpush1.bf16.msra.mxu0 %v2734
    %3409 = vmatprep.subr.bf16.mxu0 %v2742
    %3410 = vmatpush1.bf16.msra.mxu0 %v2741
    %3411 = vmatprep.subr.bf16.mxu0 %v2749
    %3412 = vmatpush1.bf16.msra.mxu0 %v2748
    %3413 = vmatprep.subr.bf16.mxu0 %v2756
    %3414 = vmatpush1.bf16.msra.mxu0 %v2755
    %3415 = vmatprep.subr.bf16.mxu0 %v2763
    %3416 = vmatpush1.bf16.msra.mxu0 %v2762
    %3417 = vmatprep.subr.bf16.mxu0 %v2770
    %3418 = vmatpush1.bf16.msra.mxu0 %v2769
    %3419 = vmatprep.subr.bf16.mxu0 %v2777
    %3420 = vmatpush1.bf16.msra.mxu0 %v2776
    %3421 = vmatprep.subr.bf16.mxu0 %v2784
    %3422 = vmatpush1.bf16.msra.mxu0 %v2783
    %3423 = vmatprep.mubr.bf16.mxu0 %v845
    %3424 = vmatmul.mubr.bf16.gmra.mrb[0].mxu0 %v844
    %v3425 = vpop.f32.mrb[0].mxu0
    %v3426 = vadd.f32 %v3385, %v3425
    %v3427 = vpop.f32.mrb[0].mxu0
    %v3428 = vadd.f32 %v3387, %v3427
    %v3429 = vpop.f32.mrb[0].mxu0
    %v3430 = vpop.f32.mrb[0].mxu0
    %3431 = vdwg.mxu0
    %3432 = vmatprep.subr.bf16.mxu0 %v2791
    %3433 = vmatpush1.bf16.msra.mxu0 %v2790
    %3434 = vmatprep.subr.bf16.mxu0 %v2798
    %3435 = vmatpush1.bf16.msra.mxu0 %v2797
    %3436 = vmatprep.subr.bf16.mxu0 %v2805
    %3437 = vmatpush1.bf16.msra.mxu0 %v2804
    %3438 = vmatprep.subr.bf16.mxu0 %v2812
    %3439 = vmatpush1.bf16.msra.mxu0 %v2811
    %3440 = vmatprep.subr.bf16.mxu0 %v2819
    %3441 = vmatpush1.bf16.msra.mxu0 %v2818
    %3442 = vmatprep.subr.bf16.mxu0 %v2826
    %3443 = vmatpush1.bf16.msra.mxu0 %v2825
    %3444 = vmatprep.subr.bf16.mxu0 %v2833
    %3445 = vmatpush1.bf16.msra.mxu0 %v2832
    %3446 = vmatprep.subr.bf16.mxu0 %v2840
    %3447 = vmatpush1.bf16.msra.mxu0 %v2839
    %3448 = vmatprep.subr.bf16.mxu0 %v2847
    %3449 = vmatpush1.bf16.msra.mxu0 %v2846
    %3450 = vmatprep.subr.bf16.mxu0 %v2854
    %3451 = vmatpush1.bf16.msra.mxu0 %v2853
    %3452 = vmatprep.subr.bf16.mxu0 %v2861
    %3453 = vmatpush1.bf16.msra.mxu0 %v2860
    %3454 = vmatprep.subr.bf16.mxu0 %v2868
    %3455 = vmatpush1.bf16.msra.mxu0 %v2867
    %3456 = vmatprep.subr.bf16.mxu0 %v2875
    %3457 = vmatpush1.bf16.msra.mxu0 %v2874
    %3458 = vmatprep.subr.bf16.mxu0 %v2882
    %3459 = vmatpush1.bf16.msra.mxu0 %v2881
    %3460 = vmatprep.subr.bf16.mxu0 %v2889
    %3461 = vmatpush1.bf16.msra.mxu0 %v2888
    %3462 = vmatprep.subr.bf16.mxu0 %v2896
    %3463 = vmatpush1.bf16.msra.mxu0 %v2895
    %3464 = vmatprep.mubr.bf16.mxu0 %v847
    %3465 = vmatmul.mubr.bf16.gmra.mrb[0].mxu0 %v846
    %v3466 = vpop.f32.mrb[0].mxu0
    %v3467 = vadd.f32 %v3426, %v3466
    %v3468 = vpop.f32.mrb[0].mxu0
    %v3469 = vadd.f32 %v3428, %v3468
    %v3470 = vpop.f32.mrb[0].mxu0
    %v3471 = vpop.f32.mrb[0].mxu0
    %3472 = vdwg.mxu0
    %3473 = vmatprep.subr.bf16.mxu0 %v2903
    %3474 = vmatpush1.bf16.msra.mxu0 %v2902
    %3475 = vmatprep.subr.bf16.mxu0 %v2910
    %3476 = vmatpush1.bf16.msra.mxu0 %v2909
    %3477 = vmatprep.subr.bf16.mxu0 %v2917
    %3478 = vmatpush1.bf16.msra.mxu0 %v2916
    %3479 = vmatprep.subr.bf16.mxu0 %v2924
    %3480 = vmatpush1.bf16.msra.mxu0 %v2923
    %3481 = vmatprep.subr.bf16.mxu0 %v2931
    %3482 = vmatpush1.bf16.msra.mxu0 %v2930
    %3483 = vmatprep.subr.bf16.mxu0 %v2938
    %3484 = vmatpush1.bf16.msra.mxu0 %v2937
    %3485 = vmatprep.subr.bf16.mxu0 %v2945
    %3486 = vmatpush1.bf16.msra.mxu0 %v2944
    %3487 = vmatprep.subr.bf16.mxu0 %v2952
    %3488 = vmatpush1.bf16.msra.mxu0 %v2951
    %3489 = vmatprep.subr.bf16.mxu0 0
    %3490 = vmatpush1.bf16.msra.mxu0 0
    %3491 = vmatprep.subr.bf16.mxu0 0
    %3492 = vmatpush1.bf16.msra.mxu0 0
    %3493 = vmatprep.subr.bf16.mxu0 0
    %3494 = vmatpush1.bf16.msra.mxu0 0
    %3495 = vmatprep.subr.bf16.mxu0 0
    %3496 = vmatpush1.bf16.msra.mxu0 0
    %3497 = vmatprep.subr.bf16.mxu0 0
    %3498 = vmatpush1.bf16.msra.mxu0 0
    %3499 = vmatprep.subr.bf16.mxu0 0
    %3500 = vmatpush1.bf16.msra.mxu0 0
    %3501 = vmatprep.subr.bf16.mxu0 0
    %3502 = vmatpush1.bf16.msra.mxu0 0
    %3503 = vmatprep.subr.bf16.mxu0 0
    %3504 = vmatpush1.bf16.msra.mxu0 0
    %3505 = vmatprep.mubr.bf16.mxu0 0
    %3506 = vmatmul.mubr.bf16.gmra.mrb[0].mxu0 %v848
    %v3507 = vpop.f32.mrb[0].mxu0
    %v3508 = vadd.f32 %v3467, %v3507
    %v3509 = vpop.f32.mrb[0].mxu0
    %v3510 = vadd.f32 %v3469, %v3509
    %v3511 = vpop.f32.mrb[0].mxu0
    %v3512 = vpop.f32.mrb[0].mxu0
    %3513 = vdwg.mxu0
    %3514 = vmatprep.subr.bf16.mxu0 %v2569
    %3515 = vmatpush1.bf16.msra.mxu0 %v2568
    %3516 = vmatprep.subr.bf16.mxu0 %v2576
    %3517 = vmatpush1.bf16.msra.mxu0 %v2575
    %3518 = vmatprep.subr.bf16.mxu0 %v2583
    %3519 = vmatpush1.bf16.msra.mxu0 %v2582
    %3520 = vmatprep.subr.bf16.mxu0 %v2590
    %3521 = vmatpush1.bf16.msra.mxu0 %v2589
    %3522 = vmatprep.subr.bf16.mxu0 %v2597
    %3523 = vmatpush1.bf16.msra.mxu0 %v2596
    %3524 = vmatprep.subr.bf16.mxu0 %v2604
    %3525 = vmatpush1.bf16.msra.mxu0 %v2603
    %3526 = vmatprep.subr.bf16.mxu0 %v2611
    %3527 = vmatpush1.bf16.msra.mxu0 %v2610
    %3528 = vmatprep.subr.bf16.mxu0 %v2618
    %3529 = vmatpush1.bf16.msra.mxu0 %v2617
    %3530 = vmatprep.subr.bf16.mxu0 %v2625
    %3531 = vmatpush1.bf16.msra.mxu0 %v2624
    %3532 = vmatprep.subr.bf16.mxu0 %v2632
    %3533 = vmatpush1.bf16.msra.mxu0 %v2631
    %3534 = vmatprep.subr.bf16.mxu0 %v2639
    %3535 = vmatpush1.bf16.msra.mxu0 %v2638
    %3536 = vmatprep.subr.bf16.mxu0 %v2646
    %3537 = vmatpush1.bf16.msra.mxu0 %v2645
    %3538 = vmatprep.subr.bf16.mxu0 %v2653
    %3539 = vmatpush1.bf16.msra.mxu0 %v2652
    %3540 = vmatprep.subr.bf16.mxu0 %v2660
    %3541 = vmatpush1.bf16.msra.mxu0 %v2659
    %3542 = vmatprep.subr.bf16.mxu0 %v2667
    %3543 = vmatpush1.bf16.msra.mxu0 %v2666
    %3544 = vmatprep.subr.bf16.mxu0 %v2674
    %3545 = vmatpush1.bf16.msra.mxu0 %v2673
    %3546 = vmatprep.mubr.bf16.mxu0 %v843
    %3547 = vmatmul.mubr.bf16.gmra.mrb[0].mxu0 %v842
    %v3548 = vpop.f32.mrb[0].mxu0
    %v3549 = vadd.f32 %v1310, %v3548
    %v3550 = vpop.f32.mrb[0].mxu0
    %v3551 = vadd.f32 %v1314, %v3550
    %v3552 = vpop.f32.mrb[0].mxu0
    %v3553 = vpop.f32.mrb[0].mxu0
    %3554 = vdwg.mxu0
    %3555 = vmatprep.subr.bf16.mxu0 %v2681
    %3556 = vmatpush1.bf16.msra.mxu0 %v2680
    %3557 = vmatprep.subr.bf16.mxu0 %v2688
    %3558 = vmatpush1.bf16.msra.mxu0 %v2687
    %3559 = vmatprep.subr.bf16.mxu0 %v2695
    %3560 = vmatpush1.bf16.msra.mxu0 %v2694
    %3561 = vmatprep.subr.bf16.mxu0 %v2702
    %3562 = vmatpush1.bf16.msra.mxu0 %v2701
    %3563 = vmatprep.subr.bf16.mxu0 %v2709
    %3564 = vmatpush1.bf16.msra.mxu0 %v2708
    %3565 = vmatprep.subr.bf16.mxu0 %v2716
    %3566 = vmatpush1.bf16.msra.mxu0 %v2715
    %3567 = vmatprep.subr.bf16.mxu0 %v2723
    %3568 = vmatpush1.bf16.msra.mxu0 %v2722
    %3569 = vmatprep.subr.bf16.mxu0 %v2730
    %3570 = vmatpush1.bf16.msra.mxu0 %v2729
    %3571 = vmatprep.subr.bf16.mxu0 %v2737
    %3572 = vmatpush1.bf16.msra.mxu0 %v2736
    %3573 = vmatprep.subr.bf16.mxu0 %v2744
    %3574 = vmatpush1.bf16.msra.mxu0 %v2743
    %3575 = vmatprep.subr.bf16.mxu0 %v2751
    %3576 = vmatpush1.bf16.msra.mxu0 %v2750
    %3577 = vmatprep.subr.bf16.mxu0 %v2758
    %3578 = vmatpush1.bf16.msra.mxu0 %v2757
    %3579 = vmatprep.subr.bf16.mxu0 %v2765
    %3580 = vmatpush1.bf16.msra.mxu0 %v2764
    %3581 = vmatprep.subr.bf16.mxu0 %v2772
    %3582 = vmatpush1.bf16.msra.mxu0 %v2771
    %3583 = vmatprep.subr.bf16.mxu0 %v2779
    %3584 = vmatpush1.bf16.msra.mxu0 %v2778
    %3585 = vmatprep.subr.bf16.mxu0 %v2786
    %3586 = vmatpush1.bf16.msra.mxu0 %v2785
    %3587 = vmatprep.mubr.bf16.mxu0 %v845
    %3588 = vmatmul.mubr.bf16.gmra.mrb[0].mxu0 %v844
    %v3589 = vpop.f32.mrb[0].mxu0
    %v3590 = vadd.f32 %v3549, %v3589
    %v3591 = vpop.f32.mrb[0].mxu0
    %v3592 = vadd.f32 %v3551, %v3591
    %v3593 = vpop.f32.mrb[0].mxu0
    %v3594 = vpop.f32.mrb[0].mxu0
    %3595 = vdwg.mxu0
    %3596 = vmatprep.subr.bf16.mxu0 %v2793
    %3597 = vmatpush1.bf16.msra.mxu0 %v2792
    %3598 = vmatprep.subr.bf16.mxu0 %v2800
    %3599 = vmatpush1.bf16.msra.mxu0 %v2799
    %3600 = vmatprep.subr.bf16.mxu0 %v2807
    %3601 = vmatpush1.bf16.msra.mxu0 %v2806
    %3602 = vmatprep.subr.bf16.mxu0 %v2814
    %3603 = vmatpush1.bf16.msra.mxu0 %v2813
    %3604 = vmatprep.subr.bf16.mxu0 %v2821
    %3605 = vmatpush1.bf16.msra.mxu0 %v2820
    %3606 = vmatprep.subr.bf16.mxu0 %v2828
    %3607 = vmatpush1.bf16.msra.mxu0 %v2827
    %3608 = vmatprep.subr.bf16.mxu0 %v2835
    %3609 = vmatpush1.bf16.msra.mxu0 %v2834
    %3610 = vmatprep.subr.bf16.mxu0 %v2842
    %3611 = vmatpush1.bf16.msra.mxu0 %v2841
    %3612 = vmatprep.subr.bf16.mxu0 %v2849
    %3613 = vmatpush1.bf16.msra.mxu0 %v2848
    %3614 = vmatprep.subr.bf16.mxu0 %v2856
    %3615 = vmatpush1.bf16.msra.mxu0 %v2855
    %3616 = vmatprep.subr.bf16.mxu0 %v2863
    %3617 = vmatpush1.bf16.msra.mxu0 %v2862
    %3618 = vmatprep.subr.bf16.mxu0 %v2870
    %3619 = vmatpush1.bf16.msra.mxu0 %v2869
    %3620 = vmatprep.subr.bf16.mxu0 %v2877
    %3621 = vmatpush1.bf16.msra.mxu0 %v2876
    %3622 = vmatprep.subr.bf16.mxu0 %v2884
    %3623 = vmatpush1.bf16.msra.mxu0 %v2883
    %3624 = vmatprep.subr.bf16.mxu0 %v2891
    %3625 = vmatpush1.bf16.msra.mxu0 %v2890
    %3626 = vmatprep.subr.bf16.mxu0 %v2898
    %3627 = vmatpush1.bf16.msra.mxu0 %v2897
    %3628 = vmatprep.mubr.bf16.mxu0 %v847
    %3629 = vmatmul.mubr.bf16.gmra.mrb[0].mxu0 %v846
    %v3630 = vpop.f32.mrb[0].mxu0
    %v3631 = vadd.f32 %v3590, %v3630
    %v3632 = vpop.f32.mrb[0].mxu0
    %v3633 = vadd.f32 %v3592, %v3632
    %v3634 = vpop.f32.mrb[0].mxu0
    %v3635 = vpop.f32.mrb[0].mxu0
    %3636 = vdwg.mxu0
    %3637 = vmatprep.subr.bf16.mxu0 %v2905
    %3638 = vmatpush1.bf16.msra.mxu0 %v2904
    %3639 = vmatprep.subr.bf16.mxu0 %v2912
    %3640 = vmatpush1.bf16.msra.mxu0 %v2911
    %3641 = vmatprep.subr.bf16.mxu0 %v2919
    %3642 = vmatpush1.bf16.msra.mxu0 %v2918
    %3643 = vmatprep.subr.bf16.mxu0 %v2926
    %3644 = vmatpush1.bf16.msra.mxu0 %v2925
    %3645 = vmatprep.subr.bf16.mxu0 %v2933
    %3646 = vmatpush1.bf16.msra.mxu0 %v2932
    %3647 = vmatprep.subr.bf16.mxu0 %v2940
    %3648 = vmatpush1.bf16.msra.mxu0 %v2939
    %3649 = vmatprep.subr.bf16.mxu0 %v2947
    %3650 = vmatpush1.bf16.msra.mxu0 %v2946
    %3651 = vmatprep.subr.bf16.mxu0 %v2954
    %3652 = vmatpush1.bf16.msra.mxu0 %v2953
    %3653 = vmatprep.subr.bf16.mxu0 0
    %3654 = vmatpush1.bf16.msra.mxu0 0
    %3655 = vmatprep.subr.bf16.mxu0 0
    %3656 = vmatpush1.bf16.msra.mxu0 0
    %3657 = vmatprep.subr.bf16.mxu0 0
    %3658 = vmatpush1.bf16.msra.mxu0 0
    %3659 = vmatprep.subr.bf16.mxu0 0
    %3660 = vmatpush1.bf16.msra.mxu0 0
    %3661 = vmatprep.subr.bf16.mxu0 0
    %3662 = vmatpush1.bf16.msra.mxu0 0
    %3663 = vmatprep.subr.bf16.mxu0 0
    %3664 = vmatpush1.bf16.msra.mxu0 0
    %3665 = vmatprep.subr.bf16.mxu0 0
    %3666 = vmatpush1.bf16.msra.mxu0 0
    %3667 = vmatprep.subr.bf16.mxu0 0
    %3668 = vmatpush1.bf16.msra.mxu0 0
    %3669 = vmatprep.mubr.bf16.mxu0 0
    %3670 = vmatmul.mubr.bf16.gmra.mrb[0].mxu0 %v848
    %v3671 = vpop.f32.mrb[0].mxu0
    %v3672 = vadd.f32 %v3631, %v3671
    %v3673 = vpop.f32.mrb[0].mxu0
    %v3674 = vadd.f32 %v3633, %v3673
    %v3675 = vpop.f32.mrb[0].mxu0
    %v3676 = vpop.f32.mrb[0].mxu0
    %3677 = vdwg.mxu0
    %3678 = vmatprep.subr.bf16.mxu0 %v2571
    %3679 = vmatpush1.bf16.msra.mxu0 %v2570
    %3680 = vmatprep.subr.bf16.mxu0 %v2578
    %3681 = vmatpush1.bf16.msra.mxu0 %v2577
    %3682 = vmatprep.subr.bf16.mxu0 %v2585
    %3683 = vmatpush1.bf16.msra.mxu0 %v2584
    %3684 = vmatprep.subr.bf16.mxu0 %v2592
    %3685 = vmatpush1.bf16.msra.mxu0 %v2591
    %3686 = vmatprep.subr.bf16.mxu0 %v2599
    %3687 = vmatpush1.bf16.msra.mxu0 %v2598
    %3688 = vmatprep.subr.bf16.mxu0 %v2606
    %3689 = vmatpush1.bf16.msra.mxu0 %v2605
    %3690 = vmatprep.subr.bf16.mxu0 %v2613
    %3691 = vmatpush1.bf16.msra.mxu0 %v2612
    %3692 = vmatprep.subr.bf16.mxu0 %v2620
    %3693 = vmatpush1.bf16.msra.mxu0 %v2619
    %3694 = vmatprep.subr.bf16.mxu0 %v2627
    %3695 = vmatpush1.bf16.msra.mxu0 %v2626
    %3696 = vmatprep.subr.bf16.mxu0 %v2634
    %3697 = vmatpush1.bf16.msra.mxu0 %v2633
    %3698 = vmatprep.subr.bf16.mxu0 %v2641
    %3699 = vmatpush1.bf16.msra.mxu0 %v2640
    %3700 = vmatprep.subr.bf16.mxu0 %v2648
    %3701 = vmatpush1.bf16.msra.mxu0 %v2647
    %3702 = vmatprep.subr.bf16.mxu0 %v2655
    %3703 = vmatpush1.bf16.msra.mxu0 %v2654
    %3704 = vmatprep.subr.bf16.mxu0 %v2662
    %3705 = vmatpush1.bf16.msra.mxu0 %v2661
    %3706 = vmatprep.subr.bf16.mxu0 %v2669
    %3707 = vmatpush1.bf16.msra.mxu0 %v2668
    %3708 = vmatprep.subr.bf16.mxu0 %v2676
    %3709 = vmatpush1.bf16.msra.mxu0 %v2675
    %3710 = vmatprep.mubr.bf16.mxu0 %v843
    %3711 = vmatmul.mubr.bf16.gmra.mrb[0].mxu0 %v842
    %v3712 = vpop.f32.mrb[0].mxu0
    %v3713 = vadd.f32 %v1318, %v3712
    %v3714 = vpop.f32.mrb[0].mxu0
    %v3715 = vadd.f32 %v1322, %v3714
    %v3716 = vpop.f32.mrb[0].mxu0
    %v3717 = vpop.f32.mrb[0].mxu0
    %3718 = vdwg.mxu0
    %3719 = vmatprep.subr.bf16.mxu0 %v2683
    %3720 = vmatpush1.bf16.msra.mxu0 %v2682
    %3721 = vmatprep.subr.bf16.mxu0 %v2690
    %3722 = vmatpush1.bf16.msra.mxu0 %v2689
    %3723 = vmatprep.subr.bf16.mxu0 %v2697
    %3724 = vmatpush1.bf16.msra.mxu0 %v2696
    %3725 = vmatprep.subr.bf16.mxu0 %v2704
    %3726 = vmatpush1.bf16.msra.mxu0 %v2703
    %3727 = vmatprep.subr.bf16.mxu0 %v2711
    %3728 = vmatpush1.bf16.msra.mxu0 %v2710
    %3729 = vmatprep.subr.bf16.mxu0 %v2718
    %3730 = vmatpush1.bf16.msra.mxu0 %v2717
    %3731 = vmatprep.subr.bf16.mxu0 %v2725
    %3732 = vmatpush1.bf16.msra.mxu0 %v2724
    %3733 = vmatprep.subr.bf16.mxu0 %v2732
    %3734 = vmatpush1.bf16.msra.mxu0 %v2731
    %3735 = vmatprep.subr.bf16.mxu0 %v2739
    %3736 = vmatpush1.bf16.msra.mxu0 %v2738
    %3737 = vmatprep.subr.bf16.mxu0 %v2746
    %3738 = vmatpush1.bf16.msra.mxu0 %v2745
    %3739 = vmatprep.subr.bf16.mxu0 %v2753
    %3740 = vmatpush1.bf16.msra.mxu0 %v2752
    %3741 = vmatprep.subr.bf16.mxu0 %v2760
    %3742 = vmatpush1.bf16.msra.mxu0 %v2759
    %3743 = vmatprep.subr.bf16.mxu0 %v2767
    %3744 = vmatpush1.bf16.msra.mxu0 %v2766
    %3745 = vmatprep.subr.bf16.mxu0 %v2774
    %3746 = vmatpush1.bf16.msra.mxu0 %v2773
    %3747 = vmatprep.subr.bf16.mxu0 %v2781
    %3748 = vmatpush1.bf16.msra.mxu0 %v2780
    %3749 = vmatprep.subr.bf16.mxu0 %v2788
    %3750 = vmatpush1.bf16.msra.mxu0 %v2787
    %3751 = vmatprep.mubr.bf16.mxu0 %v845
    %3752 = vmatmul.mubr.bf16.gmra.mrb[0].mxu0 %v844
    %v3753 = vpop.f32.mrb[0].mxu0
    %v3754 = vadd.f32 %v3713, %v3753
    %v3755 = vpop.f32.mrb[0].mxu0
    %v3756 = vadd.f32 %v3715, %v3755
    %v3757 = vpop.f32.mrb[0].mxu0
    %v3758 = vpop.f32.mrb[0].mxu0
    %3759 = vdwg.mxu0
    %3760 = vmatprep.subr.bf16.mxu0 %v2795
    %3761 = vmatpush1.bf16.msra.mxu0 %v2794
    %3762 = vmatprep.subr.bf16.mxu0 %v2802
    %3763 = vmatpush1.bf16.msra.mxu0 %v2801
    %3764 = vmatprep.subr.bf16.mxu0 %v2809
    %3765 = vmatpush1.bf16.msra.mxu0 %v2808
    %3766 = vmatprep.subr.bf16.mxu0 %v2816
    %3767 = vmatpush1.bf16.msra.mxu0 %v2815
    %3768 = vmatprep.subr.bf16.mxu0 %v2823
    %3769 = vmatpush1.bf16.msra.mxu0 %v2822
    %3770 = vmatprep.subr.bf16.mxu0 %v2830
    %3771 = vmatpush1.bf16.msra.mxu0 %v2829
    %3772 = vmatprep.subr.bf16.mxu0 %v2837
    %3773 = vmatpush1.bf16.msra.mxu0 %v2836
    %3774 = vmatprep.subr.bf16.mxu0 %v2844
    %3775 = vmatpush1.bf16.msra.mxu0 %v2843
    %3776 = vmatprep.subr.bf16.mxu0 %v2851
    %3777 = vmatpush1.bf16.msra.mxu0 %v2850
    %3778 = vmatprep.subr.bf16.mxu0 %v2858
    %3779 = vmatpush1.bf16.msra.mxu0 %v2857
    %3780 = vmatprep.subr.bf16.mxu0 %v2865
    %3781 = vmatpush1.bf16.msra.mxu0 %v2864
    %3782 = vmatprep.subr.bf16.mxu0 %v2872
    %3783 = vmatpush1.bf16.msra.mxu0 %v2871
    %3784 = vmatprep.subr.bf16.mxu0 %v2879
    %3785 = vmatpush1.bf16.msra.mxu0 %v2878
    %3786 = vmatprep.subr.bf16.mxu0 %v2886
    %3787 = vmatpush1.bf16.msra.mxu0 %v2885
    %3788 = vmatprep.subr.bf16.mxu0 %v2893
    %3789 = vmatpush1.bf16.msra.mxu0 %v2892
    %3790 = vmatprep.subr.bf16.mxu0 %v2900
    %3791 = vmatpush1.bf16.msra.mxu0 %v2899
    %3792 = vmatprep.mubr.bf16.mxu0 %v847
    %3793 = vmatmul.mubr.bf16.gmra.mrb[0].mxu0 %v846
    %v3794 = vpop.f32.mrb[0].mxu0
    %v3795 = vadd.f32 %v3754, %v3794
    %v3796 = vpop.f32.mrb[0].mxu0
    %v3797 = vadd.f32 %v3756, %v3796
    %v3798 = vpop.f32.mrb[0].mxu0
    %v3799 = vpop.f32.mrb[0].mxu0
    %3800 = vdwg.mxu0
    %3801 = vmatprep.subr.bf16.mxu0 %v2907
    %3802 = vmatpush1.bf16.msra.mxu0 %v2906
    %3803 = vmatprep.subr.bf16.mxu0 %v2914
    %3804 = vmatpush1.bf16.msra.mxu0 %v2913
    %3805 = vmatprep.subr.bf16.mxu0 %v2921
    %3806 = vmatpush1.bf16.msra.mxu0 %v2920
    %3807 = vmatprep.subr.bf16.mxu0 %v2928
    %3808 = vmatpush1.bf16.msra.mxu0 %v2927
    %3809 = vmatprep.subr.bf16.mxu0 %v2935
    %3810 = vmatpush1.bf16.msra.mxu0 %v2934
    %3811 = vmatprep.subr.bf16.mxu0 %v2942
    %3812 = vmatpush1.bf16.msra.mxu0 %v2941
    %3813 = vmatprep.subr.bf16.mxu0 %v2949
    %3814 = vmatpush1.bf16.msra.mxu0 %v2948
    %3815 = vmatprep.subr.bf16.mxu0 %v2956
    %3816 = vmatpush1.bf16.msra.mxu0 %v2955
    %3817 = vmatprep.subr.bf16.mxu0 0
    %3818 = vmatpush1.bf16.msra.mxu0 0
    %3819 = vmatprep.subr.bf16.mxu0 0
    %3820 = vmatpush1.bf16.msra.mxu0 0
    %3821 = vmatprep.subr.bf16.mxu0 0
    %3822 = vmatpush1.bf16.msra.mxu0 0
    %3823 = vmatprep.subr.bf16.mxu0 0
    %3824 = vmatpush1.bf16.msra.mxu0 0
    %3825 = vmatprep.subr.bf16.mxu0 0
    %3826 = vmatpush1.bf16.msra.mxu0 0
    %3827 = vmatprep.subr.bf16.mxu0 0
    %3828 = vmatpush1.bf16.msra.mxu0 0
    %3829 = vmatprep.subr.bf16.mxu0 0
    %3830 = vmatpush1.bf16.msra.mxu0 0
    %3831 = vmatprep.subr.bf16.mxu0 0
    %3832 = vmatpush1.bf16.msra.mxu0 0
    %3833 = vmatprep.mubr.bf16.mxu0 0
    %3834 = vmatmul.mubr.bf16.gmra.mrb[0].mxu0 %v848
    %v3835 = vpop.f32.mrb[0].mxu0
    %v3836 = vadd.f32 %v3795, %v3835
    %v3837 = vpop.f32.mrb[0].mxu0
    %v3838 = vadd.f32 %v3797, %v3837
    %v3839 = vpop.f32.mrb[0].mxu0
    %v3840 = vpop.f32.mrb[0].mxu0
    %3841 = vdwg.mxu0
    %3842 = vmatprep.subr.bf16.mxu0 0
    %3843 = vmatpush1.bf16.msra.mxu0 %v2572
    %3844 = vmatprep.subr.bf16.mxu0 0
    %3845 = vmatpush1.bf16.msra.mxu0 %v2579
    %3846 = vmatprep.subr.bf16.mxu0 0
    %3847 = vmatpush1.bf16.msra.mxu0 %v2586
    %3848 = vmatprep.subr.bf16.mxu0 0
    %3849 = vmatpush1.bf16.msra.mxu0 %v2593
    %3850 = vmatprep.subr.bf16.mxu0 0
    %3851 = vmatpush1.bf16.msra.mxu0 %v2600
    %3852 = vmatprep.subr.bf16.mxu0 0
    %3853 = vmatpush1.bf16.msra.mxu0 %v2607
    %3854 = vmatprep.subr.bf16.mxu0 0
    %3855 = vmatpush1.bf16.msra.mxu0 %v2614
    %3856 = vmatprep.subr.bf16.mxu0 0
    %3857 = vmatpush1.bf16.msra.mxu0 %v2621
    %3858 = vmatprep.subr.bf16.mxu0 0
    %3859 = vmatpush1.bf16.msra.mxu0 %v2628
    %3860 = vmatprep.subr.bf16.mxu0 0
    %3861 = vmatpush1.bf16.msra.mxu0 %v2635
    %3862 = vmatprep.subr.bf16.mxu0 0
    %3863 = vmatpush1.bf16.msra.mxu0 %v2642
    %3864 = vmatprep.subr.bf16.mxu0 0
    %3865 = vmatpush1.bf16.msra.mxu0 %v2649
    %3866 = vmatprep.subr.bf16.mxu0 0
    %3867 = vmatpush1.bf16.msra.mxu0 %v2656
    %3868 = vmatprep.subr.bf16.mxu0 0
    %3869 = vmatpush1.bf16.msra.mxu0 %v2663
    %3870 = vmatprep.subr.bf16.mxu0 0
    %3871 = vmatpush1.bf16.msra.mxu0 %v2670
    %3872 = vmatprep.subr.bf16.mxu0 0
    %3873 = vmatpush1.bf16.msra.mxu0 %v2677
    %3874 = vmatprep.mubr.bf16.mxu0 %v843
    %3875 = vmatmul.mubr.bf16.gmra.mrb[0].mxu0 %v842
    %v3876 = vpop.f32.mrb[0].mxu0
    %v3877 = vadd.f32 %v1326, %v3876
    %v3878 = vpop.f32.mrb[0].mxu0
    %v3879 = vpop.f32.mrb[0].mxu0
    %v3880 = vpop.f32.mrb[0].mxu0
    %3881 = vdwg.mxu0
    %3882 = vmatprep.subr.bf16.mxu0 0
    %3883 = vmatpush1.bf16.msra.mxu0 %v2684
    %3884 = vmatprep.subr.bf16.mxu0 0
    %3885 = vmatpush1.bf16.msra.mxu0 %v2691
    %3886 = vmatprep.subr.bf16.mxu0 0
    %3887 = vmatpush1.bf16.msra.mxu0 %v2698
    %3888 = vmatprep.subr.bf16.mxu0 0
    %3889 = vmatpush1.bf16.msra.mxu0 %v2705
    %3890 = vmatprep.subr.bf16.mxu0 0
    %3891 = vmatpush1.bf16.msra.mxu0 %v2712
    %3892 = vmatprep.subr.bf16.mxu0 0
    %3893 = vmatpush1.bf16.msra.mxu0 %v2719
    %3894 = vmatprep.subr.bf16.mxu0 0
    %3895 = vmatpush1.bf16.msra.mxu0 %v2726
    %3896 = vmatprep.subr.bf16.mxu0 0
    %3897 = vmatpush1.bf16.msra.mxu0 %v2733
    %3898 = vmatprep.subr.bf16.mxu0 0
    %3899 = vmatpush1.bf16.msra.mxu0 %v2740
    %3900 = vmatprep.subr.bf16.mxu0 0
    %3901 = vmatpush1.bf16.msra.mxu0 %v2747
    %3902 = vmatprep.subr.bf16.mxu0 0
    %3903 = vmatpush1.bf16.msra.mxu0 %v2754
    %3904 = vmatprep.subr.bf16.mxu0 0
    %3905 = vmatpush1.bf16.msra.mxu0 %v2761
    %3906 = vmatprep.subr.bf16.mxu0 0
    %3907 = vmatpush1.bf16.msra.mxu0 %v2768
    %3908 = vmatprep.subr.bf16.mxu0 0
    %3909 = vmatpush1.bf16.msra.mxu0 %v2775
    %3910 = vmatprep.subr.bf16.mxu0 0
    %3911 = vmatpush1.bf16.msra.mxu0 %v2782
    %3912 = vmatprep.subr.bf16.mxu0 0
    %3913 = vmatpush1.bf16.msra.mxu0 %v2789
    %3914 = vmatprep.mubr.bf16.mxu0 %v845
    %3915 = vmatmul.mubr.bf16.gmra.mrb[0].mxu0 %v844
    %v3916 = vpop.f32.mrb[0].mxu0
    %v3917 = vadd.f32 %v3877, %v3916
    %v3918 = vpop.f32.mrb[0].mxu0
    %v3919 = vpop.f32.mrb[0].mxu0
    %v3920 = vpop.f32.mrb[0].mxu0
    %3921 = vdwg.mxu0
    %3922 = vmatprep.subr.bf16.mxu0 0
    %3923 = vmatpush1.bf16.msra.mxu0 %v2796
    %3924 = vmatprep.subr.bf16.mxu0 0
    %3925 = vmatpush1.bf16.msra.mxu0 %v2803
    %3926 = vmatprep.subr.bf16.mxu0 0
    %3927 = vmatpush1.bf16.msra.mxu0 %v2810
    %3928 = vmatprep.subr.bf16.mxu0 0
    %3929 = vmatpush1.bf16.msra.mxu0 %v2817
    %3930 = vmatprep.subr.bf16.mxu0 0
    %3931 = vmatpush1.bf16.msra.mxu0 %v2824
    %3932 = vmatprep.subr.bf16.mxu0 0
    %3933 = vmatpush1.bf16.msra.mxu0 %v2831
    %3934 = vmatprep.subr.bf16.mxu0 0
    %3935 = vmatpush1.bf16.msra.mxu0 %v2838
    %3936 = vmatprep.subr.bf16.mxu0 0
    %3937 = vmatpush1.bf16.msra.mxu0 %v2845
    %3938 = vmatprep.subr.bf16.mxu0 0
    %3939 = vmatpush1.bf16.msra.mxu0 %v2852
    %3940 = vmatprep.subr.bf16.mxu0 0
    %3941 = vmatpush1.bf16.msra.mxu0 %v2859
    %3942 = vmatprep.subr.bf16.mxu0 0
    %3943 = vmatpush1.bf16.msra.mxu0 %v2866
    %3944 = vmatprep.subr.bf16.mxu0 0
    %3945 = vmatpush1.bf16.msra.mxu0 %v2873
    %3946 = vmatprep.subr.bf16.mxu0 0
    %3947 = vmatpush1.bf16.msra.mxu0 %v2880
    %3948 = vmatprep.subr.bf16.mxu0 0
    %3949 = vmatpush1.bf16.msra.mxu0 %v2887
    %3950 = vmatprep.subr.bf16.mxu0 0
    %3951 = vmatpush1.bf16.msra.mxu0 %v2894
    %3952 = vmatprep.subr.bf16.mxu0 0
    %3953 = vmatpush1.bf16.msra.mxu0 %v2901
    %3954 = vmatprep.mubr.bf16.mxu0 %v847
    %3955 = vmatmul.mubr.bf16.gmra.mrb[0].mxu0 %v846
    %v3956 = vpop.f32.mrb[0].mxu0
    %v3957 = vadd.f32 %v3917, %v3956
    %v3958 = vpop.f32.mrb[0].mxu0
    %v3959 = vpop.f32.mrb[0].mxu0
    %v3960 = vpop.f32.mrb[0].mxu0
    %3961 = vdwg.mxu0
    %3962 = vmatprep.subr.bf16.mxu0 0
    %3963 = vmatpush1.bf16.msra.mxu0 %v2908
    %3964 = vmatprep.subr.bf16.mxu0 0
    %3965 = vmatpush1.bf16.msra.mxu0 %v2915
    %3966 = vmatprep.subr.bf16.mxu0 0
    %3967 = vmatpush1.bf16.msra.mxu0 %v2922
    %3968 = vmatprep.subr.bf16.mxu0 0
    %3969 = vmatpush1.bf16.msra.mxu0 %v2929
    %3970 = vmatprep.subr.bf16.mxu0 0
    %3971 = vmatpush1.bf16.msra.mxu0 %v2936
    %3972 = vmatprep.subr.bf16.mxu0 0
    %3973 = vmatpush1.bf16.msra.mxu0 %v2943
    %3974 = vmatprep.subr.bf16.mxu0 0
    %3975 = vmatpush1.bf16.msra.mxu0 %v2950
    %3976 = vmatprep.subr.bf16.mxu0 0
    %3977 = vmatpush1.bf16.msra.mxu0 %v2957
    %3978 = vmatprep.subr.bf16.mxu0 0
    %3979 = vmatpush1.bf16.msra.mxu0 0
    %3980 = vmatprep.subr.bf16.mxu0 0
    %3981 = vmatpush1.bf16.msra.mxu0 0
    %3982 = vmatprep.subr.bf16.mxu0 0
    %3983 = vmatpush1.bf16.msra.mxu0 0
    %3984 = vmatprep.subr.bf16.mxu0 0
    %3985 = vmatpush1.bf16.msra.mxu0 0
    %3986 = vmatprep.subr.bf16.mxu0 0
    %3987 = vmatpush1.bf16.msra.mxu0 0
    %3988 = vmatprep.subr.bf16.mxu0 0
    %3989 = vmatpush1.bf16.msra.mxu0 0
    %3990 = vmatprep.subr.bf16.mxu0 0
    %3991 = vmatpush1.bf16.msra.mxu0 0
    %3992 = vmatprep.subr.bf16.mxu0 0
    %3993 = vmatpush1.bf16.msra.mxu0 0
    %3994 = vmatprep.mubr.bf16.mxu0 0
    %3995 = vmatmul.mubr.bf16.gmra.mrb[0].mxu0 %v848
    %v3996 = vpop.f32.mrb[0].mxu0
    %v3997 = vadd.f32 %v3957, %v3996
    %v3998 = vpop.f32.mrb[0].mxu0
    %v3999 = vpop.f32.mrb[0].mxu0
    %v4000 = vpop.f32.mrb[0].mxu0
    %4001 = vdwg.mxu0
    %v4002 = vmax.f32 %v3508, 0.0
    %v4003 = vmax.f32 %v3510, 0.0
    %v4004 = vmax.f32 %v3672, 0.0
    %v4005 = vmax.f32 %v3674, 0.0
    %v4006 = vmax.f32 %v3836, 0.0
    %v4007 = vmax.f32 %v3838, 0.0
    %v4008 = vmax.f32 %v3997, 0.0
    %v4009 = vpack.c.bf16 %v4002, %v4002
    %v4010 = vpack.c.bf16 %v4003, %v4003
    %v4011 = vpack.c.bf16 %v4004, %v4004
    %v4012 = vpack.c.bf16 %v4005, %v4005
    %v4013 = vpack.c.bf16 %v4006, %v4006
    %v4014 = vpack.c.bf16 %v4007, %v4007
    %v4015 = vpack.c.bf16 %v4008, %v4008
    %v4016 = vld [vmem:[#allocation13] sm:$0xf]
    %v4017 = vld [vmem:[#allocation13 + $0x4] sm:$0xf]
    %v4018 = vld [vmem:[#allocation13 + $0x8] sm:$0xf]
    %v4019 = vld [vmem:[#allocation13 + $0xc] sm:$0xf]
    %v4020 = vld [vmem:[#allocation13 + $0x10] sm:$0xf]
    %v4021 = vld [vmem:[#allocation13 + $0x14] sm:$0xf]
    %v4022 = vld [vmem:[#allocation13 + $0x18] sm:$0xf]
    %v4023 = vld [vmem:[#allocation13 + $0x1c] sm:$0xf]
    %v4024 = vld [vmem:[#allocation13 + $0x20] sm:$0xf]
    %v4025 = vld [vmem:[#allocation13 + $0x24] sm:$0xf]
    %v4026 = vld [vmem:[#allocation13 + $0x28] sm:$0xf]
    %v4027 = vld [vmem:[#allocation13 + $0x2c] sm:$0xf]
    %v4028 = vld [vmem:[#allocation13 + $0x30] sm:$0xf]
    %v4029 = vld [vmem:[#allocation13 + $0x34] sm:$0xf]
    %v4030 = vld [vmem:[#allocation13 + $0x38] sm:$0xf]
    %v4031 = vld [vmem:[#allocation13 + $0x3c] sm:$0xf]
    %v4032 = vld [vmem:[#allocation13 + $0x40] sm:$0xf]
    %v4033 = vld [vmem:[#allocation13 + $0x44] sm:$0xf]
    %v4034 = vld [vmem:[#allocation13 + $0x48] sm:$0xf]
    %v4035 = vld [vmem:[#allocation13 + $0x4c] sm:$0xf]
    %v4036 = vld [vmem:[#allocation13 + $0x50] sm:$0xf]
    %v4037 = vld [vmem:[#allocation13 + $0x54] sm:$0xf]
    %v4038 = vld [vmem:[#allocation13 + $0x58] sm:$0xf]
    %v4039 = vld [vmem:[#allocation13 + $0x5c] sm:$0xf]
    %v4040 = vld [vmem:[#allocation13 + $0x60] sm:$0xf]
    %v4041 = vld [vmem:[#allocation13 + $0x64] sm:$0xf]
    %v4042 = vld [vmem:[#allocation13 + $0x68] sm:$0xf]
    %v4043 = vld [vmem:[#allocation13 + $0x6c] sm:$0xf]
    %v4044 = vld [vmem:[#allocation13 + $0x70] sm:$0xf]
    %v4045 = vld [vmem:[#allocation13 + $0x74] sm:$0xf]
    %v4046 = vld [vmem:[#allocation13 + $0x78] sm:$0xf]
    %v4047 = vld [vmem:[#allocation13 + $0x7c] sm:$0xf]
    %v4048 = vld [vmem:[#allocation13 + $0x80] sm:$0xf]
    %v4049 = vld [vmem:[#allocation13 + $0x84] sm:$0xf]
    %v4050 = vld [vmem:[#allocation13 + $0x88] sm:$0xf]
    %v4051 = vld [vmem:[#allocation13 + $0x8c] sm:$0xf]
    %v4052 = vld [vmem:[#allocation13 + $0x90] sm:$0xf]
    %v4053 = vld [vmem:[#allocation13 + $0x94] sm:$0xf]
    %v4054 = vld [vmem:[#allocation13 + $0x98] sm:$0xf]
    %v4055 = vld [vmem:[#allocation13 + $0x9c] sm:$0xf]
    %v4056 = vld [vmem:[#allocation13 + $0xa0] sm:$0xf]
    %v4057 = vld [vmem:[#allocation13 + $0xa4] sm:$0xf]
    %v4058 = vld [vmem:[#allocation13 + $0xa8] sm:$0xf]
    %v4059 = vld [vmem:[#allocation13 + $0xac] sm:$0xf]
    %v4060 = vld [vmem:[#allocation13 + $0xb0] sm:$0xf]
    %v4061 = vld [vmem:[#allocation13 + $0xb4] sm:$0xf]
    %v4062 = vld [vmem:[#allocation13 + $0xb8] sm:$0xf]
    %v4063 = vld [vmem:[#allocation13 + $0xbc] sm:$0xf]
    %v4064 = vld [vmem:[#allocation13 + $0xc0] sm:$0xf]
    %v4065 = vld [vmem:[#allocation13 + $0xc4] sm:$0xf]
    %v4066 = vld [vmem:[#allocation13 + $0xc8] sm:$0xf]
    %v4067 = vld [vmem:[#allocation13 + $0xcc] sm:$0xf]
    %v4068 = vld [vmem:[#allocation13 + $0xd0] sm:$0xf]
    %v4069 = vld [vmem:[#allocation13 + $0xd4] sm:$0xf]
    %v4070 = vld [vmem:[#allocation13 + $0xd8] sm:$0xf]
    %v4071 = vld [vmem:[#allocation13 + $0xdc] sm:$0xf]
    %v4072 = vld [vmem:[#allocation13 + $0xe0] sm:$0xf]
    %v4073 = vld [vmem:[#allocation13 + $0xe4] sm:$0xf]
    %v4074 = vld [vmem:[#allocation13 + $0xe8] sm:$0xf]
    %v4075 = vld [vmem:[#allocation13 + $0xec] sm:$0xf]
    %v4076 = vld [vmem:[#allocation13 + $0xf0] sm:$0xf]
    %v4077 = vld [vmem:[#allocation13 + $0xf4] sm:$0xf]
    %v4078 = vld [vmem:[#allocation13 + $0xf8] sm:$0xf]
    %v4079 = vld [vmem:[#allocation13 + $0xfc] sm:$0xf]
    %v4080 = vld [vmem:[#allocation13 + $0x100] sm:$0xf]
    %v4081 = vld [vmem:[#allocation13 + $0x104] sm:$0xf]
    %v4082 = vld [vmem:[#allocation13 + $0x108] sm:$0xf]
    %v4083 = vld [vmem:[#allocation13 + $0x10c] sm:$0xf]
    %v4084 = vld [vmem:[#allocation13 + $0x110] sm:$0xf]
    %v4085 = vld [vmem:[#allocation13 + $0x114] sm:$0xf]
    %v4086 = vld [vmem:[#allocation13 + $0x118] sm:$0xf]
    %v4087 = vld [vmem:[#allocation13 + $0x11c] sm:$0xf]
    %v4088 = vld [vmem:[#allocation13 + $0x120] sm:$0xf]
    %v4089 = vld [vmem:[#allocation13 + $0x124] sm:$0xf]
    %v4090 = vld [vmem:[#allocation13 + $0x128] sm:$0xf]
    %v4091 = vld [vmem:[#allocation13 + $0x12c] sm:$0xf]
    %v4092 = vld [vmem:[#allocation13 + $0x130] sm:$0xf]
    %v4093 = vld [vmem:[#allocation13 + $0x134] sm:$0xf]
    %v4094 = vld [vmem:[#allocation13 + $0x138] sm:$0xf]
    %v4095 = vld [vmem:[#allocation13 + $0x13c] sm:$0xf]
    %v4096 = vld [vmem:[#allocation13 + $0x140] sm:$0xf]
    %v4097 = vld [vmem:[#allocation13 + $0x144] sm:$0xf]
    %v4098 = vld [vmem:[#allocation13 + $0x148] sm:$0xf]
    %v4099 = vld [vmem:[#allocation13 + $0x14c] sm:$0xf]
    %v4100 = vld [vmem:[#allocation13 + $0x150] sm:$0xf]
    %v4101 = vld [vmem:[#allocation13 + $0x154] sm:$0xf]
    %v4102 = vld [vmem:[#allocation13 + $0x158] sm:$0xf]
    %v4103 = vld [vmem:[#allocation13 + $0x15c] sm:$0xf]
    %v4104 = vld [vmem:[#allocation13 + $0x160] sm:$0xf]
    %v4105 = vld [vmem:[#allocation13 + $0x164] sm:$0xf]
    %v4106 = vld [vmem:[#allocation13 + $0x168] sm:$0xf]
    %v4107 = vld [vmem:[#allocation13 + $0x16c] sm:$0xf]
    %v4108 = vld [vmem:[#allocation13 + $0x170] sm:$0xf]
    %v4109 = vld [vmem:[#allocation13 + $0x174] sm:$0xf]
    %v4110 = vld [vmem:[#allocation13 + $0x178] sm:$0xf]
    %v4111 = vld [vmem:[#allocation13 + $0x17c] sm:$0xf]
    %v4112 = vld [vmem:[#allocation13 + $0x180] sm:$0xf]
    %v4113 = vld [vmem:[#allocation13 + $0x184] sm:$0xf]
    %v4114 = vld [vmem:[#allocation13 + $0x188] sm:$0xf]
    %v4115 = vld [vmem:[#allocation13 + $0x18c] sm:$0xf]
    %v4116 = vld [vmem:[#allocation13 + $0x190] sm:$0xf]
    %v4117 = vld [vmem:[#allocation13 + $0x194] sm:$0xf]
    %v4118 = vld [vmem:[#allocation13 + $0x198] sm:$0xf]
    %v4119 = vld [vmem:[#allocation13 + $0x19c] sm:$0xf]
    %v4120 = vld [vmem:[#allocation13 + $0x1a0] sm:$0xf]
    %v4121 = vld [vmem:[#allocation13 + $0x1a4] sm:$0xf]
    %v4122 = vld [vmem:[#allocation13 + $0x1a8] sm:$0xf]
    %v4123 = vld [vmem:[#allocation13 + $0x1ac] sm:$0xf]
    %v4124 = vld [vmem:[#allocation13 + $0x1b0] sm:$0xf]
    %v4125 = vld [vmem:[#allocation13 + $0x1b4] sm:$0xf]
    %v4126 = vld [vmem:[#allocation13 + $0x1b8] sm:$0xf]
    %v4127 = vld [vmem:[#allocation13 + $0x1bc] sm:$0xf]
    %v4128 = vld [vmem:[#allocation14] sm:$0x1]
    %v4130 = vlaneseq
    %v4131 = vshrl.u32 %v4130, 7
    %v4132 = vsub.s32 0, %v4131
    %v4133 = vrot.slane %v4128, %v4132
    %v4247 = vunpack.c.l.b16 %v4016
    %v4248 = vunpack.c.l.b16 %v4017
    %v4249 = vunpack.c.l.b16 %v4018
    %v4250 = vunpack.c.l.b16 %v4019
    %v4251 = vunpack.c.l.b16 %v4020
    %v4252 = vunpack.c.l.b16 %v4021
    %v4253 = vunpack.c.l.b16 %v4022
    %v4254 = vunpack.c.l.b16 %v4023
    %v4255 = vunpack.c.l.b16 %v4024
    %v4256 = vunpack.c.l.b16 %v4025
    %v4257 = vunpack.c.l.b16 %v4026
    %v4258 = vunpack.c.l.b16 %v4027
    %v4259 = vunpack.c.l.b16 %v4028
    %v4260 = vunpack.c.l.b16 %v4029
    %v4261 = vunpack.c.l.b16 %v4030
    %v4262 = vunpack.c.l.b16 %v4031
    %v4263 = vunpack.c.l.b16 %v4032
    %v4264 = vunpack.c.l.b16 %v4033
    %v4265 = vunpack.c.l.b16 %v4034
    %v4266 = vunpack.c.l.b16 %v4035
    %v4267 = vunpack.c.l.b16 %v4036
    %v4268 = vunpack.c.l.b16 %v4037
    %v4269 = vunpack.c.l.b16 %v4038
    %v4270 = vunpack.c.l.b16 %v4039
    %v4271 = vunpack.c.l.b16 %v4040
    %v4272 = vunpack.c.l.b16 %v4041
    %v4273 = vunpack.c.l.b16 %v4042
    %v4274 = vunpack.c.l.b16 %v4043
    %v4275 = vunpack.c.l.b16 %v4044
    %v4276 = vunpack.c.l.b16 %v4045
    %v4277 = vunpack.c.l.b16 %v4046
    %v4278 = vunpack.c.l.b16 %v4047
    %v4279 = vunpack.c.l.b16 %v4048
    %v4280 = vunpack.c.l.b16 %v4049
    %v4281 = vunpack.c.l.b16 %v4050
    %v4282 = vunpack.c.l.b16 %v4051
    %v4283 = vunpack.c.l.b16 %v4052
    %v4284 = vunpack.c.l.b16 %v4053
    %v4285 = vunpack.c.l.b16 %v4054
    %v4286 = vunpack.c.l.b16 %v4055
    %v4287 = vunpack.c.l.b16 %v4056
    %v4288 = vunpack.c.l.b16 %v4057
    %v4289 = vunpack.c.l.b16 %v4058
    %v4290 = vunpack.c.l.b16 %v4059
    %v4291 = vunpack.c.l.b16 %v4060
    %v4292 = vunpack.c.l.b16 %v4061
    %v4293 = vunpack.c.l.b16 %v4062
    %v4294 = vunpack.c.l.b16 %v4063
    %v4295 = vunpack.c.l.b16 %v4064
    %v4296 = vunpack.c.l.b16 %v4065
    %v4297 = vunpack.c.l.b16 %v4066
    %v4298 = vunpack.c.l.b16 %v4067
    %v4299 = vunpack.c.l.b16 %v4068
    %v4300 = vunpack.c.l.b16 %v4069
    %v4301 = vunpack.c.l.b16 %v4070
    %v4302 = vunpack.c.l.b16 %v4071
    %v4303 = vunpack.c.l.b16 %v4072
    %v4304 = vunpack.c.l.b16 %v4073
    %v4305 = vunpack.c.l.b16 %v4074
    %v4306 = vunpack.c.l.b16 %v4075
    %v4307 = vunpack.c.l.b16 %v4076
    %v4308 = vunpack.c.l.b16 %v4077
    %v4309 = vunpack.c.l.b16 %v4078
    %v4310 = vunpack.c.l.b16 %v4079
    %v4311 = vunpack.c.l.b16 %v4080
    %v4312 = vunpack.c.l.b16 %v4081
    %v4313 = vunpack.c.l.b16 %v4082
    %v4314 = vunpack.c.l.b16 %v4083
    %v4315 = vunpack.c.l.b16 %v4084
    %v4316 = vunpack.c.l.b16 %v4085
    %v4317 = vunpack.c.l.b16 %v4086
    %v4318 = vunpack.c.l.b16 %v4087
    %v4319 = vunpack.c.l.b16 %v4088
    %v4320 = vunpack.c.l.b16 %v4089
    %v4321 = vunpack.c.l.b16 %v4090
    %v4322 = vunpack.c.l.b16 %v4091
    %v4323 = vunpack.c.l.b16 %v4092
    %v4324 = vunpack.c.l.b16 %v4093
    %v4325 = vunpack.c.l.b16 %v4094
    %v4326 = vunpack.c.l.b16 %v4095
    %v4327 = vunpack.c.l.b16 %v4096
    %v4328 = vunpack.c.l.b16 %v4097
    %v4329 = vunpack.c.l.b16 %v4098
    %v4330 = vunpack.c.l.b16 %v4099
    %v4331 = vunpack.c.l.b16 %v4100
    %v4332 = vunpack.c.l.b16 %v4101
    %v4333 = vunpack.c.l.b16 %v4102
    %v4334 = vunpack.c.l.b16 %v4103
    %v4335 = vunpack.c.l.b16 %v4104
    %v4336 = vunpack.c.l.b16 %v4105
    %v4337 = vunpack.c.l.b16 %v4106
    %v4338 = vunpack.c.l.b16 %v4107
    %v4339 = vunpack.c.l.b16 %v4108
    %v4340 = vunpack.c.l.b16 %v4109
    %v4341 = vunpack.c.l.b16 %v4110
    %v4342 = vunpack.c.l.b16 %v4111
    %v4343 = vunpack.c.l.b16 %v4112
    %v4344 = vunpack.c.l.b16 %v4113
    %v4345 = vunpack.c.l.b16 %v4114
    %v4346 = vunpack.c.l.b16 %v4115
    %v4347 = vunpack.c.l.b16 %v4116
    %v4348 = vunpack.c.l.b16 %v4117
    %v4349 = vunpack.c.l.b16 %v4118
    %v4350 = vunpack.c.l.b16 %v4119
    %v4351 = vunpack.c.l.b16 %v4120
    %v4352 = vunpack.c.l.b16 %v4121
    %v4353 = vunpack.c.l.b16 %v4122
    %v4354 = vunpack.c.l.b16 %v4123
    %v4355 = vunpack.c.l.b16 %v4124
    %v4356 = vunpack.c.l.b16 %v4125
    %v4357 = vunpack.c.l.b16 %v4126
    %v4358 = vunpack.c.l.b16 %v4127
    %v4359 = vpack.c.b16 %v4248, %v4247
    %v4360 = vpack.c.b16 %v4250, %v4249
    %v4361 = vpack.c.b16 %v4252, %v4251
    %v4362 = vpack.c.b16 %v4254, %v4253
    %v4363 = vpack.c.b16 %v4256, %v4255
    %v4364 = vpack.c.b16 %v4258, %v4257
    %v4365 = vpack.c.b16 %v4260, %v4259
    %v4366 = vpack.c.b16 %v4262, %v4261
    %v4367 = vpack.c.b16 %v4264, %v4263
    %v4368 = vpack.c.b16 %v4266, %v4265
    %v4369 = vpack.c.b16 %v4268, %v4267
    %v4370 = vpack.c.b16 %v4270, %v4269
    %v4371 = vpack.c.b16 %v4272, %v4271
    %v4372 = vpack.c.b16 %v4274, %v4273
    %v4373 = vpack.c.b16 %v4276, %v4275
    %v4374 = vpack.c.b16 %v4278, %v4277
    %v4375 = vpack.c.b16 %v4280, %v4279
    %v4376 = vpack.c.b16 %v4282, %v4281
    %v4377 = vpack.c.b16 %v4284, %v4283
    %v4378 = vpack.c.b16 %v4286, %v4285
    %v4379 = vpack.c.b16 %v4288, %v4287
    %v4380 = vpack.c.b16 %v4290, %v4289
    %v4381 = vpack.c.b16 %v4292, %v4291
    %v4382 = vpack.c.b16 %v4294, %v4293
    %v4383 = vpack.c.b16 %v4296, %v4295
    %v4384 = vpack.c.b16 %v4298, %v4297
    %v4385 = vpack.c.b16 %v4300, %v4299
    %v4386 = vpack.c.b16 %v4302, %v4301
    %v4387 = vpack.c.b16 %v4304, %v4303
    %v4388 = vpack.c.b16 %v4306, %v4305
    %v4389 = vpack.c.b16 %v4308, %v4307
    %v4390 = vpack.c.b16 %v4310, %v4309
    %v4391 = vpack.c.b16 %v4312, %v4311
    %v4392 = vpack.c.b16 %v4314, %v4313
    %v4393 = vpack.c.b16 %v4316, %v4315
    %v4394 = vpack.c.b16 %v4318, %v4317
    %v4395 = vpack.c.b16 %v4320, %v4319
    %v4396 = vpack.c.b16 %v4322, %v4321
    %v4397 = vpack.c.b16 %v4324, %v4323
    %v4398 = vpack.c.b16 %v4326, %v4325
    %v4399 = vpack.c.b16 %v4328, %v4327
    %v4400 = vpack.c.b16 %v4330, %v4329
    %v4401 = vpack.c.b16 %v4332, %v4331
    %v4402 = vpack.c.b16 %v4334, %v4333
    %v4403 = vpack.c.b16 %v4336, %v4335
    %v4404 = vpack.c.b16 %v4338, %v4337
    %v4405 = vpack.c.b16 %v4340, %v4339
    %v4406 = vpack.c.b16 %v4342, %v4341
    %v4407 = vpack.c.b16 %v4344, %v4343
    %v4408 = vpack.c.b16 %v4346, %v4345
    %v4409 = vpack.c.b16 %v4348, %v4347
    %v4410 = vpack.c.b16 %v4350, %v4349
    %v4411 = vpack.c.b16 %v4352, %v4351
    %v4412 = vpack.c.b16 %v4354, %v4353
    %v4413 = vpack.c.b16 %v4356, %v4355
    %v4414 = vpack.c.b16 %v4358, %v4357
    %4471 = vmatprep.subr.bf16.mxu0 0
    %4472 = vmatpush1.bf16.msra.mxu0 %v4359
    %4473 = vmatprep.subr.bf16.mxu0 0
    %4474 = vmatpush1.bf16.msra.mxu0 %v4360
    %4475 = vmatprep.subr.bf16.mxu0 0
    %4476 = vmatpush1.bf16.msra.mxu0 %v4361
    %4477 = vmatprep.subr.bf16.mxu0 0
    %4478 = vmatpush1.bf16.msra.mxu0 %v4362
    %4479 = vmatprep.subr.bf16.mxu0 0
    %4480 = vmatpush1.bf16.msra.mxu0 %v4363
    %4481 = vmatprep.subr.bf16.mxu0 0
    %4482 = vmatpush1.bf16.msra.mxu0 %v4364
    %4483 = vmatprep.subr.bf16.mxu0 0
    %4484 = vmatpush1.bf16.msra.mxu0 %v4365
    %4485 = vmatprep.subr.bf16.mxu0 0
    %4486 = vmatpush1.bf16.msra.mxu0 %v4366
    %4487 = vmatprep.subr.bf16.mxu0 0
    %4488 = vmatpush1.bf16.msra.mxu0 %v4367
    %4489 = vmatprep.subr.bf16.mxu0 0
    %4490 = vmatpush1.bf16.msra.mxu0 %v4368
    %4491 = vmatprep.subr.bf16.mxu0 0
    %4492 = vmatpush1.bf16.msra.mxu0 %v4369
    %4493 = vmatprep.subr.bf16.mxu0 0
    %4494 = vmatpush1.bf16.msra.mxu0 %v4370
    %4495 = vmatprep.subr.bf16.mxu0 0
    %4496 = vmatpush1.bf16.msra.mxu0 %v4371
    %4497 = vmatprep.subr.bf16.mxu0 0
    %4498 = vmatpush1.bf16.msra.mxu0 %v4372
    %4499 = vmatprep.subr.bf16.mxu0 0
    %4500 = vmatpush1.bf16.msra.mxu0 %v4373
    %4501 = vmatprep.subr.bf16.mxu0 0
    %4502 = vmatpush1.bf16.msra.mxu0 %v4374
    %4503 = vmatprep.mubr.bf16.mxu0 %v4010
    %4504 = vmatmul.mubr.bf16.gmra.mrb[0].mxu0 %v4009
    %v4505 = vpop.f32.mrb[0].mxu0
    %v4506 = vadd.f32 %v4133, %v4505
    %v4507 = vpop.f32.mrb[0].mxu0
    %v4508 = vpop.f32.mrb[0].mxu0
    %v4509 = vpop.f32.mrb[0].mxu0
    %4510 = vdwg.mxu0
    %4511 = vmatprep.subr.bf16.mxu0 0
    %4512 = vmatpush1.bf16.msra.mxu0 %v4375
    %4513 = vmatprep.subr.bf16.mxu0 0
    %4514 = vmatpush1.bf16.msra.mxu0 %v4376
    %4515 = vmatprep.subr.bf16.mxu0 0
    %4516 = vmatpush1.bf16.msra.mxu0 %v4377
    %4517 = vmatprep.subr.bf16.mxu0 0
    %4518 = vmatpush1.bf16.msra.mxu0 %v4378
    %4519 = vmatprep.subr.bf16.mxu0 0
    %4520 = vmatpush1.bf16.msra.mxu0 %v4379
    %4521 = vmatprep.subr.bf16.mxu0 0
    %4522 = vmatpush1.bf16.msra.mxu0 %v4380
    %4523 = vmatprep.subr.bf16.mxu0 0
    %4524 = vmatpush1.bf16.msra.mxu0 %v4381
    %4525 = vmatprep.subr.bf16.mxu0 0
    %4526 = vmatpush1.bf16.msra.mxu0 %v4382
    %4527 = vmatprep.subr.bf16.mxu0 0
    %4528 = vmatpush1.bf16.msra.mxu0 %v4383
    %4529 = vmatprep.subr.bf16.mxu0 0
    %4530 = vmatpush1.bf16.msra.mxu0 %v4384
    %4531 = vmatprep.subr.bf16.mxu0 0
    %4532 = vmatpush1.bf16.msra.mxu0 %v4385
    %4533 = vmatprep.subr.bf16.mxu0 0
    %4534 = vmatpush1.bf16.msra.mxu0 %v4386
    %4535 = vmatprep.subr.bf16.mxu0 0
    %4536 = vmatpush1.bf16.msra.mxu0 %v4387
    %4537 = vmatprep.subr.bf16.mxu0 0
    %4538 = vmatpush1.bf16.msra.mxu0 %v4388
    %4539 = vmatprep.subr.bf16.mxu0 0
    %4540 = vmatpush1.bf16.msra.mxu0 %v4389
    %4541 = vmatprep.subr.bf16.mxu0 0
    %4542 = vmatpush1.bf16.msra.mxu0 %v4390
    %4543 = vmatprep.mubr.bf16.mxu0 %v4012
    %4544 = vmatmul.mubr.bf16.gmra.mrb[0].mxu0 %v4011
    %v4545 = vpop.f32.mrb[0].mxu0
    %v4546 = vadd.f32 %v4506, %v4545
    %v4547 = vpop.f32.mrb[0].mxu0
    %v4548 = vpop.f32.mrb[0].mxu0
    %v4549 = vpop.f32.mrb[0].mxu0
    %4550 = vdwg.mxu0
    %4551 = vmatprep.subr.bf16.mxu0 0
    %4552 = vmatpush1.bf16.msra.mxu0 %v4391
    %4553 = vmatprep.subr.bf16.mxu0 0
    %4554 = vmatpush1.bf16.msra.mxu0 %v4392
    %4555 = vmatprep.subr.bf16.mxu0 0
    %4556 = vmatpush1.bf16.msra.mxu0 %v4393
    %4557 = vmatprep.subr.bf16.mxu0 0
    %4558 = vmatpush1.bf16.msra.mxu0 %v4394
    %4559 = vmatprep.subr.bf16.mxu0 0
    %4560 = vmatpush1.bf16.msra.mxu0 %v4395
    %4561 = vmatprep.subr.bf16.mxu0 0
    %4562 = vmatpush1.bf16.msra.mxu0 %v4396
    %4563 = vmatprep.subr.bf16.mxu0 0
    %4564 = vmatpush1.bf16.msra.mxu0 %v4397
    %4565 = vmatprep.subr.bf16.mxu0 0
    %4566 = vmatpush1.bf16.msra.mxu0 %v4398
    %4567 = vmatprep.subr.bf16.mxu0 0
    %4568 = vmatpush1.bf16.msra.mxu0 %v4399
    %4569 = vmatprep.subr.bf16.mxu0 0
    %4570 = vmatpush1.bf16.msra.mxu0 %v4400
    %4571 = vmatprep.subr.bf16.mxu0 0
    %4572 = vmatpush1.bf16.msra.mxu0 %v4401
    %4573 = vmatprep.subr.bf16.mxu0 0
    %4574 = vmatpush1.bf16.msra.mxu0 %v4402
    %4575 = vmatprep.subr.bf16.mxu0 0
    %4576 = vmatpush1.bf16.msra.mxu0 %v4403
    %4577 = vmatprep.subr.bf16.mxu0 0
    %4578 = vmatpush1.bf16.msra.mxu0 %v4404
    %4579 = vmatprep.subr.bf16.mxu0 0
    %4580 = vmatpush1.bf16.msra.mxu0 %v4405
    %4581 = vmatprep.subr.bf16.mxu0 0
    %4582 = vmatpush1.bf16.msra.mxu0 %v4406
    %4583 = vmatprep.mubr.bf16.mxu0 %v4014
    %4584 = vmatmul.mubr.bf16.gmra.mrb[0].mxu0 %v4013
    %v4585 = vpop.f32.mrb[0].mxu0
    %v4586 = vadd.f32 %v4546, %v4585
    %v4587 = vpop.f32.mrb[0].mxu0
    %v4588 = vpop.f32.mrb[0].mxu0
    %v4589 = vpop.f32.mrb[0].mxu0
    %4590 = vdwg.mxu0
    %4591 = vmatprep.subr.bf16.mxu0 0
    %4592 = vmatpush1.bf16.msra.mxu0 %v4407
    %4593 = vmatprep.subr.bf16.mxu0 0
    %4594 = vmatpush1.bf16.msra.mxu0 %v4408
    %4595 = vmatprep.subr.bf16.mxu0 0
    %4596 = vmatpush1.bf16.msra.mxu0 %v4409
    %4597 = vmatprep.subr.bf16.mxu0 0
    %4598 = vmatpush1.bf16.msra.mxu0 %v4410
    %4599 = vmatprep.subr.bf16.mxu0 0
    %4600 = vmatpush1.bf16.msra.mxu0 %v4411
    %4601 = vmatprep.subr.bf16.mxu0 0
    %4602 = vmatpush1.bf16.msra.mxu0 %v4412
    %4603 = vmatprep.subr.bf16.mxu0 0
    %4604 = vmatpush1.bf16.msra.mxu0 %v4413
    %4605 = vmatprep.subr.bf16.mxu0 0
    %4606 = vmatpush1.bf16.msra.mxu0 %v4414
    %4607 = vmatprep.subr.bf16.mxu0 0
    %4608 = vmatpush1.bf16.msra.mxu0 0
    %4609 = vmatprep.subr.bf16.mxu0 0
    %4610 = vmatpush1.bf16.msra.mxu0 0
    %4611 = vmatprep.subr.bf16.mxu0 0
    %4612 = vmatpush1.bf16.msra.mxu0 0
    %4613 = vmatprep.subr.bf16.mxu0 0
    %4614 = vmatpush1.bf16.msra.mxu0 0
    %4615 = vmatprep.subr.bf16.mxu0 0
    %4616 = vmatpush1.bf16.msra.mxu0 0
    %4617 = vmatprep.subr.bf16.mxu0 0
    %4618 = vmatpush1.bf16.msra.mxu0 0
    %4619 = vmatprep.subr.bf16.mxu0 0
    %4620 = vmatpush1.bf16.msra.mxu0 0
    %4621 = vmatprep.subr.bf16.mxu0 0
    %4622 = vmatpush1.bf16.msra.mxu0 0
    %4623 = vmatprep.mubr.bf16.mxu0 0
    %4624 = vmatmul.mubr.bf16.gmra.mrb[0].mxu0 %v4015
    %v4625 = vpop.f32.mrb[0].mxu0
    %v4626 = vadd.f32 %v4586, %v4625
    %v4627 = vpop.f32.mrb[0].mxu0
    %v4628 = vpop.f32.mrb[0].mxu0
    %v4629 = vpop.f32.mrb[0].mxu0
    %4630 = vdwg.mxu0
    %v4631 = vmax.f32 %v4626, 0.0
    %v4632 = vpack.c.bf16 %v4631, %v4631
    %v4633 = vld [vmem:[#allocation16] sm:$0xf]
    %v4634 = vld [vmem:[#allocation16 + $0x4] sm:$0xf]
    %v4635 = vld [vmem:[#allocation16 + $0x8] sm:$0xf]
    %v4636 = vld [vmem:[#allocation16 + $0xc] sm:$0xf]
    %v4637 = vld [vmem:[#allocation16 + $0x10] sm:$0xf]
    %v4638 = vld [vmem:[#allocation16 + $0x14] sm:$0xf]
    %v4639 = vld [vmem:[#allocation16 + $0x18] sm:$0xf]
    %v4640 = vld [vmem:[#allocation16 + $0x1c] sm:$0xf]
    %v4641 = vld [vmem:[#allocation16 + $0x20] sm:$0xf]
    %v4642 = vld [vmem:[#allocation16 + $0x24] sm:$0xf]
    %v4643 = vld [vmem:[#allocation16 + $0x28] sm:$0xf]
    %v4644 = vld [vmem:[#allocation16 + $0x2c] sm:$0xf]
    %v4645 = vld [vmem:[#allocation16 + $0x30] sm:$0xf]
    %v4646 = vld [vmem:[#allocation16 + $0x34] sm:$0xf]
    %v4647 = vld [vmem:[#allocation16 + $0x38] sm:$0xf]
    %v4648 = vld [vmem:[#allocation16 + $0x3c] sm:$0xf]
    %v4649 = vld [vmem:[#allocation17] sm:$0x1]
    %v4651 = vlaneseq
    %v4652 = vshrl.u32 %v4651, 7
    %v4653 = vsub.s32 0, %v4652
    %v4654 = vrot.slane %v4649, %v4653
    %v4672 = vunpack.c.l.b16 %v4633
    %v4673 = vunpack.c.l.b16 %v4634
    %v4674 = vunpack.c.l.b16 %v4635
    %v4675 = vunpack.c.l.b16 %v4636
    %v4676 = vunpack.c.l.b16 %v4637
    %v4677 = vunpack.c.l.b16 %v4638
    %v4678 = vunpack.c.l.b16 %v4639
    %v4679 = vunpack.c.l.b16 %v4640
    %v4680 = vunpack.c.l.b16 %v4641
    %v4681 = vunpack.c.l.b16 %v4642
    %v4682 = vunpack.c.l.b16 %v4643
    %v4683 = vunpack.c.l.b16 %v4644
    %v4684 = vunpack.c.l.b16 %v4645
    %v4685 = vunpack.c.l.b16 %v4646
    %v4686 = vunpack.c.l.b16 %v4647
    %v4687 = vunpack.c.l.b16 %v4648
    %v4688 = vpack.c.b16 %v4673, %v4672
    %v4689 = vpack.c.b16 %v4675, %v4674
    %v4690 = vpack.c.b16 %v4677, %v4676
    %v4691 = vpack.c.b16 %v4679, %v4678
    %v4692 = vpack.c.b16 %v4681, %v4680
    %v4693 = vpack.c.b16 %v4683, %v4682
    %v4694 = vpack.c.b16 %v4685, %v4684
    %v4695 = vpack.c.b16 %v4687, %v4686
    %4704 = vmatprep.subr.bf16.mxu0 0
    %4705 = vmatpush1.bf16.msra.mxu0 %v4688
    %4706 = vmatprep.subr.bf16.mxu0 0
    %4707 = vmatpush1.bf16.msra.mxu0 %v4689
    %4708 = vmatprep.subr.bf16.mxu0 0
    %4709 = vmatpush1.bf16.msra.mxu0 %v4690
    %4710 = vmatprep.subr.bf16.mxu0 0
    %4711 = vmatpush1.bf16.msra.mxu0 %v4691
    %4712 = vmatprep.subr.bf16.mxu0 0
    %4713 = vmatpush1.bf16.msra.mxu0 %v4692
    %4714 = vmatprep.subr.bf16.mxu0 0
    %4715 = vmatpush1.bf16.msra.mxu0 %v4693
    %4716 = vmatprep.subr.bf16.mxu0 0
    %4717 = vmatpush1.bf16.msra.mxu0 %v4694
    %4718 = vmatprep.subr.bf16.mxu0 0
    %4719 = vmatpush1.bf16.msra.mxu0 %v4695
    %4720 = vmatprep.subr.bf16.mxu0 0
    %4721 = vmatpush1.bf16.msra.mxu0 0
    %4722 = vmatprep.subr.bf16.mxu0 0
    %4723 = vmatpush1.bf16.msra.mxu0 0
    %4724 = vmatprep.subr.bf16.mxu0 0
    %4725 = vmatpush1.bf16.msra.mxu0 0
    %4726 = vmatprep.subr.bf16.mxu0 0
    %4727 = vmatpush1.bf16.msra.mxu0 0
    %4728 = vmatprep.subr.bf16.mxu0 0
    %4729 = vmatpush1.bf16.msra.mxu0 0
    %4730 = vmatprep.subr.bf16.mxu0 0
    %4731 = vmatpush1.bf16.msra.mxu0 0
    %4732 = vmatprep.subr.bf16.mxu0 0
    %4733 = vmatpush1.bf16.msra.mxu0 0
    %4734 = vmatprep.subr.bf16.mxu0 0
    %4735 = vmatpush1.bf16.msra.mxu0 0
    %4736 = vmatprep.mubr.bf16.mxu0 0
    %4737 = vmatmul.mubr.bf16.gmra.mrb[0].mxu0 %v4632
    %v4738 = vpop.f32.mrb[0].mxu0
    %v4739 = vadd.f32 %v4654, %v4738
    %v4740 = vpop.f32.mrb[0].mxu0
    %v4741 = vpop.f32.mrb[0].mxu0
    %v4742 = vpop.f32.mrb[0].mxu0
    %4743 = vdwg.mxu0
    %vm4744 = vcmp.lt.s32.totalorder %v169, 4
    %v4745 = vsel %vm4744, %v4739, -1e+30
    %4746 = vmax.xlane.f32.xlu0 %v4745
    %v4747 = vpop.xlane.xlu0 %4746
    %v4748 = vsub.f32 %v4745, %v4747
    %v4749 = vmul.f32 %v4748, 1.442695
    %v4750 = vpow.pop %v4749
    %4751 = vadd.xlane.f32.xlu0 %v4750
    %v4752 = vpop.xlane.xlu0 %4751
    %v4753 = vlog2.pop %v4752
    %v4754 = vmul.f32 %v4753, 0.6931472
    %v4755 = vadd.f32 %v4747, %v4754
    %v4756 = vsub.f32 %v4745, %v4755
    %v4757 = vrcp.pop %v4752
    %v4758 = vmul.f32 1.0, %v4757
    %v4759 = vmul.f32 %v4750, %v4758
    %v4760 = vmul.f32 %v4759, %v4756
    %v4761 = vsel %vm4744, %v4760, 0.0
    %4762 = vadd.xlane.f32.xlu0 %v4761
    %v4763 = vpop.xlane.xlu0 %4762
    %v4764 = vsub.f32 0.0, %v4763
    %v4765 = vsel %vm4744, %v4756, 0.0
    %vm4766 = vcmp.eq.s32.totalorder %v169, 5
    %v4767 = vsel %vm4766, %v4764, %v4765
    %4768 = vst [vmem:[#allocation19] sm:$0xff] %v4767
    // Predicated region
    $region86: #{_forward_slab.1} parent=1 // pred_check
      _
    $region87: #{_forward_slab.1} parent=1 // pred_check_branch
      %4770 = sbr.rel (0) target = $region89
    $region88: #{_forward_slab.1} parent=1 // pred_region
      %s4772 = ssub.s32 128, 128
      %4773 = vsyncadd [#allocation4], %s4772
      %s4775 = sshll.u32 [#allocation19], 4
      %s4776 = int_to_ptr.vmem [resolvable:$true] %s4775
      %4778 = dma.vmem_to_hbm [thread:$0]  %s4776, 128, %s11, [#allocation4]
    $region89: #{_forward_slab.1} parent=1 // pred_fallthru
      _
    // Predicated region
    $region90: #{_forward_slab.1} parent=1 // pred_check
      _
    $region91: #{_forward_slab.1} parent=1 // pred_check_branch
      %4780 = sbr.rel (0) target = $region93
    $region92: #{_forward_slab.1} parent=1 // pred_region
      %4781 = dma.done [#allocation4], 128
    $region93: #{_forward_slab.1} parent=1 // pred_fallthru
      _
    %4782 = vsyncpa [#allocation3], 1
    %4783 = vsyncpa [#allocation6], 1
    %4784 = vsyncpa [#allocation9], 1
    %4785 = vsyncpa [#allocation12], 1
    %4786 = vsyncpa [#allocation15], 1
    %4787 = vsyncpa [#allocation18], 1
    %4788 = vsyncpa [#allocation4], 1

</llo_original>
